<compile_context>
chip_gen: v6e
topology: v6e:2x2x1
jax: 0.10.0
libtpu: 0.0.40
codegen_flags: <defaults>
</compile_context>

<pallas_src>
import numpy as np

import jax
import jax.numpy as jnp
from jax.experimental import pallas as pl
from jax.experimental.pallas import tpu as pltpu

EPS = 1e-5


# ----------------------------------------------------------------------------
# Fused Pallas kernel: the entire LeNet forward in one grid step.
#
# Activation layout is always 2-D and VMEM-resident:
#   rows  = (sample, output row)      [sublanes]
#   lanes = (channel, output column)  [channel-major]
# ----------------------------------------------------------------------------
def _lenet_fused_kernel(x_ref, t1_ref, m1_ref, b1_ref, d1_ref, s1_ref,
                        t2_ref, m2_ref, b2_ref, d2_ref, s2_ref, wfc_ref,
                        out_ref):
    bf16, f32 = jnp.bfloat16, jnp.float32

    def mm(a, b):  # bf16 x bf16 -> f32 accumulation on the MXU
        return jnp.dot(a, b, preferred_element_type=f32)

    x = x_ref[...].astype(bf16)                        # (N*28, 28*Cin)

    # ---- Conv1 (5x5 valid) + folded-BN bias + ReLU --------------------------
    acc = None
    for ky in range(t1_ref.shape[0]):
        rows = mm(t1_ref[ky], x).astype(bf16)          # pick input rows h = ho + ky
        part = mm(rows, m1_ref[ky])                    # banded W-window x Cout matmul
        acc = part if acc is None else acc + part
    r1 = jnp.maximum(acc + b1_ref[...], 0.0)           # (N*24, 10*24) f32

    # ---- MaxPool 2x2: pairwise max + 0/1 decimation matmuls -----------------
    pmw = jnp.maximum(r1[:, :-1], r1[:, 1:])           # adjacent lanes
    pw = mm(pmw.astype(bf16), d1_ref[...])             # (N*24, 10*12)
    pmh = jnp.maximum(pw[:-1, :], pw[1:, :])           # adjacent rows
    p1 = mm(s1_ref[...], pmh.astype(bf16)).astype(bf16)   # (N*12, 10*12)

    # ---- Conv2 (5x5 valid) + folded-BN bias + ReLU ---------------------------
    acc = None
    for ky in range(t2_ref.shape[0]):
        rows = mm(t2_ref[ky], p1).astype(bf16)
        part = mm(rows, m2_ref[ky])
        acc = part if acc is None else acc + part
    r2 = jnp.maximum(acc + b2_ref[...], 0.0)           # (N*8, 20*8) f32

    # ---- MaxPool 2x2 ---------------------------------------------------------
    pmw = jnp.maximum(r2[:, :-1], r2[:, 1:])
    pw = mm(pmw.astype(bf16), d2_ref[...])             # (N*8, 20*4)
    pmh = jnp.maximum(pw[:-1, :], pw[1:, :])
    p2 = mm(s2_ref[...], pmh.astype(bf16)).astype(bf16)   # (4*N, 20*4), rows hq-major

    # ---- Flatten (PyTorch NCHW order, baked into wfc) + Linear(320 -> C) -----
    n = out_ref.shape[0]
    logits = None
    for hq in range(p2.shape[0] // n):
        part = mm(p2[hq * n:(hq + 1) * n, :], wfc_ref[hq])   # (N, num_classes)
        logits = part if logits is None else logits + part
    out_ref[...] = logits                              # raw logits, f32


# ----------------------------------------------------------------------------
# Wrapper: one pallas_call, full-array VMEM blocks, single grid step.
# ----------------------------------------------------------------------------
def _full_block(shape):
    nd = len(shape)
    return pl.BlockSpec(tuple(shape), lambda i, _nd=nd: (0,) * _nd)


def lenet_forward(consts, x_nchw):
    """LeNet forward pass -> raw logits (no softmax), one fused Pallas call."""
    n, cin, h, w = x_nchw.shape
    ncls = consts["wfc"].shape[-1]
    # (N, Cin, H, W) -> rows (n, h), lanes (w, ci).  For cin == 1 this is a
    # free reshape (no data movement).
    x2d = jnp.transpose(x_nchw, (0, 2, 3, 1)).reshape(n * h, w * cin)

    args = (x2d, consts["t1"], consts["m1"], consts["b1"], consts["d1"],
            consts["s1"], consts["t2"], consts["m2"], consts["b2"],
            consts["d2"], consts["s2"], consts["wfc"])

    return pl.pallas_call(
        _lenet_fused_kernel,
        out_shape=jax.ShapeDtypeStruct((n, ncls), jnp.float32),
        grid=(1,),
        in_specs=[_full_block(a.shape) for a in args],
        out_specs=_full_block((n, ncls)),
        compiler_params=pltpu.CompilerParams(
            dimension_semantics=("arbitrary",)),
    )(*args)


# ----------------------------------------------------------------------------
# Parameters (PyTorch-shaped, deterministic) and init-time preprocessing.
# ----------------------------------------------------------------------------
def init_torch_params(seed=0, in_channel=1, num_classes=10):
    keys = jax.random.split(jax.random.PRNGKey(seed), 11)
    f32 = jnp.float32
    return dict(
        conv1_w=jax.random.normal(keys[0], (10, in_channel, 5, 5), f32) * 0.1,
        bn1_gamma=jax.random.uniform(keys[1], (10,), f32, 0.5, 1.5),
        bn1_beta=jax.random.normal(keys[2], (10,), f32) * 0.1,
        bn1_mean=jax.random.normal(keys[3], (10,), f32) * 0.1,
        bn1_var=jax.random.uniform(keys[4], (10,), f32, 0.5, 1.5),
        conv2_w=jax.random.normal(keys[5], (20, 10, 5, 5), f32) * 0.05,
        bn2_gamma=jax.random.uniform(keys[6], (20,), f32, 0.5, 1.5),
        bn2_beta=jax.random.normal(keys[7], (20,), f32) * 0.1,
        bn2_mean=jax.random.normal(keys[8], (20,), f32) * 0.1,
        bn2_var=jax.random.uniform(keys[9], (20,), f32, 0.5, 1.5),
        fc_w=jax.random.normal(keys[10], (num_classes, 320), f32) * 0.05,
    )


def prepare_lenet_constants(params, batch):
    """Precompute every weight-derived operand of the fused kernel (once)."""
    N = batch
    cin = params["conv1_w"].shape[1]
    ncls = params["fc_w"].shape[0]
    K = 5
    H0 = W0 = 28            # input spatial size implied by Linear(320)
    H1 = W1 = 24            # conv1 output
    P1H = P1W = 12          # pool1 output
    H2 = W2 = 8             # conv2 output
    P2H = P2W = 4           # pool2 output
    C1 = params["conv1_w"].shape[0]
    C2 = params["conv2_w"].shape[0]

    f = lambda a: np.asarray(a, np.float32)

    # Fold inference-mode BatchNorm into the (bias-free) conv weights.
    sc1 = f(params["bn1_gamma"]) / np.sqrt(f(params["bn1_var"]) + EPS)
    w1 = f(params["conv1_w"]) * sc1[:, None, None, None]          # (C1, cin, 5, 5)
    b1 = f(params["bn1_beta"]) - f(params["bn1_mean"]) * sc1
    sc2 = f(params["bn2_gamma"]) / np.sqrt(f(params["bn2_var"]) + EPS)
    w2 = f(params["conv2_w"]) * sc2[:, None, None, None]          # (C2, C1, 5, 5)
    b2 = f(params["bn2_beta"]) - f(params["bn2_mean"]) * sc2
    fcw = f(params["fc_w"])                                       # (ncls, 320)

    # Banded conv matrices: M[ky][(w, ci), (co, wo)] = w[co, ci, ky, w - wo].
    M1 = np.zeros((K, W0 * cin, C1 * W1), np.float32)
    for ky in range(K):
        for kx in range(K):
            blk = w1[:, :, ky, kx].T                              # (cin, C1)
            for wo in range(W1):
                w = wo + kx
                M1[ky, w * cin:(w + 1) * cin, wo::W1] = blk
    M2 = np.zeros((K, C1 * P1W, C2 * W2), np.float32)
    for ky in range(K):
        for kx in range(K):
            blk = w2[:, :, ky, kx].T                              # (C1, C2)
            for wo in range(W2):
                wp = wo + kx
                M2[ky, wp::P1W, wo::W2] = blk

    # Conv row-tap selection: T[ky] picks input row (n, ho + ky) for output (n, ho).
    T1 = np.zeros((K, N * H1, N * H0), np.float32)
    T2 = np.zeros((K, N * H2, N * P1H), np.float32)
    for ky in range(K):
        for n in range(N):
            for ho in range(H1):
                T1[ky, n * H1 + ho, n * H0 + ho + ky] = 1.0
            for ho in range(H2):
                T2[ky, n * H2 + ho, n * P1H + ho + ky] = 1.0

    # Max-pool decimation (applied after pairwise max of adjacent lanes/rows).
    D1 = np.zeros((C1 * W1 - 1, C1 * P1W), np.float32)
    for c in range(C1):
        for wp in range(P1W):
            D1[c * W1 + 2 * wp, c * P1W + wp] = 1.0
    D2 = np.zeros((C2 * W2 - 1, C2 * P2W), np.float32)
    for c in range(C2):
        for wq in range(P2W):
            D2[c * W2 + 2 * wq, c * P2W + wq] = 1.0
    S1 = np.zeros((N * P1H, N * H1 - 1), np.float32)
    for n in range(N):
        for hp in range(P1H):
            S1[n * P1H + hp, n * H1 + 2 * hp] = 1.0
    # S2 emits rows hq-major so the FC stage can slice contiguous (hq, n) blocks.
    S2 = np.zeros((P2H * N, N * H2 - 1), np.float32)
    for n in range(N):
        for hq in range(P2H):
            S2[hq * N + n, n * H2 + 2 * hq] = 1.0

    # FC weight permuted to our (d, wq)-lane layout, one block per pooled row hq,
    # matching PyTorch's NCHW flatten order (feature index = d*16 + hq*4 + wq).
    Wfc = np.transpose(fcw.reshape(ncls, C2, P2H, P2W), (2, 1, 3, 0))
    Wfc = Wfc.reshape(P2H, C2 * P2W, ncls)

    bias1 = np.repeat(b1, W1)[None, :]                 # (1, C1*W1)
    bias2 = np.repeat(b2, W2)[None, :]                 # (1, C2*W2)

    bf = jnp.bfloat16
    return dict(
        t1=jnp.asarray(T1, bf), m1=jnp.asarray(M1, bf),
        b1=jnp.asarray(bias1, jnp.float32),
        d1=jnp.asarray(D1, bf), s1=jnp.asarray(S1, bf),
        t2=jnp.asarray(T2, bf), m2=jnp.asarray(M2, bf),
        b2=jnp.asarray(bias2, jnp.float32),
        d2=jnp.asarray(D2, bf), s2=jnp.asarray(S2, bf),
        wfc=jnp.asarray(Wfc, bf),
    )


# ----------------------------------------------------------------------------
# Pure-XLA f32 reference (inference-mode BN), for a tolerance check only.
# ----------------------------------------------------------------------------
def lenet_reference(params, x):
    hp = jax.lax.Precision.HIGHEST

    def bn(y, g, b, m, v):
        s = (g / jnp.sqrt(v + EPS))[None, :, None, None]
        return (y - m[None, :, None, None]) * s + b[None, :, None, None]

    y = jax.lax.conv_general_dilated(
        x, params["conv1_w"], (1, 1), "VALID",
        dimension_numbers=("NCHW", "OIHW", "NCHW"), precision=hp)
    y = jax.nn.relu(bn(y, params["bn1_gamma"], params["bn1_beta"],
                       params["bn1_mean"], params["bn1_var"]))
    y = jax.lax.reduce_window(y, -jnp.inf, jax.lax.max,
                              (1, 1, 2, 2), (1, 1, 2, 2), "VALID")
    y = jax.lax.conv_general_dilated(
        y, params["conv2_w"], (1, 1), "VALID",
        dimension_numbers=("NCHW", "OIHW", "NCHW"), precision=hp)
    y = jax.nn.relu(bn(y, params["bn2_gamma"], params["bn2_beta"],
                       params["bn2_mean"], params["bn2_var"]))
    y = jax.lax.reduce_window(y, -jnp.inf, jax.lax.max,
                              (1, 1, 2, 2), (1, 1, 2, 2), "VALID")
    y = y.reshape(y.shape[0], -1)                      # NCHW flatten -> (N, 320)
    return jnp.dot(y, params["fc_w"].T, precision=hp)


# ----------------------------------------------------------------------------
if __name__ == "__main__":
    # Linear(320) after two 5x5 valid convs and two 2x2 pools implies a 28x28
    # (MNIST-sized) input with in_channel=1.  Batch = 2.
    N, CIN, HW, NUM_CLASSES = 2, 1, 28, 10
    x = jax.random.normal(jax.random.PRNGKey(0), (N, CIN, HW, HW), jnp.float32)

    params = init_torch_params(seed=0, in_channel=CIN, num_classes=NUM_CLASSES)
    consts = prepare_lenet_constants(params, batch=N)

    fwd = jax.jit(lenet_forward)
    out = jax.block_until_ready(fwd(consts, x))

    ref = jax.block_until_ready(jax.jit(lenet_reference)(params, x))

    assert out.shape == (N, NUM_CLASSES), out.shape
    assert bool(jnp.all(jnp.isfinite(out)))
    max_err = float(np.abs(np.asarray(out) - np.asarray(ref)).max())
    assert np.allclose(np.asarray(out), np.asarray(ref), rtol=5e-2, atol=5e-2), max_err
    print("KERNEL_OK")
</pallas_src>

<mosaic_0001>
module attributes {stable_mosaic.version = 11 : i64} {
  func.func @_lenet_fused_kernel(%arg0: i32, %arg1: memref<56x28xf32, #tpu.memory_space<vmem>>, %arg2: memref<5x48x56xbf16, #tpu.memory_space<vmem>>, %arg3: memref<5x28x240xbf16, #tpu.memory_space<vmem>>, %arg4: memref<1x240xf32, #tpu.memory_space<vmem>>, %arg5: memref<239x120xbf16, #tpu.memory_space<vmem>>, %arg6: memref<24x47xbf16, #tpu.memory_space<vmem>>, %arg7: memref<5x16x24xbf16, #tpu.memory_space<vmem>>, %arg8: memref<5x120x160xbf16, #tpu.memory_space<vmem>>, %arg9: memref<1x160xf32, #tpu.memory_space<vmem>>, %arg10: memref<159x80xbf16, #tpu.memory_space<vmem>>, %arg11: memref<8x15xbf16, #tpu.memory_space<vmem>>, %arg12: memref<4x80x10xbf16, #tpu.memory_space<vmem>>, %arg13: memref<2x10xf32, #tpu.memory_space<vmem>>) attributes {dimension_semantics = [#tpu.dimension_semantics<arbitrary>], iteration_bounds = array<i64: 1>, scalar_prefetch = 0 : i64, scratch_operands = 0 : i64, tpu.core_type = #tpu.core_type<tc>, window_params = [{pipeline_mode = #tpu.pipeline_mode<synchronous>, transform_indices = @transform_0, window_bounds = array<i64: 56, 28>}, {pipeline_mode = #tpu.pipeline_mode<synchronous>, transform_indices = @transform_1, window_bounds = array<i64: 5, 48, 56>}, {pipeline_mode = #tpu.pipeline_mode<synchronous>, transform_indices = @transform_2, window_bounds = array<i64: 5, 28, 240>}, {pipeline_mode = #tpu.pipeline_mode<synchronous>, transform_indices = @transform_3, window_bounds = array<i64: 1, 240>}, {pipeline_mode = #tpu.pipeline_mode<synchronous>, transform_indices = @transform_4, window_bounds = array<i64: 239, 120>}, {pipeline_mode = #tpu.pipeline_mode<synchronous>, transform_indices = @transform_5, window_bounds = array<i64: 24, 47>}, {pipeline_mode = #tpu.pipeline_mode<synchronous>, transform_indices = @transform_6, window_bounds = array<i64: 5, 16, 24>}, {pipeline_mode = #tpu.pipeline_mode<synchronous>, transform_indices = @transform_7, window_bounds = array<i64: 5, 120, 160>}, {pipeline_mode = #tpu.pipeline_mode<synchronous>, transform_indices = @transform_8, window_bounds = array<i64: 1, 160>}, {pipeline_mode = #tpu.pipeline_mode<synchronous>, transform_indices = @transform_9, window_bounds = array<i64: 159, 80>}, {pipeline_mode = #tpu.pipeline_mode<synchronous>, transform_indices = @transform_10, window_bounds = array<i64: 8, 15>}, {pipeline_mode = #tpu.pipeline_mode<synchronous>, transform_indices = @transform_11, window_bounds = array<i64: 4, 80, 10>}, {pipeline_mode = #tpu.pipeline_mode<synchronous>, transform_indices = @transform_12, window_bounds = array<i64: 2, 10>}]} {
    %c0 = arith.constant 0 : index
    %c0_0 = arith.constant 0 : index
    %0 = vector.load %arg1[%c0, %c0_0] : memref<56x28xf32, #tpu.memory_space<vmem>>, vector<56x28xf32>
    %1 = arith.truncf %0 : vector<56x28xf32> to vector<56x28xbf16>
    %c0_1 = arith.constant 0 : index
    %c0_2 = arith.constant 0 : index
    %c0_3 = arith.constant 0 : index
    %2 = vector.load %arg2[%c0_1, %c0_2, %c0_3] : memref<5x48x56xbf16, #tpu.memory_space<vmem>>, vector<1x48x56xbf16>
    %3 = vector.shape_cast %2 : vector<1x48x56xbf16> to vector<48x56xbf16>
    %cst = arith.constant dense<0.000000e+00> : vector<48x28xf32>
    %4 = tpu.matmul %3, %1, %cst {dimension_numbers = #tpu.dot_dimension_numbers<[1], [0], [0], [1], [0, 0, 1, 1], [], []>} : vector<48x56xbf16>, vector<56x28xbf16>, vector<48x28xf32> -> vector<48x28xf32>
    %5 = arith.truncf %4 : vector<48x28xf32> to vector<48x28xbf16>
    %c0_4 = arith.constant 0 : index
    %c0_5 = arith.constant 0 : index
    %c0_6 = arith.constant 0 : index
    %6 = vector.load %arg3[%c0_4, %c0_5, %c0_6] : memref<5x28x240xbf16, #tpu.memory_space<vmem>>, vector<1x28x240xbf16>
    %7 = vector.shape_cast %6 : vector<1x28x240xbf16> to vector<28x240xbf16>
    %cst_7 = arith.constant dense<0.000000e+00> : vector<48x240xf32>
    %8 = tpu.matmul %5, %7, %cst_7 {dimension_numbers = #tpu.dot_dimension_numbers<[1], [0], [0], [1], [0, 0, 1, 1], [], []>} : vector<48x28xbf16>, vector<28x240xbf16>, vector<48x240xf32> -> vector<48x240xf32>
    %c1 = arith.constant 1 : index
    %c0_8 = arith.constant 0 : index
    %c0_9 = arith.constant 0 : index
    %9 = vector.load %arg2[%c1, %c0_8, %c0_9] : memref<5x48x56xbf16, #tpu.memory_space<vmem>>, vector<1x48x56xbf16>
    %10 = vector.shape_cast %9 : vector<1x48x56xbf16> to vector<48x56xbf16>
    %cst_10 = arith.constant dense<0.000000e+00> : vector<48x28xf32>
    %11 = tpu.matmul %10, %1, %cst_10 {dimension_numbers = #tpu.dot_dimension_numbers<[1], [0], [0], [1], [0, 0, 1, 1], [], []>} : vector<48x56xbf16>, vector<56x28xbf16>, vector<48x28xf32> -> vector<48x28xf32>
    %12 = arith.truncf %11 : vector<48x28xf32> to vector<48x28xbf16>
    %c1_11 = arith.constant 1 : index
    %c0_12 = arith.constant 0 : index
    %c0_13 = arith.constant 0 : index
    %13 = vector.load %arg3[%c1_11, %c0_12, %c0_13] : memref<5x28x240xbf16, #tpu.memory_space<vmem>>, vector<1x28x240xbf16>
    %14 = vector.shape_cast %13 : vector<1x28x240xbf16> to vector<28x240xbf16>
    %cst_14 = arith.constant dense<0.000000e+00> : vector<48x240xf32>
    %15 = tpu.matmul %12, %14, %cst_14 {dimension_numbers = #tpu.dot_dimension_numbers<[1], [0], [0], [1], [0, 0, 1, 1], [], []>} : vector<48x28xbf16>, vector<28x240xbf16>, vector<48x240xf32> -> vector<48x240xf32>
    %16 = arith.addf %8, %15 : vector<48x240xf32>
    %c2 = arith.constant 2 : index
    %c0_15 = arith.constant 0 : index
    %c0_16 = arith.constant 0 : index
    %17 = vector.load %arg2[%c2, %c0_15, %c0_16] : memref<5x48x56xbf16, #tpu.memory_space<vmem>>, vector<1x48x56xbf16>
    %18 = vector.shape_cast %17 : vector<1x48x56xbf16> to vector<48x56xbf16>
    %cst_17 = arith.constant dense<0.000000e+00> : vector<48x28xf32>
    %19 = tpu.matmul %18, %1, %cst_17 {dimension_numbers = #tpu.dot_dimension_numbers<[1], [0], [0], [1], [0, 0, 1, 1], [], []>} : vector<48x56xbf16>, vector<56x28xbf16>, vector<48x28xf32> -> vector<48x28xf32>
    %20 = arith.truncf %19 : vector<48x28xf32> to vector<48x28xbf16>
    %c2_18 = arith.constant 2 : index
    %c0_19 = arith.constant 0 : index
    %c0_20 = arith.constant 0 : index
    %21 = vector.load %arg3[%c2_18, %c0_19, %c0_20] : memref<5x28x240xbf16, #tpu.memory_space<vmem>>, vector<1x28x240xbf16>
    %22 = vector.shape_cast %21 : vector<1x28x240xbf16> to vector<28x240xbf16>
    %cst_21 = arith.constant dense<0.000000e+00> : vector<48x240xf32>
    %23 = tpu.matmul %20, %22, %cst_21 {dimension_numbers = #tpu.dot_dimension_numbers<[1], [0], [0], [1], [0, 0, 1, 1], [], []>} : vector<48x28xbf16>, vector<28x240xbf16>, vector<48x240xf32> -> vector<48x240xf32>
    %24 = arith.addf %16, %23 : vector<48x240xf32>
    %c3 = arith.constant 3 : index
    %c0_22 = arith.constant 0 : index
    %c0_23 = arith.constant 0 : index
    %25 = vector.load %arg2[%c3, %c0_22, %c0_23] : memref<5x48x56xbf16, #tpu.memory_space<vmem>>, vector<1x48x56xbf16>
    %26 = vector.shape_cast %25 : vector<1x48x56xbf16> to vector<48x56xbf16>
    %cst_24 = arith.constant dense<0.000000e+00> : vector<48x28xf32>
    %27 = tpu.matmul %26, %1, %cst_24 {dimension_numbers = #tpu.dot_dimension_numbers<[1], [0], [0], [1], [0, 0, 1, 1], [], []>} : vector<48x56xbf16>, vector<56x28xbf16>, vector<48x28xf32> -> vector<48x28xf32>
    %28 = arith.truncf %27 : vector<48x28xf32> to vector<48x28xbf16>
    %c3_25 = arith.constant 3 : index
    %c0_26 = arith.constant 0 : index
    %c0_27 = arith.constant 0 : index
    %29 = vector.load %arg3[%c3_25, %c0_26, %c0_27] : memref<5x28x240xbf16, #tpu.memory_space<vmem>>, vector<1x28x240xbf16>
    %30 = vector.shape_cast %29 : vector<1x28x240xbf16> to vector<28x240xbf16>
    %cst_28 = arith.constant dense<0.000000e+00> : vector<48x240xf32>
    %31 = tpu.matmul %28, %30, %cst_28 {dimension_numbers = #tpu.dot_dimension_numbers<[1], [0], [0], [1], [0, 0, 1, 1], [], []>} : vector<48x28xbf16>, vector<28x240xbf16>, vector<48x240xf32> -> vector<48x240xf32>
    %32 = arith.addf %24, %31 : vector<48x240xf32>
    %c4 = arith.constant 4 : index
    %c0_29 = arith.constant 0 : index
    %c0_30 = arith.constant 0 : index
    %33 = vector.load %arg2[%c4, %c0_29, %c0_30] : memref<5x48x56xbf16, #tpu.memory_space<vmem>>, vector<1x48x56xbf16>
    %34 = vector.shape_cast %33 : vector<1x48x56xbf16> to vector<48x56xbf16>
    %cst_31 = arith.constant dense<0.000000e+00> : vector<48x28xf32>
    %35 = tpu.matmul %34, %1, %cst_31 {dimension_numbers = #tpu.dot_dimension_numbers<[1], [0], [0], [1], [0, 0, 1, 1], [], []>} : vector<48x56xbf16>, vector<56x28xbf16>, vector<48x28xf32> -> vector<48x28xf32>
    %36 = arith.truncf %35 : vector<48x28xf32> to vector<48x28xbf16>
    %c4_32 = arith.constant 4 : index
    %c0_33 = arith.constant 0 : index
    %c0_34 = arith.constant 0 : index
    %37 = vector.load %arg3[%c4_32, %c0_33, %c0_34] : memref<5x28x240xbf16, #tpu.memory_space<vmem>>, vector<1x28x240xbf16>
    %38 = vector.shape_cast %37 : vector<1x28x240xbf16> to vector<28x240xbf16>
    %cst_35 = arith.constant dense<0.000000e+00> : vector<48x240xf32>
    %39 = tpu.matmul %36, %38, %cst_35 {dimension_numbers = #tpu.dot_dimension_numbers<[1], [0], [0], [1], [0, 0, 1, 1], [], []>} : vector<48x28xbf16>, vector<28x240xbf16>, vector<48x240xf32> -> vector<48x240xf32>
    %40 = arith.addf %32, %39 : vector<48x240xf32>
    %c0_36 = arith.constant 0 : index
    %c0_37 = arith.constant 0 : index
    %41 = vector.load %arg4[%c0_36, %c0_37] : memref<1x240xf32, #tpu.memory_space<vmem>>, vector<1x240xf32>
    %42 = vector.broadcast %41 : vector<1x240xf32> to vector<48x240xf32>
    %43 = arith.addf %40, %42 : vector<48x240xf32>
    %cst_38 = arith.constant 0.000000e+00 : f32
    %44 = vector.broadcast %cst_38 : f32 to vector<48x240xf32>
    %45 = arith.maximumf %43, %44 : vector<48x240xf32>
    %46 = vector.extract_strided_slice %45 {offsets = [0, 0], sizes = [48, 239], strides = [1, 1]} : vector<48x240xf32> to vector<48x239xf32>
    %47 = vector.extract_strided_slice %45 {offsets = [0, 1], sizes = [48, 239], strides = [1, 1]} : vector<48x240xf32> to vector<48x239xf32>
    %48 = arith.maximumf %46, %47 : vector<48x239xf32>
    %49 = arith.truncf %48 : vector<48x239xf32> to vector<48x239xbf16>
    %c0_39 = arith.constant 0 : index
    %c0_40 = arith.constant 0 : index
    %50 = vector.load %arg5[%c0_39, %c0_40] : memref<239x120xbf16, #tpu.memory_space<vmem>>, vector<239x120xbf16>
    %cst_41 = arith.constant dense<0.000000e+00> : vector<48x120xf32>
    %51 = tpu.matmul %49, %50, %cst_41 {dimension_numbers = #tpu.dot_dimension_numbers<[1], [0], [0], [1], [0, 0, 1, 1], [], []>} : vector<48x239xbf16>, vector<239x120xbf16>, vector<48x120xf32> -> vector<48x120xf32>
    %52 = vector.extract_strided_slice %51 {offsets = [0, 0], sizes = [47, 120], strides = [1, 1]} : vector<48x120xf32> to vector<47x120xf32>
    %53 = vector.extract_strided_slice %51 {offsets = [1, 0], sizes = [47, 120], strides = [1, 1]} : vector<48x120xf32> to vector<47x120xf32>
    %54 = arith.maximumf %52, %53 : vector<47x120xf32>
    %c0_42 = arith.constant 0 : index
    %c0_43 = arith.constant 0 : index
    %55 = vector.load %arg6[%c0_42, %c0_43] : memref<24x47xbf16, #tpu.memory_space<vmem>>, vector<24x47xbf16>
    %56 = arith.truncf %54 : vector<47x120xf32> to vector<47x120xbf16>
    %cst_44 = arith.constant dense<0.000000e+00> : vector<24x120xf32>
    %57 = tpu.matmul %55, %56, %cst_44 {dimension_numbers = #tpu.dot_dimension_numbers<[1], [0], [0], [1], [0, 0, 1, 1], [], []>} : vector<24x47xbf16>, vector<47x120xbf16>, vector<24x120xf32> -> vector<24x120xf32>
    %58 = arith.truncf %57 : vector<24x120xf32> to vector<24x120xbf16>
    %c0_45 = arith.constant 0 : index
    %c0_46 = arith.constant 0 : index
    %c0_47 = arith.constant 0 : index
    %59 = vector.load %arg7[%c0_45, %c0_46, %c0_47] : memref<5x16x24xbf16, #tpu.memory_space<vmem>>, vector<1x16x24xbf16>
    %60 = vector.shape_cast %59 : vector<1x16x24xbf16> to vector<16x24xbf16>
    %cst_48 = arith.constant dense<0.000000e+00> : vector<16x120xf32>
    %61 = tpu.matmul %60, %58, %cst_48 {dimension_numbers = #tpu.dot_dimension_numbers<[1], [0], [0], [1], [0, 0, 1, 1], [], []>} : vector<16x24xbf16>, vector<24x120xbf16>, vector<16x120xf32> -> vector<16x120xf32>
    %62 = arith.truncf %61 : vector<16x120xf32> to vector<16x120xbf16>
    %c0_49 = arith.constant 0 : index
    %c0_50 = arith.constant 0 : index
    %c0_51 = arith.constant 0 : index
    %63 = vector.load %arg8[%c0_49, %c0_50, %c0_51] : memref<5x120x160xbf16, #tpu.memory_space<vmem>>, vector<1x120x160xbf16>
    %64 = vector.shape_cast %63 : vector<1x120x160xbf16> to vector<120x160xbf16>
    %cst_52 = arith.constant dense<0.000000e+00> : vector<16x160xf32>
    %65 = tpu.matmul %62, %64, %cst_52 {dimension_numbers = #tpu.dot_dimension_numbers<[1], [0], [0], [1], [0, 0, 1, 1], [], []>} : vector<16x120xbf16>, vector<120x160xbf16>, vector<16x160xf32> -> vector<16x160xf32>
    %c1_53 = arith.constant 1 : index
    %c0_54 = arith.constant 0 : index
    %c0_55 = arith.constant 0 : index
    %66 = vector.load %arg7[%c1_53, %c0_54, %c0_55] : memref<5x16x24xbf16, #tpu.memory_space<vmem>>, vector<1x16x24xbf16>
    %67 = vector.shape_cast %66 : vector<1x16x24xbf16> to vector<16x24xbf16>
    %cst_56 = arith.constant dense<0.000000e+00> : vector<16x120xf32>
    %68 = tpu.matmul %67, %58, %cst_56 {dimension_numbers = #tpu.dot_dimension_numbers<[1], [0], [0], [1], [0, 0, 1, 1], [], []>} : vector<16x24xbf16>, vector<24x120xbf16>, vector<16x120xf32> -> vector<16x120xf32>
    %69 = arith.truncf %68 : vector<16x120xf32> to vector<16x120xbf16>
    %c1_57 = arith.constant 1 : index
    %c0_58 = arith.constant 0 : index
    %c0_59 = arith.constant 0 : index
    %70 = vector.load %arg8[%c1_57, %c0_58, %c0_59] : memref<5x120x160xbf16, #tpu.memory_space<vmem>>, vector<1x120x160xbf16>
    %71 = vector.shape_cast %70 : vector<1x120x160xbf16> to vector<120x160xbf16>
    %cst_60 = arith.constant dense<0.000000e+00> : vector<16x160xf32>
    %72 = tpu.matmul %69, %71, %cst_60 {dimension_numbers = #tpu.dot_dimension_numbers<[1], [0], [0], [1], [0, 0, 1, 1], [], []>} : vector<16x120xbf16>, vector<120x160xbf16>, vector<16x160xf32> -> vector<16x160xf32>
    %73 = arith.addf %65, %72 : vector<16x160xf32>
    %c2_61 = arith.constant 2 : index
    %c0_62 = arith.constant 0 : index
    %c0_63 = arith.constant 0 : index
    %74 = vector.load %arg7[%c2_61, %c0_62, %c0_63] : memref<5x16x24xbf16, #tpu.memory_space<vmem>>, vector<1x16x24xbf16>
    %75 = vector.shape_cast %74 : vector<1x16x24xbf16> to vector<16x24xbf16>
    %cst_64 = arith.constant dense<0.000000e+00> : vector<16x120xf32>
    %76 = tpu.matmul %75, %58, %cst_64 {dimension_numbers = #tpu.dot_dimension_numbers<[1], [0], [0], [1], [0, 0, 1, 1], [], []>} : vector<16x24xbf16>, vector<24x120xbf16>, vector<16x120xf32> -> vector<16x120xf32>
    %77 = arith.truncf %76 : vector<16x120xf32> to vector<16x120xbf16>
    %c2_65 = arith.constant 2 : index
    %c0_66 = arith.constant 0 : index
    %c0_67 = arith.constant 0 : index
    %78 = vector.load %arg8[%c2_65, %c0_66, %c0_67] : memref<5x120x160xbf16, #tpu.memory_space<vmem>>, vector<1x120x160xbf16>
    %79 = vector.shape_cast %78 : vector<1x120x160xbf16> to vector<120x160xbf16>
    %cst_68 = arith.constant dense<0.000000e+00> : vector<16x160xf32>
    %80 = tpu.matmul %77, %79, %cst_68 {dimension_numbers = #tpu.dot_dimension_numbers<[1], [0], [0], [1], [0, 0, 1, 1], [], []>} : vector<16x120xbf16>, vector<120x160xbf16>, vector<16x160xf32> -> vector<16x160xf32>
    %81 = arith.addf %73, %80 : vector<16x160xf32>
    %c3_69 = arith.constant 3 : index
    %c0_70 = arith.constant 0 : index
    %c0_71 = arith.constant 0 : index
    %82 = vector.load %arg7[%c3_69, %c0_70, %c0_71] : memref<5x16x24xbf16, #tpu.memory_space<vmem>>, vector<1x16x24xbf16>
    %83 = vector.shape_cast %82 : vector<1x16x24xbf16> to vector<16x24xbf16>
    %cst_72 = arith.constant dense<0.000000e+00> : vector<16x120xf32>
    %84 = tpu.matmul %83, %58, %cst_72 {dimension_numbers = #tpu.dot_dimension_numbers<[1], [0], [0], [1], [0, 0, 1, 1], [], []>} : vector<16x24xbf16>, vector<24x120xbf16>, vector<16x120xf32> -> vector<16x120xf32>
    %85 = arith.truncf %84 : vector<16x120xf32> to vector<16x120xbf16>
    %c3_73 = arith.constant 3 : index
    %c0_74 = arith.constant 0 : index
    %c0_75 = arith.constant 0 : index
    %86 = vector.load %arg8[%c3_73, %c0_74, %c0_75] : memref<5x120x160xbf16, #tpu.memory_space<vmem>>, vector<1x120x160xbf16>
    %87 = vector.shape_cast %86 : vector<1x120x160xbf16> to vector<120x160xbf16>
    %cst_76 = arith.constant dense<0.000000e+00> : vector<16x160xf32>
    %88 = tpu.matmul %85, %87, %cst_76 {dimension_numbers = #tpu.dot_dimension_numbers<[1], [0], [0], [1], [0, 0, 1, 1], [], []>} : vector<16x120xbf16>, vector<120x160xbf16>, vector<16x160xf32> -> vector<16x160xf32>
    %89 = arith.addf %81, %88 : vector<16x160xf32>
    %c4_77 = arith.constant 4 : index
    %c0_78 = arith.constant 0 : index
    %c0_79 = arith.constant 0 : index
    %90 = vector.load %arg7[%c4_77, %c0_78, %c0_79] : memref<5x16x24xbf16, #tpu.memory_space<vmem>>, vector<1x16x24xbf16>
    %91 = vector.shape_cast %90 : vector<1x16x24xbf16> to vector<16x24xbf16>
    %cst_80 = arith.constant dense<0.000000e+00> : vector<16x120xf32>
    %92 = tpu.matmul %91, %58, %cst_80 {dimension_numbers = #tpu.dot_dimension_numbers<[1], [0], [0], [1], [0, 0, 1, 1], [], []>} : vector<16x24xbf16>, vector<24x120xbf16>, vector<16x120xf32> -> vector<16x120xf32>
    %93 = arith.truncf %92 : vector<16x120xf32> to vector<16x120xbf16>
    %c4_81 = arith.constant 4 : index
    %c0_82 = arith.constant 0 : index
    %c0_83 = arith.constant 0 : index
    %94 = vector.load %arg8[%c4_81, %c0_82, %c0_83] : memref<5x120x160xbf16, #tpu.memory_space<vmem>>, vector<1x120x160xbf16>
    %95 = vector.shape_cast %94 : vector<1x120x160xbf16> to vector<120x160xbf16>
    %cst_84 = arith.constant dense<0.000000e+00> : vector<16x160xf32>
    %96 = tpu.matmul %93, %95, %cst_84 {dimension_numbers = #tpu.dot_dimension_numbers<[1], [0], [0], [1], [0, 0, 1, 1], [], []>} : vector<16x120xbf16>, vector<120x160xbf16>, vector<16x160xf32> -> vector<16x160xf32>
    %97 = arith.addf %89, %96 : vector<16x160xf32>
    %c0_85 = arith.constant 0 : index
    %c0_86 = arith.constant 0 : index
    %98 = vector.load %arg9[%c0_85, %c0_86] : memref<1x160xf32, #tpu.memory_space<vmem>>, vector<1x160xf32>
    %99 = vector.broadcast %98 : vector<1x160xf32> to vector<16x160xf32>
    %100 = arith.addf %97, %99 : vector<16x160xf32>
    %cst_87 = arith.constant 0.000000e+00 : f32
    %101 = vector.broadcast %cst_87 : f32 to vector<16x160xf32>
    %102 = arith.maximumf %100, %101 : vector<16x160xf32>
    %103 = vector.extract_strided_slice %102 {offsets = [0, 0], sizes = [16, 159], strides = [1, 1]} : vector<16x160xf32> to vector<16x159xf32>
    %104 = vector.extract_strided_slice %102 {offsets = [0, 1], sizes = [16, 159], strides = [1, 1]} : vector<16x160xf32> to vector<16x159xf32>
    %105 = arith.maximumf %103, %104 : vector<16x159xf32>
    %106 = arith.truncf %105 : vector<16x159xf32> to vector<16x159xbf16>
    %c0_88 = arith.constant 0 : index
    %c0_89 = arith.constant 0 : index
    %107 = vector.load %arg10[%c0_88, %c0_89] : memref<159x80xbf16, #tpu.memory_space<vmem>>, vector<159x80xbf16>
    %cst_90 = arith.constant dense<0.000000e+00> : vector<16x80xf32>
    %108 = tpu.matmul %106, %107, %cst_90 {dimension_numbers = #tpu.dot_dimension_numbers<[1], [0], [0], [1], [0, 0, 1, 1], [], []>} : vector<16x159xbf16>, vector<159x80xbf16>, vector<16x80xf32> -> vector<16x80xf32>
    %109 = vector.extract_strided_slice %108 {offsets = [0, 0], sizes = [15, 80], strides = [1, 1]} : vector<16x80xf32> to vector<15x80xf32>
    %110 = vector.extract_strided_slice %108 {offsets = [1, 0], sizes = [15, 80], strides = [1, 1]} : vector<16x80xf32> to vector<15x80xf32>
    %111 = arith.maximumf %109, %110 : vector<15x80xf32>
    %c0_91 = arith.constant 0 : index
    %c0_92 = arith.constant 0 : index
    %112 = vector.load %arg11[%c0_91, %c0_92] : memref<8x15xbf16, #tpu.memory_space<vmem>>, vector<8x15xbf16>
    %113 = arith.truncf %111 : vector<15x80xf32> to vector<15x80xbf16>
    %cst_93 = arith.constant dense<0.000000e+00> : vector<8x80xf32>
    %114 = tpu.matmul %112, %113, %cst_93 {dimension_numbers = #tpu.dot_dimension_numbers<[1], [0], [0], [1], [0, 0, 1, 1], [], []>} : vector<8x15xbf16>, vector<15x80xbf16>, vector<8x80xf32> -> vector<8x80xf32>
    %115 = arith.truncf %114 : vector<8x80xf32> to vector<8x80xbf16>
    %116 = vector.extract_strided_slice %115 {offsets = [0, 0], sizes = [2, 80], strides = [1, 1]} : vector<8x80xbf16> to vector<2x80xbf16>
    %c0_94 = arith.constant 0 : index
    %c0_95 = arith.constant 0 : index
    %c0_96 = arith.constant 0 : index
    %117 = vector.load %arg12[%c0_94, %c0_95, %c0_96] : memref<4x80x10xbf16, #tpu.memory_space<vmem>>, vector<1x80x10xbf16>
    %118 = vector.shape_cast %117 : vector<1x80x10xbf16> to vector<80x10xbf16>
    %cst_97 = arith.constant dense<0.000000e+00> : vector<2x10xf32>
    %119 = tpu.matmul %116, %118, %cst_97 {dimension_numbers = #tpu.dot_dimension_numbers<[1], [0], [0], [1], [0, 0, 1, 1], [], []>} : vector<2x80xbf16>, vector<80x10xbf16>, vector<2x10xf32> -> vector<2x10xf32>
    %120 = vector.extract_strided_slice %115 {offsets = [2, 0], sizes = [2, 80], strides = [1, 1]} : vector<8x80xbf16> to vector<2x80xbf16>
    %c1_98 = arith.constant 1 : index
    %c0_99 = arith.constant 0 : index
    %c0_100 = arith.constant 0 : index
    %121 = vector.load %arg12[%c1_98, %c0_99, %c0_100] : memref<4x80x10xbf16, #tpu.memory_space<vmem>>, vector<1x80x10xbf16>
    %122 = vector.shape_cast %121 : vector<1x80x10xbf16> to vector<80x10xbf16>
    %cst_101 = arith.constant dense<0.000000e+00> : vector<2x10xf32>
    %123 = tpu.matmul %120, %122, %cst_101 {dimension_numbers = #tpu.dot_dimension_numbers<[1], [0], [0], [1], [0, 0, 1, 1], [], []>} : vector<2x80xbf16>, vector<80x10xbf16>, vector<2x10xf32> -> vector<2x10xf32>
    %124 = arith.addf %119, %123 : vector<2x10xf32>
    %125 = vector.extract_strided_slice %115 {offsets = [4, 0], sizes = [2, 80], strides = [1, 1]} : vector<8x80xbf16> to vector<2x80xbf16>
    %c2_102 = arith.constant 2 : index
    %c0_103 = arith.constant 0 : index
    %c0_104 = arith.constant 0 : index
    %126 = vector.load %arg12[%c2_102, %c0_103, %c0_104] : memref<4x80x10xbf16, #tpu.memory_space<vmem>>, vector<1x80x10xbf16>
    %127 = vector.shape_cast %126 : vector<1x80x10xbf16> to vector<80x10xbf16>
    %cst_105 = arith.constant dense<0.000000e+00> : vector<2x10xf32>
    %128 = tpu.matmul %125, %127, %cst_105 {dimension_numbers = #tpu.dot_dimension_numbers<[1], [0], [0], [1], [0, 0, 1, 1], [], []>} : vector<2x80xbf16>, vector<80x10xbf16>, vector<2x10xf32> -> vector<2x10xf32>
    %129 = arith.addf %124, %128 : vector<2x10xf32>
    %130 = vector.extract_strided_slice %115 {offsets = [6, 0], sizes = [2, 80], strides = [1, 1]} : vector<8x80xbf16> to vector<2x80xbf16>
    %c3_106 = arith.constant 3 : index
    %c0_107 = arith.constant 0 : index
    %c0_108 = arith.constant 0 : index
    %131 = vector.load %arg12[%c3_106, %c0_107, %c0_108] : memref<4x80x10xbf16, #tpu.memory_space<vmem>>, vector<1x80x10xbf16>
    %132 = vector.shape_cast %131 : vector<1x80x10xbf16> to vector<80x10xbf16>
    %cst_109 = arith.constant dense<0.000000e+00> : vector<2x10xf32>
    %133 = tpu.matmul %130, %132, %cst_109 {dimension_numbers = #tpu.dot_dimension_numbers<[1], [0], [0], [1], [0, 0, 1, 1], [], []>} : vector<2x80xbf16>, vector<80x10xbf16>, vector<2x10xf32> -> vector<2x10xf32>
    %134 = arith.addf %129, %133 : vector<2x10xf32>
    %c0_110 = arith.constant 0 : index
    %c0_111 = arith.constant 0 : index
    %135 = vector.load %arg13[%c0_110, %c0_111] : memref<2x10xf32, #tpu.memory_space<vmem>>, vector<2x10xf32>
    tpu.vector_store %arg13[%c0_110, %c0_111], %134 {strides = array<i32>} : memref<2x10xf32, #tpu.memory_space<vmem>>, vector<2x10xf32>,
    return
  }
  func.func @transform_0(%arg0: i32) -> (i32, i32) {
    %c0_i32 = arith.constant 0 : i32
    %c0_i32_0 = arith.constant 0 : i32
    %c0_i32_1 = arith.constant 0 : i32
    return %c0_i32, %c0_i32_0 : i32, i32
  }
  func.func @transform_1(%arg0: i32) -> (i32, i32, i32) {
    %c0_i32 = arith.constant 0 : i32
    %c0_i32_0 = arith.constant 0 : i32
    %c0_i32_1 = arith.constant 0 : i32
    %c0_i32_2 = arith.constant 0 : i32
    return %c0_i32, %c0_i32_0, %c0_i32_1 : i32, i32, i32
  }
  func.func @transform_2(%arg0: i32) -> (i32, i32, i32) {
    %c0_i32 = arith.constant 0 : i32
    %c0_i32_0 = arith.constant 0 : i32
    %c0_i32_1 = arith.constant 0 : i32
    %c0_i32_2 = arith.constant 0 : i32
    return %c0_i32, %c0_i32_0, %c0_i32_1 : i32, i32, i32
  }
  func.func @transform_3(%arg0: i32) -> (i32, i32) {
    %c0_i32 = arith.constant 0 : i32
    %c0_i32_0 = arith.constant 0 : i32
    %c0_i32_1 = arith.constant 0 : i32
    return %c0_i32, %c0_i32_0 : i32, i32
  }
  func.func @transform_4(%arg0: i32) -> (i32, i32) {
    %c0_i32 = arith.constant 0 : i32
    %c0_i32_0 = arith.constant 0 : i32
    %c0_i32_1 = arith.constant 0 : i32
    return %c0_i32, %c0_i32_0 : i32, i32
  }
  func.func @transform_5(%arg0: i32) -> (i32, i32) {
    %c0_i32 = arith.constant 0 : i32
    %c0_i32_0 = arith.constant 0 : i32
    %c0_i32_1 = arith.constant 0 : i32
    return %c0_i32, %c0_i32_0 : i32, i32
  }
  func.func @transform_6(%arg0: i32) -> (i32, i32, i32) {
    %c0_i32 = arith.constant 0 : i32
    %c0_i32_0 = arith.constant 0 : i32
    %c0_i32_1 = arith.constant 0 : i32
    %c0_i32_2 = arith.constant 0 : i32
    return %c0_i32, %c0_i32_0, %c0_i32_1 : i32, i32, i32
  }
  func.func @transform_7(%arg0: i32) -> (i32, i32, i32) {
    %c0_i32 = arith.constant 0 : i32
    %c0_i32_0 = arith.constant 0 : i32
    %c0_i32_1 = arith.constant 0 : i32
    %c0_i32_2 = arith.constant 0 : i32
    return %c0_i32, %c0_i32_0, %c0_i32_1 : i32, i32, i32
  }
  func.func @transform_8(%arg0: i32) -> (i32, i32) {
    %c0_i32 = arith.constant 0 : i32
    %c0_i32_0 = arith.constant 0 : i32
    %c0_i32_1 = arith.constant 0 : i32
    return %c0_i32, %c0_i32_0 : i32, i32
  }
  func.func @transform_9(%arg0: i32) -> (i32, i32) {
    %c0_i32 = arith.constant 0 : i32
    %c0_i32_0 = arith.constant 0 : i32
    %c0_i32_1 = arith.constant 0 : i32
    return %c0_i32, %c0_i32_0 : i32, i32
  }
  func.func @transform_10(%arg0: i32) -> (i32, i32) {
    %c0_i32 = arith.constant 0 : i32
    %c0_i32_0 = arith.constant 0 : i32
    %c0_i32_1 = arith.constant 0 : i32
    return %c0_i32, %c0_i32_0 : i32, i32
  }
  func.func @transform_11(%arg0: i32) -> (i32, i32, i32) {
    %c0_i32 = arith.constant 0 : i32
    %c0_i32_0 = arith.constant 0 : i32
    %c0_i32_1 = arith.constant 0 : i32
    %c0_i32_2 = arith.constant 0 : i32
    return %c0_i32, %c0_i32_0, %c0_i32_1 : i32, i32, i32
  }
  func.func @transform_12(%arg0: i32) -> (i32, i32) {
    %c0_i32 = arith.constant 0 : i32
    %c0_i32_0 = arith.constant 0 : i32
    %c0_i32_1 = arith.constant 0 : i32
    return %c0_i32, %c0_i32_0 : i32, i32
  }
}

</mosaic_0001>

<llo_original>
// kernel: lenet_forward.1
$region0: #{lenet_forward.1}
  #allocation0 [shape = 'u32[]', space=smem, size = 0x4, offset = 0x4, fixed_abs, tag = 'smem constant byte address 0x4 - core index']
  #allocation1 [shape = 'u32[144,128]{1,0:T(1,128)}', space=vmem, size = 0x12000, scoped, tag = 'internal scratch']
  %s0 = inlined_call_operand.vmem [shape: f32[56,28], index: 0, kind: input, shape index: {}]
  %s1 = inlined_call_operand.vmem [shape: bf16[5,48,56], index: 1, kind: input, shape index: {}]
  %s2 = inlined_call_operand.vmem [shape: bf16[5,28,240], index: 2, kind: input, shape index: {}]
  %s3 = inlined_call_operand.vmem [shape: f32[1,240], index: 3, kind: input, shape index: {}]
  %s4 = inlined_call_operand.vmem [shape: bf16[239,120], index: 4, kind: input, shape index: {}]
  %s5 = inlined_call_operand.vmem [shape: bf16[24,47], index: 5, kind: input, shape index: {}]
  %s6 = inlined_call_operand.vmem [shape: bf16[5,16,24], index: 6, kind: input, shape index: {}]
  %s7 = inlined_call_operand.vmem [shape: bf16[5,120,160], index: 7, kind: input, shape index: {}]
  %s8 = inlined_call_operand.vmem [shape: f32[1,160], index: 8, kind: input, shape index: {}]
  %s9 = inlined_call_operand.vmem [shape: bf16[159,80], index: 9, kind: input, shape index: {}]
  %s10 = inlined_call_operand.vmem [shape: bf16[8,15], index: 10, kind: input, shape index: {}]
  %s11 = inlined_call_operand.vmem [shape: bf16[4,80,10], index: 11, kind: input, shape index: {}]
  %s12 = inlined_call_operand.hbm [shape: f32[2,10], index: 12, kind: output, shape index: {}]
  %s13 = sld [smem:[#allocation0]]
  $region58: #{lenet_forward.1} parent=0
    _
  %s15 = ssub.s32 1, %s13
  %s16 = scalar_select 0, %s15, %s13
  $region1: #{lenet_forward.1} parent=0
    #allocation2 [shape = 'u8[1024]{0}', space=vmem, size = 0x400, scoped, tag = 'output window, operand 0, single buffered']
    #allocation3 [shape = 's32[1]{0}', space=sflag, size = 0x4, scoped, tag = 'scoped memory for lenet_forward.1']
    %17 = vsyncpa [#allocation3], 0
    // Predicated region
    $region2: #{lenet_forward.1} parent=1 // pred_check
      _
    $region3: #{lenet_forward.1} parent=1 // pred_check_branch
      %19 = sbr.rel (0) target = $region5
    $region4: #{lenet_forward.1} parent=1 // pred_region
      _
    $region5: #{lenet_forward.1} parent=1 // pred_fallthru
      _
    // Predicated region
    $region6: #{lenet_forward.1} parent=1 // pred_check
      _
    $region7: #{lenet_forward.1} parent=1 // pred_check_branch
      %21 = sbr.rel (0) target = $region9
    $region8: #{lenet_forward.1} parent=1 // pred_region
      _
    $region9: #{lenet_forward.1} parent=1 // pred_fallthru
      _
    // Predicated region
    $region10: #{lenet_forward.1} parent=1 // pred_check
      _
    $region11: #{lenet_forward.1} parent=1 // pred_check_branch
      %23 = sbr.rel (0) target = $region13
    $region12: #{lenet_forward.1} parent=1 // pred_region
      _
    $region13: #{lenet_forward.1} parent=1 // pred_fallthru
      _
    // Predicated region
    $region14: #{lenet_forward.1} parent=1 // pred_check
      _
    $region15: #{lenet_forward.1} parent=1 // pred_check_branch
      %25 = sbr.rel (0) target = $region17
    $region16: #{lenet_forward.1} parent=1 // pred_region
      _
    $region17: #{lenet_forward.1} parent=1 // pred_fallthru
      _
    // Predicated region
    $region18: #{lenet_forward.1} parent=1 // pred_check
      _
    $region19: #{lenet_forward.1} parent=1 // pred_check_branch
      %27 = sbr.rel (0) target = $region21
    $region20: #{lenet_forward.1} parent=1 // pred_region
      _
    $region21: #{lenet_forward.1} parent=1 // pred_fallthru
      _
    // Predicated region
    $region22: #{lenet_forward.1} parent=1 // pred_check
      _
    $region23: #{lenet_forward.1} parent=1 // pred_check_branch
      %29 = sbr.rel (0) target = $region25
    $region24: #{lenet_forward.1} parent=1 // pred_region
      _
    $region25: #{lenet_forward.1} parent=1 // pred_fallthru
      _
    // Predicated region
    $region26: #{lenet_forward.1} parent=1 // pred_check
      _
    $region27: #{lenet_forward.1} parent=1 // pred_check_branch
      %31 = sbr.rel (0) target = $region29
    $region28: #{lenet_forward.1} parent=1 // pred_region
      _
    $region29: #{lenet_forward.1} parent=1 // pred_fallthru
      _
    // Predicated region
    $region30: #{lenet_forward.1} parent=1 // pred_check
      _
    $region31: #{lenet_forward.1} parent=1 // pred_check_branch
      %33 = sbr.rel (0) target = $region33
    $region32: #{lenet_forward.1} parent=1 // pred_region
      _
    $region33: #{lenet_forward.1} parent=1 // pred_fallthru
      _
    // Predicated region
    $region34: #{lenet_forward.1} parent=1 // pred_check
      _
    $region35: #{lenet_forward.1} parent=1 // pred_check_branch
      %35 = sbr.rel (0) target = $region37
    $region36: #{lenet_forward.1} parent=1 // pred_region
      _
    $region37: #{lenet_forward.1} parent=1 // pred_fallthru
      _
    // Predicated region
    $region38: #{lenet_forward.1} parent=1 // pred_check
      _
    $region39: #{lenet_forward.1} parent=1 // pred_check_branch
      %37 = sbr.rel (0) target = $region41
    $region40: #{lenet_forward.1} parent=1 // pred_region
      _
    $region41: #{lenet_forward.1} parent=1 // pred_fallthru
      _
    // Predicated region
    $region42: #{lenet_forward.1} parent=1 // pred_check
      _
    $region43: #{lenet_forward.1} parent=1 // pred_check_branch
      %39 = sbr.rel (0) target = $region45
    $region44: #{lenet_forward.1} parent=1 // pred_region
      _
    $region45: #{lenet_forward.1} parent=1 // pred_fallthru
      _
    // Predicated region
    $region46: #{lenet_forward.1} parent=1 // pred_check
      _
    $region47: #{lenet_forward.1} parent=1 // pred_check_branch
      %41 = sbr.rel (0) target = $region49
    $region48: #{lenet_forward.1} parent=1 // pred_region
      _
    $region49: #{lenet_forward.1} parent=1 // pred_fallthru
      _
    %v43 = vld [vmem:[%s0] sm:$0xff]
    %v44 = vld [vmem:[%s0 + $0x8] sm:$0xff]
    %v45 = vld [vmem:[%s0 + $0x10] sm:$0xff]
    %v46 = vld [vmem:[%s0 + $0x18] sm:$0xff]
    %v47 = vld [vmem:[%s0 + $0x20] sm:$0xff]
    %v48 = vld [vmem:[%s0 + $0x28] sm:$0xff]
    %v49 = vld [vmem:[%s0 + $0x30] sm:$0xff]
    %v50 = vpack.c.bf16 %v44, %v43
    %v51 = vpack.c.bf16 %v46, %v45
    %v52 = vpack.c.bf16 %v48, %v47
    %v53 = vpack.c.bf16 %v49, %v49
    %v54 = vld [vmem:[%s1] sm:$0xf]
    %v55 = vld [vmem:[%s1 + $0x4] sm:$0xf]
    %v56 = vld [vmem:[%s1 + $0x8] sm:$0xf]
    %v57 = vld [vmem:[%s1 + $0xc] sm:$0xf]
    %v58 = vld [vmem:[%s1 + $0x10] sm:$0xf]
    %v59 = vld [vmem:[%s1 + $0x14] sm:$0xf]
    %v66 = vunpack.c.l.b16 %v54
    %v67 = vunpack.c.l.b16 %v55
    %v68 = vunpack.c.l.b16 %v56
    %v69 = vunpack.c.l.b16 %v57
    %v70 = vunpack.c.l.b16 %v58
    %v71 = vunpack.c.l.b16 %v59
    %v72 = vpack.c.b16 %v67, %v66
    %v73 = vpack.c.b16 %v69, %v68
    %v74 = vpack.c.b16 %v71, %v70
    %vm75 = vcmask 457728
    %v77 = vsel %vm75, %v72, 0
    %v80 = vsel %vm75, %v73, 0
    %v83 = vsel %vm75, %v74, 0
    %vm85 = vcmask 1043456
    %v87 = vsel %vm85, %v53, 0
    %89 = vmatprep.subr.bf16.mxu0 0
    %90 = vmatpush1.bf16.msra.mxu0 0
    %91 = vmatprep.subr.bf16.mxu0 0
    %92 = vmatpush1.bf16.msra.mxu0 0
    %93 = vmatprep.subr.bf16.mxu0 0
    %94 = vmatpush1.bf16.msra.mxu0 0
    %95 = vmatprep.subr.bf16.mxu0 0
    %96 = vmatpush1.bf16.msra.mxu0 0
    %97 = vmatprep.subr.bf16.mxu0 0
    %98 = vmatpush1.bf16.msra.mxu0 %v87
    %99 = vmatprep.subr.bf16.mxu0 0
    %100 = vmatpush1.bf16.msra.mxu0 %v52
    %101 = vmatprep.subr.bf16.mxu0 0
    %102 = vmatpush1.bf16.msra.mxu0 %v51
    %103 = vmatprep.subr.bf16.mxu0 0
    %104 = vmatpush1.bf16.msra.mxu0 %v50
    %105 = vmatprep.subr.bf16.mxu0 0
    %106 = vmatpush2.bf16.msra.mxu0 0
    %107 = vmatprep.subr.bf16.mxu0 0
    %108 = vmatpush2.bf16.msra.mxu0 0
    %109 = vmatprep.subr.bf16.mxu0 0
    %110 = vmatpush2.bf16.msra.mxu0 0
    %111 = vmatprep.subr.bf16.mxu0 0
    %112 = vmatpush2.bf16.msra.mxu0 0
    %113 = vmatprep.subr.bf16.mxu0 0
    %114 = vmatpush2.bf16.msra.mxu0 0
    %115 = vmatprep.subr.bf16.mxu0 0
    %116 = vmatpush2.bf16.msra.mxu0 0
    %117 = vmatprep.subr.bf16.mxu0 0
    %118 = vmatpush2.bf16.msra.mxu0 0
    %119 = vmatprep.subr.bf16.mxu0 0
    %120 = vmatpush2.bf16.msra.mxu0 0
    %121 = vmatprep.mubr.bf16.mxu0 0
    %122 = vmatmul.mubr.bf16.gmra.mxu0 %v77
    %v123 = vpop.f32.mrf.mxu0
    %v124 = vadd.f32 0.0, %v123
    %v125 = vpop.f32.mrf.mxu0
    %v126 = vpop.f32.mrf.mxu0
    %v127 = vadd.f32 0.0, %v126
    %v128 = vpop.f32.mrf.mxu0
    %129 = vmatprep.mubr.bf16.mxu0 0
    %130 = vmatmul.mubr.bf16.gmra.mxu0 %v80
    %v131 = vpop.f32.mrf.mxu0
    %v132 = vadd.f32 0.0, %v131
    %v133 = vpop.f32.mrf.mxu0
    %v134 = vpop.f32.mrf.mxu0
    %v135 = vadd.f32 0.0, %v134
    %v136 = vpop.f32.mrf.mxu0
    %137 = vmatprep.mubr.bf16.mxu0 0
    %138 = vmatmul.mubr.bf16.gmra.mxu0 %v83
    %v139 = vpop.f32.mrf.mxu0
    %v140 = vadd.f32 0.0, %v139
    %v141 = vpop.f32.mrf.mxu0
    %v142 = vpop.f32.mrf.mxu0
    %v143 = vadd.f32 0.0, %v142
    %v144 = vpop.f32.mrf.mxu0
    %145 = vdwg.mxu0
    %v146 = vpack.c.bf16 %v127, %v124
    %v147 = vpack.c.bf16 %v135, %v132
    %v148 = vpack.c.bf16 %v143, %v140
    %v149 = vld [vmem:[%s2] sm:$0xff]
    %v150 = vld [vmem:[%s2 + $0x8] sm:$0xff]
    %v151 = vld [vmem:[%s2 + $0x10] sm:$0xff]
    %v152 = vld [vmem:[%s2 + $0x18] sm:$0x33]
    %s153 = scalar_lea.vmem %s1, 24
    %v154 = vld [vmem:[%s153] sm:$0xf]
    %v155 = vld [vmem:[%s153 + $0x4] sm:$0xf]
    %v156 = vld [vmem:[%s153 + $0x8] sm:$0xf]
    %v157 = vld [vmem:[%s153 + $0xc] sm:$0xf]
    %v158 = vld [vmem:[%s153 + $0x10] sm:$0xf]
    %v159 = vld [vmem:[%s153 + $0x14] sm:$0xf]
    %v166 = vunpack.c.l.b16 %v154
    %v167 = vunpack.c.l.b16 %v155
    %v168 = vunpack.c.l.b16 %v156
    %v169 = vunpack.c.l.b16 %v157
    %v170 = vunpack.c.l.b16 %v158
    %v171 = vunpack.c.l.b16 %v159
    %v172 = vpack.c.b16 %v167, %v166
    %v173 = vpack.c.b16 %v169, %v168
    %v174 = vpack.c.b16 %v171, %v170
    %v176 = vsel %vm75, %v172, 0
    %v179 = vsel %vm75, %v173, 0
    %v182 = vsel %vm75, %v174, 0
    %184 = vmatprep.subr.bf16.mxu0 0
    %185 = vmatpush1.bf16.msra.mxu0 0
    %186 = vmatprep.subr.bf16.mxu0 0
    %187 = vmatpush1.bf16.msra.mxu0 0
    %188 = vmatprep.subr.bf16.mxu0 0
    %189 = vmatpush1.bf16.msra.mxu0 0
    %190 = vmatprep.subr.bf16.mxu0 0
    %191 = vmatpush1.bf16.msra.mxu0 0
    %192 = vmatprep.subr.bf16.mxu0 0
    %193 = vmatpush1.bf16.msra.mxu0 %v87
    %194 = vmatprep.subr.bf16.mxu0 0
    %195 = vmatpush1.bf16.msra.mxu0 %v52
    %196 = vmatprep.subr.bf16.mxu0 0
    %197 = vmatpush1.bf16.msra.mxu0 %v51
    %198 = vmatprep.subr.bf16.mxu0 0
    %199 = vmatpush1.bf16.msra.mxu0 %v50
    %200 = vmatprep.subr.bf16.mxu0 0
    %201 = vmatpush2.bf16.msra.mxu0 0
    %202 = vmatprep.subr.bf16.mxu0 0
    %203 = vmatpush2.bf16.msra.mxu0 0
    %204 = vmatprep.subr.bf16.mxu0 0
    %205 = vmatpush2.bf16.msra.mxu0 0
    %206 = vmatprep.subr.bf16.mxu0 0
    %207 = vmatpush2.bf16.msra.mxu0 0
    %208 = vmatprep.subr.bf16.mxu0 0
    %209 = vmatpush2.bf16.msra.mxu0 0
    %210 = vmatprep.subr.bf16.mxu0 0
    %211 = vmatpush2.bf16.msra.mxu0 0
    %212 = vmatprep.subr.bf16.mxu0 0
    %213 = vmatpush2.bf16.msra.mxu0 0
    %214 = vmatprep.subr.bf16.mxu0 0
    %215 = vmatpush2.bf16.msra.mxu0 0
    %216 = vmatprep.mubr.bf16.mxu0 0
    %217 = vmatmul.mubr.bf16.gmra.mxu0 %v176
    %v218 = vpop.f32.mrf.mxu0
    %v219 = vadd.f32 0.0, %v218
    %v220 = vpop.f32.mrf.mxu0
    %v221 = vpop.f32.mrf.mxu0
    %v222 = vadd.f32 0.0, %v221
    %v223 = vpop.f32.mrf.mxu0
    %224 = vmatprep.mubr.bf16.mxu0 0
    %225 = vmatmul.mubr.bf16.gmra.mxu0 %v179
    %v226 = vpop.f32.mrf.mxu0
    %v227 = vadd.f32 0.0, %v226
    %v228 = vpop.f32.mrf.mxu0
    %v229 = vpop.f32.mrf.mxu0
    %v230 = vadd.f32 0.0, %v229
    %v231 = vpop.f32.mrf.mxu0
    %232 = vmatprep.mubr.bf16.mxu0 0
    %233 = vmatmul.mubr.bf16.gmra.mxu0 %v182
    %v234 = vpop.f32.mrf.mxu0
    %v235 = vadd.f32 0.0, %v234
    %v236 = vpop.f32.mrf.mxu0
    %v237 = vpop.f32.mrf.mxu0
    %v238 = vadd.f32 0.0, %v237
    %v239 = vpop.f32.mrf.mxu0
    %240 = vdwg.mxu0
    %v241 = vpack.c.bf16 %v222, %v219
    %v242 = vpack.c.bf16 %v230, %v227
    %v243 = vpack.c.bf16 %v238, %v235
    %s244 = scalar_lea.vmem %s2, 32
    %v245 = vld [vmem:[%s244] sm:$0xff]
    %v246 = vld [vmem:[%s244 + $0x8] sm:$0xff]
    %v247 = vld [vmem:[%s244 + $0x10] sm:$0xff]
    %v248 = vld [vmem:[%s244 + $0x18] sm:$0x33]
    %v253 = vunpack.c.l.b16 %v245
    %v254 = vunpack.c.h.b16 %v245
    %v255 = vunpack.c.l.b16 %v246
    %v256 = vunpack.c.h.b16 %v246
    %v257 = vunpack.c.l.b16 %v247
    %v258 = vunpack.c.h.b16 %v247
    %v259 = vunpack.c.l.b16 %v248
    %v260 = vunpack.c.h.b16 %v248
    %v261 = vpack.c.b16 %v255, %v253
    %v262 = vpack.c.b16 %v256, %v254
    %v263 = vpack.c.b16 %v259, %v257
    %v264 = vpack.c.b16 %v260, %v258
    %vm267 = vcmask 228352
    %v269 = vsel %vm267, %v241, 0
    %v272 = vsel %vm267, %v242, 0
    %v275 = vsel %vm267, %v243, 0
    %vm277 = vcmask 1045504
    %v279 = vsel %vm277, %v263, 0
    %v282 = vsel %vm277, %v264, 0
    %284 = vmatprep.subr.bf16.mxu0 0
    %285 = vmatpush1.bf16.msra.mxu0 0
    %286 = vmatprep.subr.bf16.mxu0 0
    %287 = vmatpush1.bf16.msra.mxu0 0
    %288 = vmatprep.subr.bf16.mxu0 0
    %289 = vmatpush1.bf16.msra.mxu0 0
    %290 = vmatprep.subr.bf16.mxu0 0
    %291 = vmatpush1.bf16.msra.mxu0 0
    %292 = vmatprep.subr.bf16.mxu0 0
    %293 = vmatpush1.bf16.msra.mxu0 0
    %294 = vmatprep.subr.bf16.mxu0 0
    %295 = vmatpush1.bf16.msra.mxu0 0
    %296 = vmatprep.subr.bf16.mxu0 %v282
    %297 = vmatpush1.bf16.msra.mxu0 %v279
    %298 = vmatprep.subr.bf16.mxu0 %v262
    %299 = vmatpush1.bf16.msra.mxu0 %v261
    %300 = vmatprep.subr.bf16.mxu0 0
    %301 = vmatpush2.bf16.msra.mxu0 0
    %302 = vmatprep.subr.bf16.mxu0 0
    %303 = vmatpush2.bf16.msra.mxu0 0
    %304 = vmatprep.subr.bf16.mxu0 0
    %305 = vmatpush2.bf16.msra.mxu0 0
    %306 = vmatprep.subr.bf16.mxu0 0
    %307 = vmatpush2.bf16.msra.mxu0 0
    %308 = vmatprep.subr.bf16.mxu0 0
    %309 = vmatpush2.bf16.msra.mxu0 0
    %310 = vmatprep.subr.bf16.mxu0 0
    %311 = vmatpush2.bf16.msra.mxu0 0
    %312 = vmatprep.subr.bf16.mxu0 0
    %313 = vmatpush2.bf16.msra.mxu0 0
    %314 = vmatprep.subr.bf16.mxu0 0
    %315 = vmatpush2.bf16.msra.mxu0 0
    %316 = vmatprep.mubr.bf16.mxu0 0
    %317 = vmatmul.mubr.bf16.gmra.mxu0 %v269
    %v318 = vpop.f32.mrf.mxu0
    %v319 = vadd.f32 0.0, %v318
    %v320 = vpop.f32.mrf.mxu0
    %v321 = vadd.f32 0.0, %v320
    %v322 = vpop.f32.mrf.mxu0
    %v323 = vadd.f32 0.0, %v322
    %v324 = vpop.f32.mrf.mxu0
    %v325 = vadd.f32 0.0, %v324
    %326 = vmatprep.mubr.bf16.mxu0 0
    %327 = vmatmul.mubr.bf16.gmra.mxu0 %v272
    %v328 = vpop.f32.mrf.mxu0
    %v329 = vadd.f32 0.0, %v328
    %v330 = vpop.f32.mrf.mxu0
    %v331 = vadd.f32 0.0, %v330
    %v332 = vpop.f32.mrf.mxu0
    %v333 = vadd.f32 0.0, %v332
    %v334 = vpop.f32.mrf.mxu0
    %v335 = vadd.f32 0.0, %v334
    %336 = vmatprep.mubr.bf16.mxu0 0
    %337 = vmatmul.mubr.bf16.gmra.mxu0 %v275
    %v338 = vpop.f32.mrf.mxu0
    %v339 = vadd.f32 0.0, %v338
    %v340 = vpop.f32.mrf.mxu0
    %v341 = vadd.f32 0.0, %v340
    %v342 = vpop.f32.mrf.mxu0
    %v343 = vadd.f32 0.0, %v342
    %v344 = vpop.f32.mrf.mxu0
    %v345 = vadd.f32 0.0, %v344
    %346 = vdwg.mxu0
    %v351 = vunpack.c.l.b16 %v149
    %v352 = vunpack.c.h.b16 %v149
    %v353 = vunpack.c.l.b16 %v150
    %v354 = vunpack.c.h.b16 %v150
    %v355 = vunpack.c.l.b16 %v151
    %v356 = vunpack.c.h.b16 %v151
    %v357 = vunpack.c.l.b16 %v152
    %v358 = vunpack.c.h.b16 %v152
    %v359 = vpack.c.b16 %v353, %v351
    %v360 = vpack.c.b16 %v354, %v352
    %v361 = vpack.c.b16 %v357, %v355
    %v362 = vpack.c.b16 %v358, %v356
    %v366 = vsel %vm267, %v146, 0
    %v369 = vsel %vm267, %v147, 0
    %v372 = vsel %vm267, %v148, 0
    %v375 = vsel %vm277, %v361, 0
    %v378 = vsel %vm277, %v362, 0
    %380 = vmatprep.subr.bf16.mxu0 0
    %381 = vmatpush1.bf16.msra.mxu0 0
    %382 = vmatprep.subr.bf16.mxu0 0
    %383 = vmatpush1.bf16.msra.mxu0 0
    %384 = vmatprep.subr.bf16.mxu0 0
    %385 = vmatpush1.bf16.msra.mxu0 0
    %386 = vmatprep.subr.bf16.mxu0 0
    %387 = vmatpush1.bf16.msra.mxu0 0
    %388 = vmatprep.subr.bf16.mxu0 0
    %389 = vmatpush1.bf16.msra.mxu0 0
    %390 = vmatprep.subr.bf16.mxu0 0
    %391 = vmatpush1.bf16.msra.mxu0 0
    %392 = vmatprep.subr.bf16.mxu0 %v378
    %393 = vmatpush1.bf16.msra.mxu0 %v375
    %394 = vmatprep.subr.bf16.mxu0 %v360
    %395 = vmatpush1.bf16.msra.mxu0 %v359
    %396 = vmatprep.subr.bf16.mxu0 0
    %397 = vmatpush2.bf16.msra.mxu0 0
    %398 = vmatprep.subr.bf16.mxu0 0
    %399 = vmatpush2.bf16.msra.mxu0 0
    %400 = vmatprep.subr.bf16.mxu0 0
    %401 = vmatpush2.bf16.msra.mxu0 0
    %402 = vmatprep.subr.bf16.mxu0 0
    %403 = vmatpush2.bf16.msra.mxu0 0
    %404 = vmatprep.subr.bf16.mxu0 0
    %405 = vmatpush2.bf16.msra.mxu0 0
    %406 = vmatprep.subr.bf16.mxu0 0
    %407 = vmatpush2.bf16.msra.mxu0 0
    %408 = vmatprep.subr.bf16.mxu0 0
    %409 = vmatpush2.bf16.msra.mxu0 0
    %410 = vmatprep.subr.bf16.mxu0 0
    %411 = vmatpush2.bf16.msra.mxu0 0
    %412 = vmatprep.mubr.bf16.mxu0 0
    %413 = vmatmul.mubr.bf16.gmra.mxu0 %v366
    %v414 = vpop.f32.mrf.mxu0
    %v415 = vadd.f32 %v319, %v414
    %v416 = vpop.f32.mrf.mxu0
    %v417 = vadd.f32 %v321, %v416
    %v418 = vpop.f32.mrf.mxu0
    %v419 = vadd.f32 %v323, %v418
    %v420 = vpop.f32.mrf.mxu0
    %v421 = vadd.f32 %v325, %v420
    %422 = vmatprep.mubr.bf16.mxu0 0
    %423 = vmatmul.mubr.bf16.gmra.mxu0 %v369
    %v424 = vpop.f32.mrf.mxu0
    %v425 = vadd.f32 %v329, %v424
    %v426 = vpop.f32.mrf.mxu0
    %v427 = vadd.f32 %v331, %v426
    %v428 = vpop.f32.mrf.mxu0
    %v429 = vadd.f32 %v333, %v428
    %v430 = vpop.f32.mrf.mxu0
    %v431 = vadd.f32 %v335, %v430
    %432 = vmatprep.mubr.bf16.mxu0 0
    %433 = vmatmul.mubr.bf16.gmra.mxu0 %v372
    %v434 = vpop.f32.mrf.mxu0
    %v435 = vadd.f32 %v339, %v434
    %v436 = vpop.f32.mrf.mxu0
    %v437 = vadd.f32 %v341, %v436
    %v438 = vpop.f32.mrf.mxu0
    %v439 = vadd.f32 %v343, %v438
    %v440 = vpop.f32.mrf.mxu0
    %v441 = vadd.f32 %v345, %v440
    %442 = vdwg.mxu0
    %s443 = scalar_lea.vmem %s1, 48
    %v444 = vld [vmem:[%s443] sm:$0xf]
    %v445 = vld [vmem:[%s443 + $0x4] sm:$0xf]
    %v446 = vld [vmem:[%s443 + $0x8] sm:$0xf]
    %v447 = vld [vmem:[%s443 + $0xc] sm:$0xf]
    %v448 = vld [vmem:[%s443 + $0x10] sm:$0xf]
    %v449 = vld [vmem:[%s443 + $0x14] sm:$0xf]
    %v456 = vunpack.c.l.b16 %v444
    %v457 = vunpack.c.l.b16 %v445
    %v458 = vunpack.c.l.b16 %v446
    %v459 = vunpack.c.l.b16 %v447
    %v460 = vunpack.c.l.b16 %v448
    %v461 = vunpack.c.l.b16 %v449
    %v462 = vpack.c.b16 %v457, %v456
    %v463 = vpack.c.b16 %v459, %v458
    %v464 = vpack.c.b16 %v461, %v460
    %v466 = vsel %vm75, %v462, 0
    %v469 = vsel %vm75, %v463, 0
    %v472 = vsel %vm75, %v464, 0
    %474 = vmatprep.subr.bf16.mxu0 0
    %475 = vmatpush1.bf16.msra.mxu0 0
    %476 = vmatprep.subr.bf16.mxu0 0
    %477 = vmatpush1.bf16.msra.mxu0 0
    %478 = vmatprep.subr.bf16.mxu0 0
    %479 = vmatpush1.bf16.msra.mxu0 0
    %480 = vmatprep.subr.bf16.mxu0 0
    %481 = vmatpush1.bf16.msra.mxu0 0
    %482 = vmatprep.subr.bf16.mxu0 0
    %483 = vmatpush1.bf16.msra.mxu0 %v87
    %484 = vmatprep.subr.bf16.mxu0 0
    %485 = vmatpush1.bf16.msra.mxu0 %v52
    %486 = vmatprep.subr.bf16.mxu0 0
    %487 = vmatpush1.bf16.msra.mxu0 %v51
    %488 = vmatprep.subr.bf16.mxu0 0
    %489 = vmatpush1.bf16.msra.mxu0 %v50
    %490 = vmatprep.subr.bf16.mxu0 0
    %491 = vmatpush2.bf16.msra.mxu0 0
    %492 = vmatprep.subr.bf16.mxu0 0
    %493 = vmatpush2.bf16.msra.mxu0 0
    %494 = vmatprep.subr.bf16.mxu0 0
    %495 = vmatpush2.bf16.msra.mxu0 0
    %496 = vmatprep.subr.bf16.mxu0 0
    %497 = vmatpush2.bf16.msra.mxu0 0
    %498 = vmatprep.subr.bf16.mxu0 0
    %499 = vmatpush2.bf16.msra.mxu0 0
    %500 = vmatprep.subr.bf16.mxu0 0
    %501 = vmatpush2.bf16.msra.mxu0 0
    %502 = vmatprep.subr.bf16.mxu0 0
    %503 = vmatpush2.bf16.msra.mxu0 0
    %504 = vmatprep.subr.bf16.mxu0 0
    %505 = vmatpush2.bf16.msra.mxu0 0
    %506 = vmatprep.mubr.bf16.mxu0 0
    %507 = vmatmul.mubr.bf16.gmra.mxu0 %v466
    %v508 = vpop.f32.mrf.mxu0
    %v509 = vadd.f32 0.0, %v508
    %v510 = vpop.f32.mrf.mxu0
    %v511 = vpop.f32.mrf.mxu0
    %v512 = vadd.f32 0.0, %v511
    %v513 = vpop.f32.mrf.mxu0
    %514 = vmatprep.mubr.bf16.mxu0 0
    %515 = vmatmul.mubr.bf16.gmra.mxu0 %v469
    %v516 = vpop.f32.mrf.mxu0
    %v517 = vadd.f32 0.0, %v516
    %v518 = vpop.f32.mrf.mxu0
    %v519 = vpop.f32.mrf.mxu0
    %v520 = vadd.f32 0.0, %v519
    %v521 = vpop.f32.mrf.mxu0
    %522 = vmatprep.mubr.bf16.mxu0 0
    %523 = vmatmul.mubr.bf16.gmra.mxu0 %v472
    %v524 = vpop.f32.mrf.mxu0
    %v525 = vadd.f32 0.0, %v524
    %v526 = vpop.f32.mrf.mxu0
    %v527 = vpop.f32.mrf.mxu0
    %v528 = vadd.f32 0.0, %v527
    %v529 = vpop.f32.mrf.mxu0
    %530 = vdwg.mxu0
    %v531 = vpack.c.bf16 %v512, %v509
    %v532 = vpack.c.bf16 %v520, %v517
    %v533 = vpack.c.bf16 %v528, %v525
    %s534 = scalar_lea.vmem %s2, 64
    %v535 = vld [vmem:[%s534] sm:$0xff]
    %v536 = vld [vmem:[%s534 + $0x8] sm:$0xff]
    %v537 = vld [vmem:[%s534 + $0x10] sm:$0xff]
    %v538 = vld [vmem:[%s534 + $0x18] sm:$0x33]
    %v543 = vunpack.c.l.b16 %v535
    %v544 = vunpack.c.h.b16 %v535
    %v545 = vunpack.c.l.b16 %v536
    %v546 = vunpack.c.h.b16 %v536
    %v547 = vunpack.c.l.b16 %v537
    %v548 = vunpack.c.h.b16 %v537
    %v549 = vunpack.c.l.b16 %v538
    %v550 = vunpack.c.h.b16 %v538
    %v551 = vpack.c.b16 %v545, %v543
    %v552 = vpack.c.b16 %v546, %v544
    %v553 = vpack.c.b16 %v549, %v547
    %v554 = vpack.c.b16 %v550, %v548
    %v558 = vsel %vm267, %v531, 0
    %v561 = vsel %vm267, %v532, 0
    %v564 = vsel %vm267, %v533, 0
    %v567 = vsel %vm277, %v553, 0
    %v570 = vsel %vm277, %v554, 0
    %572 = vmatprep.subr.bf16.mxu0 0
    %573 = vmatpush1.bf16.msra.mxu0 0
    %574 = vmatprep.subr.bf16.mxu0 0
    %575 = vmatpush1.bf16.msra.mxu0 0
    %576 = vmatprep.subr.bf16.mxu0 0
    %577 = vmatpush1.bf16.msra.mxu0 0
    %578 = vmatprep.subr.bf16.mxu0 0
    %579 = vmatpush1.bf16.msra.mxu0 0
    %580 = vmatprep.subr.bf16.mxu0 0
    %581 = vmatpush1.bf16.msra.mxu0 0
    %582 = vmatprep.subr.bf16.mxu0 0
    %583 = vmatpush1.bf16.msra.mxu0 0
    %584 = vmatprep.subr.bf16.mxu0 %v570
    %585 = vmatpush1.bf16.msra.mxu0 %v567
    %586 = vmatprep.subr.bf16.mxu0 %v552
    %587 = vmatpush1.bf16.msra.mxu0 %v551
    %588 = vmatprep.subr.bf16.mxu0 0
    %589 = vmatpush2.bf16.msra.mxu0 0
    %590 = vmatprep.subr.bf16.mxu0 0
    %591 = vmatpush2.bf16.msra.mxu0 0
    %592 = vmatprep.subr.bf16.mxu0 0
    %593 = vmatpush2.bf16.msra.mxu0 0
    %594 = vmatprep.subr.bf16.mxu0 0
    %595 = vmatpush2.bf16.msra.mxu0 0
    %596 = vmatprep.subr.bf16.mxu0 0
    %597 = vmatpush2.bf16.msra.mxu0 0
    %598 = vmatprep.subr.bf16.mxu0 0
    %599 = vmatpush2.bf16.msra.mxu0 0
    %600 = vmatprep.subr.bf16.mxu0 0
    %601 = vmatpush2.bf16.msra.mxu0 0
    %602 = vmatprep.subr.bf16.mxu0 0
    %603 = vmatpush2.bf16.msra.mxu0 0
    %604 = vmatprep.mubr.bf16.mxu0 0
    %605 = vmatmul.mubr.bf16.gmra.mxu0 %v558
    %v606 = vpop.f32.mrf.mxu0
    %v607 = vadd.f32 0.0, %v606
    %v608 = vpop.f32.mrf.mxu0
    %v609 = vadd.f32 0.0, %v608
    %v610 = vpop.f32.mrf.mxu0
    %v611 = vadd.f32 0.0, %v610
    %v612 = vpop.f32.mrf.mxu0
    %v613 = vadd.f32 0.0, %v612
    %614 = vmatprep.mubr.bf16.mxu0 0
    %615 = vmatmul.mubr.bf16.gmra.mxu0 %v561
    %v616 = vpop.f32.mrf.mxu0
    %v617 = vadd.f32 0.0, %v616
    %v618 = vpop.f32.mrf.mxu0
    %v619 = vadd.f32 0.0, %v618
    %v620 = vpop.f32.mrf.mxu0
    %v621 = vadd.f32 0.0, %v620
    %v622 = vpop.f32.mrf.mxu0
    %v623 = vadd.f32 0.0, %v622
    %624 = vmatprep.mubr.bf16.mxu0 0
    %625 = vmatmul.mubr.bf16.gmra.mxu0 %v564
    %v626 = vpop.f32.mrf.mxu0
    %v627 = vadd.f32 0.0, %v626
    %v628 = vpop.f32.mrf.mxu0
    %v629 = vadd.f32 0.0, %v628
    %v630 = vpop.f32.mrf.mxu0
    %v631 = vadd.f32 0.0, %v630
    %v632 = vpop.f32.mrf.mxu0
    %v633 = vadd.f32 0.0, %v632
    %634 = vdwg.mxu0
    %v635 = vadd.f32 %v415, %v607
    %v636 = vadd.f32 %v417, %v609
    %v637 = vadd.f32 %v419, %v611
    %v638 = vadd.f32 %v421, %v613
    %v639 = vadd.f32 %v425, %v617
    %v640 = vadd.f32 %v427, %v619
    %v641 = vadd.f32 %v429, %v621
    %v642 = vadd.f32 %v431, %v623
    %v643 = vadd.f32 %v435, %v627
    %v644 = vadd.f32 %v437, %v629
    %v645 = vadd.f32 %v439, %v631
    %v646 = vadd.f32 %v441, %v633
    %s647 = scalar_lea.vmem %s1, 72
    %v648 = vld [vmem:[%s647] sm:$0xf]
    %v649 = vld [vmem:[%s647 + $0x4] sm:$0xf]
    %v650 = vld [vmem:[%s647 + $0x8] sm:$0xf]
    %v651 = vld [vmem:[%s647 + $0xc] sm:$0xf]
    %v652 = vld [vmem:[%s647 + $0x10] sm:$0xf]
    %v653 = vld [vmem:[%s647 + $0x14] sm:$0xf]
    %v660 = vunpack.c.l.b16 %v648
    %v661 = vunpack.c.l.b16 %v649
    %v662 = vunpack.c.l.b16 %v650
    %v663 = vunpack.c.l.b16 %v651
    %v664 = vunpack.c.l.b16 %v652
    %v665 = vunpack.c.l.b16 %v653
    %v666 = vpack.c.b16 %v661, %v660
    %v667 = vpack.c.b16 %v663, %v662
    %v668 = vpack.c.b16 %v665, %v664
    %v670 = vsel %vm75, %v666, 0
    %v673 = vsel %vm75, %v667, 0
    %v676 = vsel %vm75, %v668, 0
    %678 = vmatprep.subr.bf16.mxu0 0
    %679 = vmatpush1.bf16.msra.mxu0 0
    %680 = vmatprep.subr.bf16.mxu0 0
    %681 = vmatpush1.bf16.msra.mxu0 0
    %682 = vmatprep.subr.bf16.mxu0 0
    %683 = vmatpush1.bf16.msra.mxu0 0
    %684 = vmatprep.subr.bf16.mxu0 0
    %685 = vmatpush1.bf16.msra.mxu0 0
    %686 = vmatprep.subr.bf16.mxu0 0
    %687 = vmatpush1.bf16.msra.mxu0 %v87
    %688 = vmatprep.subr.bf16.mxu0 0
    %689 = vmatpush1.bf16.msra.mxu0 %v52
    %690 = vmatprep.subr.bf16.mxu0 0
    %691 = vmatpush1.bf16.msra.mxu0 %v51
    %692 = vmatprep.subr.bf16.mxu0 0
    %693 = vmatpush1.bf16.msra.mxu0 %v50
    %694 = vmatprep.subr.bf16.mxu0 0
    %695 = vmatpush2.bf16.msra.mxu0 0
    %696 = vmatprep.subr.bf16.mxu0 0
    %697 = vmatpush2.bf16.msra.mxu0 0
    %698 = vmatprep.subr.bf16.mxu0 0
    %699 = vmatpush2.bf16.msra.mxu0 0
    %700 = vmatprep.subr.bf16.mxu0 0
    %701 = vmatpush2.bf16.msra.mxu0 0
    %702 = vmatprep.subr.bf16.mxu0 0
    %703 = vmatpush2.bf16.msra.mxu0 0
    %704 = vmatprep.subr.bf16.mxu0 0
    %705 = vmatpush2.bf16.msra.mxu0 0
    %706 = vmatprep.subr.bf16.mxu0 0
    %707 = vmatpush2.bf16.msra.mxu0 0
    %708 = vmatprep.subr.bf16.mxu0 0
    %709 = vmatpush2.bf16.msra.mxu0 0
    %710 = vmatprep.mubr.bf16.mxu0 0
    %711 = vmatmul.mubr.bf16.gmra.mxu0 %v670
    %v712 = vpop.f32.mrf.mxu0
    %v713 = vadd.f32 0.0, %v712
    %v714 = vpop.f32.mrf.mxu0
    %v715 = vpop.f32.mrf.mxu0
    %v716 = vadd.f32 0.0, %v715
    %v717 = vpop.f32.mrf.mxu0
    %718 = vmatprep.mubr.bf16.mxu0 0
    %719 = vmatmul.mubr.bf16.gmra.mxu0 %v673
    %v720 = vpop.f32.mrf.mxu0
    %v721 = vadd.f32 0.0, %v720
    %v722 = vpop.f32.mrf.mxu0
    %v723 = vpop.f32.mrf.mxu0
    %v724 = vadd.f32 0.0, %v723
    %v725 = vpop.f32.mrf.mxu0
    %726 = vmatprep.mubr.bf16.mxu0 0
    %727 = vmatmul.mubr.bf16.gmra.mxu0 %v676
    %v728 = vpop.f32.mrf.mxu0
    %v729 = vadd.f32 0.0, %v728
    %v730 = vpop.f32.mrf.mxu0
    %v731 = vpop.f32.mrf.mxu0
    %v732 = vadd.f32 0.0, %v731
    %v733 = vpop.f32.mrf.mxu0
    %734 = vdwg.mxu0
    %v735 = vpack.c.bf16 %v716, %v713
    %v736 = vpack.c.bf16 %v724, %v721
    %v737 = vpack.c.bf16 %v732, %v729
    %s738 = scalar_lea.vmem %s2, 96
    %v739 = vld [vmem:[%s738] sm:$0xff]
    %v740 = vld [vmem:[%s738 + $0x8] sm:$0xff]
    %v741 = vld [vmem:[%s738 + $0x10] sm:$0xff]
    %v742 = vld [vmem:[%s738 + $0x18] sm:$0x33]
    %v747 = vunpack.c.l.b16 %v739
    %v748 = vunpack.c.h.b16 %v739
    %v749 = vunpack.c.l.b16 %v740
    %v750 = vunpack.c.h.b16 %v740
    %v751 = vunpack.c.l.b16 %v741
    %v752 = vunpack.c.h.b16 %v741
    %v753 = vunpack.c.l.b16 %v742
    %v754 = vunpack.c.h.b16 %v742
    %v755 = vpack.c.b16 %v749, %v747
    %v756 = vpack.c.b16 %v750, %v748
    %v757 = vpack.c.b16 %v753, %v751
    %v758 = vpack.c.b16 %v754, %v752
    %v762 = vsel %vm267, %v735, 0
    %v765 = vsel %vm267, %v736, 0
    %v768 = vsel %vm267, %v737, 0
    %v771 = vsel %vm277, %v757, 0
    %v774 = vsel %vm277, %v758, 0
    %776 = vmatprep.subr.bf16.mxu0 0
    %777 = vmatpush1.bf16.msra.mxu0 0
    %778 = vmatprep.subr.bf16.mxu0 0
    %779 = vmatpush1.bf16.msra.mxu0 0
    %780 = vmatprep.subr.bf16.mxu0 0
    %781 = vmatpush1.bf16.msra.mxu0 0
    %782 = vmatprep.subr.bf16.mxu0 0
    %783 = vmatpush1.bf16.msra.mxu0 0
    %784 = vmatprep.subr.bf16.mxu0 0
    %785 = vmatpush1.bf16.msra.mxu0 0
    %786 = vmatprep.subr.bf16.mxu0 0
    %787 = vmatpush1.bf16.msra.mxu0 0
    %788 = vmatprep.subr.bf16.mxu0 %v774
    %789 = vmatpush1.bf16.msra.mxu0 %v771
    %790 = vmatprep.subr.bf16.mxu0 %v756
    %791 = vmatpush1.bf16.msra.mxu0 %v755
    %792 = vmatprep.subr.bf16.mxu0 0
    %793 = vmatpush2.bf16.msra.mxu0 0
    %794 = vmatprep.subr.bf16.mxu0 0
    %795 = vmatpush2.bf16.msra.mxu0 0
    %796 = vmatprep.subr.bf16.mxu0 0
    %797 = vmatpush2.bf16.msra.mxu0 0
    %798 = vmatprep.subr.bf16.mxu0 0
    %799 = vmatpush2.bf16.msra.mxu0 0
    %800 = vmatprep.subr.bf16.mxu0 0
    %801 = vmatpush2.bf16.msra.mxu0 0
    %802 = vmatprep.subr.bf16.mxu0 0
    %803 = vmatpush2.bf16.msra.mxu0 0
    %804 = vmatprep.subr.bf16.mxu0 0
    %805 = vmatpush2.bf16.msra.mxu0 0
    %806 = vmatprep.subr.bf16.mxu0 0
    %807 = vmatpush2.bf16.msra.mxu0 0
    %808 = vmatprep.mubr.bf16.mxu0 0
    %809 = vmatmul.mubr.bf16.gmra.mxu0 %v762
    %v810 = vpop.f32.mrf.mxu0
    %v811 = vadd.f32 0.0, %v810
    %v812 = vpop.f32.mrf.mxu0
    %v813 = vadd.f32 0.0, %v812
    %v814 = vpop.f32.mrf.mxu0
    %v815 = vadd.f32 0.0, %v814
    %v816 = vpop.f32.mrf.mxu0
    %v817 = vadd.f32 0.0, %v816
    %818 = vmatprep.mubr.bf16.mxu0 0
    %819 = vmatmul.mubr.bf16.gmra.mxu0 %v765
    %v820 = vpop.f32.mrf.mxu0
    %v821 = vadd.f32 0.0, %v820
    %v822 = vpop.f32.mrf.mxu0
    %v823 = vadd.f32 0.0, %v822
    %v824 = vpop.f32.mrf.mxu0
    %v825 = vadd.f32 0.0, %v824
    %v826 = vpop.f32.mrf.mxu0
    %v827 = vadd.f32 0.0, %v826
    %828 = vmatprep.mubr.bf16.mxu0 0
    %829 = vmatmul.mubr.bf16.gmra.mxu0 %v768
    %v830 = vpop.f32.mrf.mxu0
    %v831 = vadd.f32 0.0, %v830
    %v832 = vpop.f32.mrf.mxu0
    %v833 = vadd.f32 0.0, %v832
    %v834 = vpop.f32.mrf.mxu0
    %v835 = vadd.f32 0.0, %v834
    %v836 = vpop.f32.mrf.mxu0
    %v837 = vadd.f32 0.0, %v836
    %838 = vdwg.mxu0
    %v839 = vadd.f32 %v635, %v811
    %v840 = vadd.f32 %v636, %v813
    %v841 = vadd.f32 %v637, %v815
    %v842 = vadd.f32 %v638, %v817
    %v843 = vadd.f32 %v639, %v821
    %v844 = vadd.f32 %v640, %v823
    %v845 = vadd.f32 %v641, %v825
    %v846 = vadd.f32 %v642, %v827
    %v847 = vadd.f32 %v643, %v831
    %v848 = vadd.f32 %v644, %v833
    %v849 = vadd.f32 %v645, %v835
    %v850 = vadd.f32 %v646, %v837
    %s851 = scalar_lea.vmem %s1, 96
    %v852 = vld [vmem:[%s851] sm:$0xf]
    %v853 = vld [vmem:[%s851 + $0x4] sm:$0xf]
    %v854 = vld [vmem:[%s851 + $0x8] sm:$0xf]
    %v855 = vld [vmem:[%s851 + $0xc] sm:$0xf]
    %v856 = vld [vmem:[%s851 + $0x10] sm:$0xf]
    %v857 = vld [vmem:[%s851 + $0x14] sm:$0xf]
    %v864 = vunpack.c.l.b16 %v852
    %v865 = vunpack.c.l.b16 %v853
    %v866 = vunpack.c.l.b16 %v854
    %v867 = vunpack.c.l.b16 %v855
    %v868 = vunpack.c.l.b16 %v856
    %v869 = vunpack.c.l.b16 %v857
    %v870 = vpack.c.b16 %v865, %v864
    %v871 = vpack.c.b16 %v867, %v866
    %v872 = vpack.c.b16 %v869, %v868
    %v874 = vsel %vm75, %v870, 0
    %v877 = vsel %vm75, %v871, 0
    %v880 = vsel %vm75, %v872, 0
    %882 = vmatprep.subr.bf16.mxu0 0
    %883 = vmatpush1.bf16.msra.mxu0 0
    %884 = vmatprep.subr.bf16.mxu0 0
    %885 = vmatpush1.bf16.msra.mxu0 0
    %886 = vmatprep.subr.bf16.mxu0 0
    %887 = vmatpush1.bf16.msra.mxu0 0
    %888 = vmatprep.subr.bf16.mxu0 0
    %889 = vmatpush1.bf16.msra.mxu0 0
    %890 = vmatprep.subr.bf16.mxu0 0
    %891 = vmatpush1.bf16.msra.mxu0 %v87
    %892 = vmatprep.subr.bf16.mxu0 0
    %893 = vmatpush1.bf16.msra.mxu0 %v52
    %894 = vmatprep.subr.bf16.mxu0 0
    %895 = vmatpush1.bf16.msra.mxu0 %v51
    %896 = vmatprep.subr.bf16.mxu0 0
    %897 = vmatpush1.bf16.msra.mxu0 %v50
    %898 = vmatprep.subr.bf16.mxu0 0
    %899 = vmatpush2.bf16.msra.mxu0 0
    %900 = vmatprep.subr.bf16.mxu0 0
    %901 = vmatpush2.bf16.msra.mxu0 0
    %902 = vmatprep.subr.bf16.mxu0 0
    %903 = vmatpush2.bf16.msra.mxu0 0
    %904 = vmatprep.subr.bf16.mxu0 0
    %905 = vmatpush2.bf16.msra.mxu0 0
    %906 = vmatprep.subr.bf16.mxu0 0
    %907 = vmatpush2.bf16.msra.mxu0 0
    %908 = vmatprep.subr.bf16.mxu0 0
    %909 = vmatpush2.bf16.msra.mxu0 0
    %910 = vmatprep.subr.bf16.mxu0 0
    %911 = vmatpush2.bf16.msra.mxu0 0
    %912 = vmatprep.subr.bf16.mxu0 0
    %913 = vmatpush2.bf16.msra.mxu0 0
    %914 = vmatprep.mubr.bf16.mxu0 0
    %915 = vmatmul.mubr.bf16.gmra.mxu0 %v874
    %v916 = vpop.f32.mrf.mxu0
    %v917 = vadd.f32 0.0, %v916
    %v918 = vpop.f32.mrf.mxu0
    %v919 = vpop.f32.mrf.mxu0
    %v920 = vadd.f32 0.0, %v919
    %v921 = vpop.f32.mrf.mxu0
    %922 = vmatprep.mubr.bf16.mxu0 0
    %923 = vmatmul.mubr.bf16.gmra.mxu0 %v877
    %v924 = vpop.f32.mrf.mxu0
    %v925 = vadd.f32 0.0, %v924
    %v926 = vpop.f32.mrf.mxu0
    %v927 = vpop.f32.mrf.mxu0
    %v928 = vadd.f32 0.0, %v927
    %v929 = vpop.f32.mrf.mxu0
    %930 = vmatprep.mubr.bf16.mxu0 0
    %931 = vmatmul.mubr.bf16.gmra.mxu0 %v880
    %v932 = vpop.f32.mrf.mxu0
    %v933 = vadd.f32 0.0, %v932
    %v934 = vpop.f32.mrf.mxu0
    %v935 = vpop.f32.mrf.mxu0
    %v936 = vadd.f32 0.0, %v935
    %v937 = vpop.f32.mrf.mxu0
    %938 = vdwg.mxu0
    %v939 = vpack.c.bf16 %v920, %v917
    %v940 = vpack.c.bf16 %v928, %v925
    %v941 = vpack.c.bf16 %v936, %v933
    %s942 = scalar_lea.vmem %s2, 128
    %v943 = vld [vmem:[%s942] sm:$0xff]
    %v944 = vld [vmem:[%s942 + $0x8] sm:$0xff]
    %v945 = vld [vmem:[%s942 + $0x10] sm:$0xff]
    %v946 = vld [vmem:[%s942 + $0x18] sm:$0x33]
    %v951 = vunpack.c.l.b16 %v943
    %v952 = vunpack.c.h.b16 %v943
    %v953 = vunpack.c.l.b16 %v944
    %v954 = vunpack.c.h.b16 %v944
    %v955 = vunpack.c.l.b16 %v945
    %v956 = vunpack.c.h.b16 %v945
    %v957 = vunpack.c.l.b16 %v946
    %v958 = vunpack.c.h.b16 %v946
    %v959 = vpack.c.b16 %v953, %v951
    %v960 = vpack.c.b16 %v954, %v952
    %v961 = vpack.c.b16 %v957, %v955
    %v962 = vpack.c.b16 %v958, %v956
    %v966 = vsel %vm267, %v939, 0
    %v969 = vsel %vm267, %v940, 0
    %v972 = vsel %vm267, %v941, 0
    %v975 = vsel %vm277, %v961, 0
    %v978 = vsel %vm277, %v962, 0
    %980 = vmatprep.subr.bf16.mxu0 0
    %981 = vmatpush1.bf16.msra.mxu0 0
    %982 = vmatprep.subr.bf16.mxu0 0
    %983 = vmatpush1.bf16.msra.mxu0 0
    %984 = vmatprep.subr.bf16.mxu0 0
    %985 = vmatpush1.bf16.msra.mxu0 0
    %986 = vmatprep.subr.bf16.mxu0 0
    %987 = vmatpush1.bf16.msra.mxu0 0
    %988 = vmatprep.subr.bf16.mxu0 0
    %989 = vmatpush1.bf16.msra.mxu0 0
    %990 = vmatprep.subr.bf16.mxu0 0
    %991 = vmatpush1.bf16.msra.mxu0 0
    %992 = vmatprep.subr.bf16.mxu0 %v978
    %993 = vmatpush1.bf16.msra.mxu0 %v975
    %994 = vmatprep.subr.bf16.mxu0 %v960
    %995 = vmatpush1.bf16.msra.mxu0 %v959
    %996 = vmatprep.subr.bf16.mxu0 0
    %997 = vmatpush2.bf16.msra.mxu0 0
    %998 = vmatprep.subr.bf16.mxu0 0
    %999 = vmatpush2.bf16.msra.mxu0 0
    %1000 = vmatprep.subr.bf16.mxu0 0
    %1001 = vmatpush2.bf16.msra.mxu0 0
    %1002 = vmatprep.subr.bf16.mxu0 0
    %1003 = vmatpush2.bf16.msra.mxu0 0
    %1004 = vmatprep.subr.bf16.mxu0 0
    %1005 = vmatpush2.bf16.msra.mxu0 0
    %1006 = vmatprep.subr.bf16.mxu0 0
    %1007 = vmatpush2.bf16.msra.mxu0 0
    %1008 = vmatprep.subr.bf16.mxu0 0
    %1009 = vmatpush2.bf16.msra.mxu0 0
    %1010 = vmatprep.subr.bf16.mxu0 0
    %1011 = vmatpush2.bf16.msra.mxu0 0
    %1012 = vmatprep.mubr.bf16.mxu0 0
    %1013 = vmatmul.mubr.bf16.gmra.mxu0 %v966
    %v1014 = vpop.f32.mrf.mxu0
    %v1015 = vadd.f32 0.0, %v1014
    %v1016 = vpop.f32.mrf.mxu0
    %v1017 = vadd.f32 0.0, %v1016
    %v1018 = vpop.f32.mrf.mxu0
    %v1019 = vadd.f32 0.0, %v1018
    %v1020 = vpop.f32.mrf.mxu0
    %v1021 = vadd.f32 0.0, %v1020
    %1022 = vmatprep.mubr.bf16.mxu0 0
    %1023 = vmatmul.mubr.bf16.gmra.mxu0 %v969
    %v1024 = vpop.f32.mrf.mxu0
    %v1025 = vadd.f32 0.0, %v1024
    %v1026 = vpop.f32.mrf.mxu0
    %v1027 = vadd.f32 0.0, %v1026
    %v1028 = vpop.f32.mrf.mxu0
    %v1029 = vadd.f32 0.0, %v1028
    %v1030 = vpop.f32.mrf.mxu0
    %v1031 = vadd.f32 0.0, %v1030
    %1032 = vmatprep.mubr.bf16.mxu0 0
    %1033 = vmatmul.mubr.bf16.gmra.mxu0 %v972
    %v1034 = vpop.f32.mrf.mxu0
    %v1035 = vadd.f32 0.0, %v1034
    %v1036 = vpop.f32.mrf.mxu0
    %v1037 = vadd.f32 0.0, %v1036
    %v1038 = vpop.f32.mrf.mxu0
    %v1039 = vadd.f32 0.0, %v1038
    %v1040 = vpop.f32.mrf.mxu0
    %v1041 = vadd.f32 0.0, %v1040
    %1042 = vdwg.mxu0
    %v1043 = vadd.f32 %v839, %v1015
    %v1044 = vadd.f32 %v840, %v1017
    %v1045 = vadd.f32 %v841, %v1019
    %v1046 = vadd.f32 %v842, %v1021
    %v1047 = vadd.f32 %v843, %v1025
    %v1048 = vadd.f32 %v844, %v1027
    %v1049 = vadd.f32 %v845, %v1029
    %v1050 = vadd.f32 %v846, %v1031
    %v1051 = vadd.f32 %v847, %v1035
    %v1052 = vadd.f32 %v848, %v1037
    %v1053 = vadd.f32 %v849, %v1039
    %v1054 = vadd.f32 %v850, %v1041
    %v1055 = vld [vmem:[%s3] sm:$0x3]
    %v1057 = vlaneseq
    %v1058 = vshrl.u32 %v1057, 7
    %v1059 = vsub.s32 0, %v1058
    %v1060 = vrot.slane %v1055, %v1059
    %v1061 = vlaneseq
    %v1062 = vshrl.u32 %v1061, 7
    %v1063 = vsub.s32 1, %v1062
    %v1064 = vrot.slane %v1055, %v1063
    %v1067 = vadd.f32 %v1043, %v1060
    %v1068 = vadd.f32 %v1044, %v1064
    %v1069 = vadd.f32 %v1045, %v1060
    %v1070 = vadd.f32 %v1046, %v1064
    %v1071 = vadd.f32 %v1047, %v1060
    %v1072 = vadd.f32 %v1048, %v1064
    %v1073 = vadd.f32 %v1049, %v1060
    %v1074 = vadd.f32 %v1050, %v1064
    %v1075 = vadd.f32 %v1051, %v1060
    %v1076 = vadd.f32 %v1052, %v1064
    %v1077 = vadd.f32 %v1053, %v1060
    %v1078 = vadd.f32 %v1054, %v1064
    %v1079 = vmax.f32 %v1067, 0.0
    %v1080 = vmax.f32 %v1068, 0.0
    %v1081 = vmax.f32 %v1069, 0.0
    %v1082 = vmax.f32 %v1070, 0.0
    %v1083 = vmax.f32 %v1071, 0.0
    %v1084 = vmax.f32 %v1072, 0.0
    %v1085 = vmax.f32 %v1073, 0.0
    %v1086 = vmax.f32 %v1074, 0.0
    %v1087 = vmax.f32 %v1075, 0.0
    %v1088 = vmax.f32 %v1076, 0.0
    %v1089 = vmax.f32 %v1077, 0.0
    %v1090 = vmax.f32 %v1078, 0.0
    %1103 = vrot.lane.b32.xlu0 %v1079, 127
    %v1104 = vpop.permute.xlu0 %1103
    %1105 = vrot.lane.b32.xlu0 %v1080, 127
    %v1106 = vpop.permute.xlu0 %1105
    %1107 = vrot.lane.b32.xlu0 %v1081, 127
    %v1108 = vpop.permute.xlu0 %1107
    %1109 = vrot.lane.b32.xlu0 %v1082, 127
    %v1110 = vpop.permute.xlu0 %1109
    %1111 = vrot.lane.b32.xlu0 %v1083, 127
    %v1112 = vpop.permute.xlu0 %1111
    %1113 = vrot.lane.b32.xlu0 %v1084, 127
    %v1114 = vpop.permute.xlu0 %1113
    %1115 = vrot.lane.b32.xlu0 %v1085, 127
    %v1116 = vpop.permute.xlu0 %1115
    %1117 = vrot.lane.b32.xlu0 %v1086, 127
    %v1118 = vpop.permute.xlu0 %1117
    %1119 = vrot.lane.b32.xlu0 %v1087, 127
    %v1120 = vpop.permute.xlu0 %1119
    %1121 = vrot.lane.b32.xlu0 %v1088, 127
    %v1122 = vpop.permute.xlu0 %1121
    %1123 = vrot.lane.b32.xlu0 %v1089, 127
    %v1124 = vpop.permute.xlu0 %1123
    %1125 = vrot.lane.b32.xlu0 %v1090, 127
    %v1126 = vpop.permute.xlu0 %1125
    %vm1127 = vcmask 1039360
    %v1128 = vsel %vm1127, %v1104, %v1106
    %v1129 = vsel %vm1127, %v1108, %v1110
    %v1130 = vsel %vm1127, %v1112, %v1114
    %v1131 = vsel %vm1127, %v1116, %v1118
    %v1132 = vsel %vm1127, %v1120, %v1122
    %v1133 = vsel %vm1127, %v1124, %v1126
    %v1146 = vmax.f32 %v1079, %v1128
    %v1147 = vmax.f32 %v1080, %v1106
    %v1148 = vmax.f32 %v1081, %v1129
    %v1149 = vmax.f32 %v1082, %v1110
    %v1150 = vmax.f32 %v1083, %v1130
    %v1151 = vmax.f32 %v1084, %v1114
    %v1152 = vmax.f32 %v1085, %v1131
    %v1153 = vmax.f32 %v1086, %v1118
    %v1154 = vmax.f32 %v1087, %v1132
    %v1155 = vmax.f32 %v1088, %v1122
    %v1156 = vmax.f32 %v1089, %v1133
    %v1157 = vmax.f32 %v1090, %v1126
    %v1158 = vpack.c.bf16 %v1148, %v1146
    %v1159 = vpack.c.bf16 %v1149, %v1147
    %v1160 = vpack.c.bf16 %v1152, %v1150
    %v1161 = vpack.c.bf16 %v1153, %v1151
    %v1162 = vpack.c.bf16 %v1156, %v1154
    %v1163 = vpack.c.bf16 %v1157, %v1155
    %v1164 = vld [vmem:[%s4] sm:$0xf]
    %v1165 = vld [vmem:[%s4 + $0x4] sm:$0xf]
    %v1166 = vld [vmem:[%s4 + $0x8] sm:$0xf]
    %v1167 = vld [vmem:[%s4 + $0xc] sm:$0xf]
    %v1168 = vld [vmem:[%s4 + $0x10] sm:$0xf]
    %v1169 = vld [vmem:[%s4 + $0x14] sm:$0xf]
    %v1170 = vld [vmem:[%s4 + $0x18] sm:$0xf]
    %v1171 = vld [vmem:[%s4 + $0x1c] sm:$0xf]
    %v1172 = vld [vmem:[%s4 + $0x20] sm:$0xf]
    %v1173 = vld [vmem:[%s4 + $0x24] sm:$0xf]
    %v1174 = vld [vmem:[%s4 + $0x28] sm:$0xf]
    %v1175 = vld [vmem:[%s4 + $0x2c] sm:$0xf]
    %v1176 = vld [vmem:[%s4 + $0x30] sm:$0xf]
    %v1177 = vld [vmem:[%s4 + $0x34] sm:$0xf]
    %v1178 = vld [vmem:[%s4 + $0x38] sm:$0xf]
    %v1179 = vld [vmem:[%s4 + $0x3c] sm:$0xf]
    %v1180 = vld [vmem:[%s4 + $0x40] sm:$0xf]
    %v1181 = vld [vmem:[%s4 + $0x44] sm:$0xf]
    %v1182 = vld [vmem:[%s4 + $0x48] sm:$0xf]
    %v1183 = vld [vmem:[%s4 + $0x4c] sm:$0xf]
    %v1184 = vld [vmem:[%s4 + $0x50] sm:$0xf]
    %v1185 = vld [vmem:[%s4 + $0x54] sm:$0xf]
    %v1186 = vld [vmem:[%s4 + $0x58] sm:$0xf]
    %v1187 = vld [vmem:[%s4 + $0x5c] sm:$0xf]
    %v1188 = vld [vmem:[%s4 + $0x60] sm:$0xf]
    %v1189 = vld [vmem:[%s4 + $0x64] sm:$0xf]
    %v1190 = vld [vmem:[%s4 + $0x68] sm:$0xf]
    %v1191 = vld [vmem:[%s4 + $0x6c] sm:$0xf]
    %v1192 = vld [vmem:[%s4 + $0x70] sm:$0xf]
    %v1193 = vld [vmem:[%s4 + $0x74] sm:$0xf]
    %v1224 = vunpack.c.l.b16 %v1164
    %v1225 = vunpack.c.l.b16 %v1165
    %v1226 = vunpack.c.l.b16 %v1166
    %v1227 = vunpack.c.l.b16 %v1167
    %v1228 = vunpack.c.l.b16 %v1168
    %v1229 = vunpack.c.l.b16 %v1169
    %v1230 = vunpack.c.l.b16 %v1170
    %v1231 = vunpack.c.l.b16 %v1171
    %v1232 = vunpack.c.l.b16 %v1172
    %v1233 = vunpack.c.l.b16 %v1173
    %v1234 = vunpack.c.l.b16 %v1174
    %v1235 = vunpack.c.l.b16 %v1175
    %v1236 = vunpack.c.l.b16 %v1176
    %v1237 = vunpack.c.l.b16 %v1177
    %v1238 = vunpack.c.l.b16 %v1178
    %v1239 = vunpack.c.l.b16 %v1179
    %v1240 = vunpack.c.l.b16 %v1180
    %v1241 = vunpack.c.l.b16 %v1181
    %v1242 = vunpack.c.l.b16 %v1182
    %v1243 = vunpack.c.l.b16 %v1183
    %v1244 = vunpack.c.l.b16 %v1184
    %v1245 = vunpack.c.l.b16 %v1185
    %v1246 = vunpack.c.l.b16 %v1186
    %v1247 = vunpack.c.l.b16 %v1187
    %v1248 = vunpack.c.l.b16 %v1188
    %v1249 = vunpack.c.l.b16 %v1189
    %v1250 = vunpack.c.l.b16 %v1190
    %v1251 = vunpack.c.l.b16 %v1191
    %v1252 = vunpack.c.l.b16 %v1192
    %v1253 = vunpack.c.l.b16 %v1193
    %v1254 = vpack.c.b16 %v1225, %v1224
    %v1255 = vpack.c.b16 %v1227, %v1226
    %v1256 = vpack.c.b16 %v1229, %v1228
    %v1257 = vpack.c.b16 %v1231, %v1230
    %v1258 = vpack.c.b16 %v1233, %v1232
    %v1259 = vpack.c.b16 %v1235, %v1234
    %v1260 = vpack.c.b16 %v1237, %v1236
    %v1261 = vpack.c.b16 %v1239, %v1238
    %v1262 = vpack.c.b16 %v1241, %v1240
    %v1263 = vpack.c.b16 %v1243, %v1242
    %v1264 = vpack.c.b16 %v1245, %v1244
    %v1265 = vpack.c.b16 %v1247, %v1246
    %v1266 = vpack.c.b16 %v1249, %v1248
    %v1267 = vpack.c.b16 %v1251, %v1250
    %v1268 = vpack.c.b16 %v1253, %v1252
    %vm1283 = vcmask 908288
    %v1285 = vsel %vm1283, %v1159, 0
    %v1288 = vsel %vm1283, %v1161, 0
    %v1291 = vsel %vm1283, %v1163, 0
    %vm1293 = vcmask 1046528
    %vm1294 = vcmask 1047552
    %v1295 = vsel %vm1293, 4294967295, 65535
    %v1296 = vsel %vm1294, %v1295, 0
    %v1298 = vand.u32 %v1268, %v1296
    %1300 = vmatprep.subr.bf16.mxu0 0
    %1301 = vmatpush1.bf16.msra.mxu0 %v1261
    %1302 = vmatprep.subr.bf16.mxu0 0
    %1303 = vmatpush1.bf16.msra.mxu0 %v1260
    %1304 = vmatprep.subr.bf16.mxu0 0
    %1305 = vmatpush1.bf16.msra.mxu0 %v1259
    %1306 = vmatprep.subr.bf16.mxu0 0
    %1307 = vmatpush1.bf16.msra.mxu0 %v1258
    %1308 = vmatprep.subr.bf16.mxu0 0
    %1309 = vmatpush1.bf16.msra.mxu0 %v1257
    %1310 = vmatprep.subr.bf16.mxu0 0
    %1311 = vmatpush1.bf16.msra.mxu0 %v1256
    %1312 = vmatprep.subr.bf16.mxu0 0
    %1313 = vmatpush1.bf16.msra.mxu0 %v1255
    %1314 = vmatprep.subr.bf16.mxu0 0
    %1315 = vmatpush1.bf16.msra.mxu0 %v1254
    %1316 = vmatprep.subr.bf16.mxu0 0
    %1317 = vmatpush2.bf16.msra.mxu0 0
    %1318 = vmatprep.subr.bf16.mxu0 0
    %1319 = vmatpush2.bf16.msra.mxu0 %v1298
    %1320 = vmatprep.subr.bf16.mxu0 0
    %1321 = vmatpush2.bf16.msra.mxu0 %v1267
    %1322 = vmatprep.subr.bf16.mxu0 0
    %1323 = vmatpush2.bf16.msra.mxu0 %v1266
    %1324 = vmatprep.subr.bf16.mxu0 0
    %1325 = vmatpush2.bf16.msra.mxu0 %v1265
    %1326 = vmatprep.subr.bf16.mxu0 0
    %1327 = vmatpush2.bf16.msra.mxu0 %v1264
    %1328 = vmatprep.subr.bf16.mxu0 0
    %1329 = vmatpush2.bf16.msra.mxu0 %v1263
    %1330 = vmatprep.subr.bf16.mxu0 0
    %1331 = vmatpush2.bf16.msra.mxu0 %v1262
    %1332 = vmatprep.mubr.bf16.mxu0 %v1285
    %1333 = vmatmul.mubr.bf16.gmra.mxu0 %v1158
    %v1334 = vpop.f32.mrf.mxu0
    %v1335 = vadd.f32 0.0, %v1334
    %v1336 = vpop.f32.mrf.mxu0
    %v1337 = vpop.f32.mrf.mxu0
    %v1338 = vadd.f32 0.0, %v1337
    %v1339 = vpop.f32.mrf.mxu0
    %1340 = vmatprep.mubr.bf16.mxu0 %v1288
    %1341 = vmatmul.mubr.bf16.gmra.mxu0 %v1160
    %v1342 = vpop.f32.mrf.mxu0
    %v1343 = vadd.f32 0.0, %v1342
    %v1344 = vpop.f32.mrf.mxu0
    %v1345 = vpop.f32.mrf.mxu0
    %v1346 = vadd.f32 0.0, %v1345
    %v1347 = vpop.f32.mrf.mxu0
    %1348 = vmatprep.mubr.bf16.mxu0 %v1291
    %1349 = vmatmul.mubr.bf16.gmra.mxu0 %v1162
    %v1350 = vpop.f32.mrf.mxu0
    %v1351 = vadd.f32 0.0, %v1350
    %v1352 = vpop.f32.mrf.mxu0
    %v1353 = vpop.f32.mrf.mxu0
    %v1354 = vadd.f32 0.0, %v1353
    %v1355 = vpop.f32.mrf.mxu0
    %1356 = vdwg.mxu0
    %v1363 = vrot.slane %v1335, 1
    %v1364 = vrot.slane %v1338, 1
    %v1365 = vsel %vm1293, %v1363, %v1364
    %v1366 = vrot.slane %v1343, 1
    %v1367 = vsel %vm1293, %v1364, %v1366
    %v1368 = vrot.slane %v1346, 1
    %v1369 = vsel %vm1293, %v1366, %v1368
    %v1370 = vrot.slane %v1351, 1
    %v1371 = vsel %vm1293, %v1368, %v1370
    %v1372 = vrot.slane %v1354, 1
    %v1373 = vsel %vm1293, %v1370, %v1372
    %v1380 = vmax.f32 %v1335, %v1365
    %v1381 = vmax.f32 %v1338, %v1367
    %v1382 = vmax.f32 %v1343, %v1369
    %v1383 = vmax.f32 %v1346, %v1371
    %v1384 = vmax.f32 %v1351, %v1373
    %v1385 = vmax.f32 %v1354, %v1372
    %v1386 = vld [vmem:[%s5] sm:$0xf]
    %v1387 = vld [vmem:[%s5 + $0x4] sm:$0xf]
    %v1388 = vld [vmem:[%s5 + $0x8] sm:$0xf]
    %v1389 = vpack.c.bf16 %v1381, %v1380
    %v1390 = vpack.c.bf16 %v1383, %v1382
    %v1391 = vpack.c.bf16 %v1385, %v1384
    %v1395 = vunpack.c.l.b16 %v1386
    %v1396 = vunpack.c.l.b16 %v1387
    %v1397 = vunpack.c.l.b16 %v1388
    %v1398 = vpack.c.b16 %v1396, %v1395
    %v1399 = vpack.c.b16 %v1397, %v1397
    %vm1400 = vcmask 384000
    %v1402 = vsel %vm1400, %v1398, 0
    %v1405 = vsel %vm1400, %v1399, 0
    %v1408 = vand.u32 %v1391, %v1296
    %1410 = vmatprep.subr.bf16.mxu0 0
    %1411 = vmatpush1.bf16.msra.mxu0 0
    %1412 = vmatprep.subr.bf16.mxu0 0
    %1413 = vmatpush1.bf16.msra.mxu0 0
    %1414 = vmatprep.subr.bf16.mxu0 0
    %1415 = vmatpush1.bf16.msra.mxu0 0
    %1416 = vmatprep.subr.bf16.mxu0 0
    %1417 = vmatpush1.bf16.msra.mxu0 0
    %1418 = vmatprep.subr.bf16.mxu0 0
    %1419 = vmatpush1.bf16.msra.mxu0 0
    %1420 = vmatprep.subr.bf16.mxu0 0
    %1421 = vmatpush1.bf16.msra.mxu0 %v1408
    %1422 = vmatprep.subr.bf16.mxu0 0
    %1423 = vmatpush1.bf16.msra.mxu0 %v1390
    %1424 = vmatprep.subr.bf16.mxu0 0
    %1425 = vmatpush1.bf16.msra.mxu0 %v1389
    %1426 = vmatprep.subr.bf16.mxu0 0
    %1427 = vmatpush2.bf16.msra.mxu0 0
    %1428 = vmatprep.subr.bf16.mxu0 0
    %1429 = vmatpush2.bf16.msra.mxu0 0
    %1430 = vmatprep.subr.bf16.mxu0 0
    %1431 = vmatpush2.bf16.msra.mxu0 0
    %1432 = vmatprep.subr.bf16.mxu0 0
    %1433 = vmatpush2.bf16.msra.mxu0 0
    %1434 = vmatprep.subr.bf16.mxu0 0
    %1435 = vmatpush2.bf16.msra.mxu0 0
    %1436 = vmatprep.subr.bf16.mxu0 0
    %1437 = vmatpush2.bf16.msra.mxu0 0
    %1438 = vmatprep.subr.bf16.mxu0 0
    %1439 = vmatpush2.bf16.msra.mxu0 0
    %1440 = vmatprep.subr.bf16.mxu0 0
    %1441 = vmatpush2.bf16.msra.mxu0 0
    %1442 = vmatprep.mubr.bf16.mxu0 0
    %1443 = vmatmul.mubr.bf16.gmra.mxu0 %v1402
    %v1444 = vpop.f32.mrf.mxu0
    %v1445 = vadd.f32 0.0, %v1444
    %v1446 = vpop.f32.mrf.mxu0
    %v1447 = vpop.f32.mrf.mxu0
    %v1448 = vadd.f32 0.0, %v1447
    %v1449 = vpop.f32.mrf.mxu0
    %1450 = vmatprep.mubr.bf16.mxu0 0
    %1451 = vmatmul.mubr.bf16.gmra.mxu0 %v1405
    %v1452 = vpop.f32.mrf.mxu0
    %v1453 = vadd.f32 0.0, %v1452
    %v1454 = vpop.f32.mrf.mxu0
    %v1455 = vpop.f32.mrf.mxu0
    %v1456 = vpop.f32.mrf.mxu0
    %1457 = vdwg.mxu0
    %v1458 = vpack.c.bf16 %v1448, %v1445
    %v1459 = vpack.c.bf16 %v1453, %v1453
    %v1460 = vld [vmem:[%s6] sm:$0xf]
    %v1461 = vld [vmem:[%s6 + $0x4] sm:$0xf]
    %v1464 = vunpack.c.l.b16 %v1460
    %v1465 = vunpack.c.l.b16 %v1461
    %v1466 = vpack.c.b16 %v1465, %v1464
    %vm1467 = vcmask 195584
    %v1469 = vsel %vm1467, %v1466, 0
    %v1472 = vsel %vm85, %v1459, 0
    %1474 = vmatprep.subr.bf16.mxu0 0
    %1475 = vmatpush1.bf16.msra.mxu0 0
    %1476 = vmatprep.subr.bf16.mxu0 0
    %1477 = vmatpush1.bf16.msra.mxu0 0
    %1478 = vmatprep.subr.bf16.mxu0 0
    %1479 = vmatpush1.bf16.msra.mxu0 0
    %1480 = vmatprep.subr.bf16.mxu0 0
    %1481 = vmatpush1.bf16.msra.mxu0 0
    %1482 = vmatprep.subr.bf16.mxu0 0
    %1483 = vmatpush1.bf16.msra.mxu0 0
    %1484 = vmatprep.subr.bf16.mxu0 0
    %1485 = vmatpush1.bf16.msra.mxu0 0
    %1486 = vmatprep.subr.bf16.mxu0 0
    %1487 = vmatpush1.bf16.msra.mxu0 %v1472
    %1488 = vmatprep.subr.bf16.mxu0 0
    %1489 = vmatpush1.bf16.msra.mxu0 %v1458
    %1490 = vmatprep.subr.bf16.mxu0 0
    %1491 = vmatpush2.bf16.msra.mxu0 0
    %1492 = vmatprep.subr.bf16.mxu0 0
    %1493 = vmatpush2.bf16.msra.mxu0 0
    %1494 = vmatprep.subr.bf16.mxu0 0
    %1495 = vmatpush2.bf16.msra.mxu0 0
    %1496 = vmatprep.subr.bf16.mxu0 0
    %1497 = vmatpush2.bf16.msra.mxu0 0
    %1498 = vmatprep.subr.bf16.mxu0 0
    %1499 = vmatpush2.bf16.msra.mxu0 0
    %1500 = vmatprep.subr.bf16.mxu0 0
    %1501 = vmatpush2.bf16.msra.mxu0 0
    %1502 = vmatprep.subr.bf16.mxu0 0
    %1503 = vmatpush2.bf16.msra.mxu0 0
    %1504 = vmatprep.subr.bf16.mxu0 0
    %1505 = vmatpush2.bf16.msra.mxu0 0
    %1506 = vmatprep.mubr.bf16.mxu0 0
    %1507 = vmatmul.mubr.bf16.gmra.mxu0 %v1469
    %v1508 = vpop.f32.mrf.mxu0
    %v1509 = vadd.f32 0.0, %v1508
    %v1510 = vpop.f32.mrf.mxu0
    %v1511 = vpop.f32.mrf.mxu0
    %v1512 = vadd.f32 0.0, %v1511
    %v1513 = vpop.f32.mrf.mxu0
    %1514 = vdwg.mxu0
    %v1515 = vpack.c.bf16 %v1512, %v1509
    %v1516 = vld [vmem:[%s7] sm:$0xff]
    %v1517 = vld [vmem:[%s7 + $0x8] sm:$0xff]
    %v1518 = vld [vmem:[%s7 + $0x10] sm:$0xff]
    %v1519 = vld [vmem:[%s7 + $0x18] sm:$0xff]
    %v1520 = vld [vmem:[%s7 + $0x20] sm:$0xff]
    %v1521 = vld [vmem:[%s7 + $0x28] sm:$0xff]
    %v1522 = vld [vmem:[%s7 + $0x30] sm:$0xff]
    %v1523 = vld [vmem:[%s7 + $0x38] sm:$0xff]
    %v1524 = vld [vmem:[%s7 + $0x40] sm:$0xff]
    %v1525 = vld [vmem:[%s7 + $0x48] sm:$0xff]
    %v1526 = vld [vmem:[%s7 + $0x50] sm:$0xff]
    %v1527 = vld [vmem:[%s7 + $0x58] sm:$0xff]
    %v1528 = vld [vmem:[%s7 + $0x60] sm:$0xff]
    %v1529 = vld [vmem:[%s7 + $0x68] sm:$0xff]
    %v1530 = vld [vmem:[%s7 + $0x70] sm:$0xff]
    %s1531 = scalar_lea.vmem %s6, 8
    %v1532 = vld [vmem:[%s1531] sm:$0xf]
    %v1533 = vld [vmem:[%s1531 + $0x4] sm:$0xf]
    %v1536 = vunpack.c.l.b16 %v1532
    %v1537 = vunpack.c.l.b16 %v1533
    %v1538 = vpack.c.b16 %v1537, %v1536
    %v1540 = vsel %vm1467, %v1538, 0
    %1542 = vmatprep.subr.bf16.mxu0 0
    %1543 = vmatpush1.bf16.msra.mxu0 0
    %1544 = vmatprep.subr.bf16.mxu0 0
    %1545 = vmatpush1.bf16.msra.mxu0 0
    %1546 = vmatprep.subr.bf16.mxu0 0
    %1547 = vmatpush1.bf16.msra.mxu0 0
    %1548 = vmatprep.subr.bf16.mxu0 0
    %1549 = vmatpush1.bf16.msra.mxu0 0
    %1550 = vmatprep.subr.bf16.mxu0 0
    %1551 = vmatpush1.bf16.msra.mxu0 0
    %1552 = vmatprep.subr.bf16.mxu0 0
    %1553 = vmatpush1.bf16.msra.mxu0 0
    %1554 = vmatprep.subr.bf16.mxu0 0
    %1555 = vmatpush1.bf16.msra.mxu0 %v1472
    %1556 = vmatprep.subr.bf16.mxu0 0
    %1557 = vmatpush1.bf16.msra.mxu0 %v1458
    %1558 = vmatprep.subr.bf16.mxu0 0
    %1559 = vmatpush2.bf16.msra.mxu0 0
    %1560 = vmatprep.subr.bf16.mxu0 0
    %1561 = vmatpush2.bf16.msra.mxu0 0
    %1562 = vmatprep.subr.bf16.mxu0 0
    %1563 = vmatpush2.bf16.msra.mxu0 0
    %1564 = vmatprep.subr.bf16.mxu0 0
    %1565 = vmatpush2.bf16.msra.mxu0 0
    %1566 = vmatprep.subr.bf16.mxu0 0
    %1567 = vmatpush2.bf16.msra.mxu0 0
    %1568 = vmatprep.subr.bf16.mxu0 0
    %1569 = vmatpush2.bf16.msra.mxu0 0
    %1570 = vmatprep.subr.bf16.mxu0 0
    %1571 = vmatpush2.bf16.msra.mxu0 0
    %1572 = vmatprep.subr.bf16.mxu0 0
    %1573 = vmatpush2.bf16.msra.mxu0 0
    %1574 = vmatprep.mubr.bf16.mxu0 0
    %1575 = vmatmul.mubr.bf16.gmra.mxu0 %v1540
    %v1576 = vpop.f32.mrf.mxu0
    %v1577 = vadd.f32 0.0, %v1576
    %v1578 = vpop.f32.mrf.mxu0
    %v1579 = vpop.f32.mrf.mxu0
    %v1580 = vadd.f32 0.0, %v1579
    %v1581 = vpop.f32.mrf.mxu0
    %1582 = vdwg.mxu0
    %v1583 = vpack.c.bf16 %v1580, %v1577
    %s1584 = scalar_lea.vmem %s7, 120
    %v1585 = vld [vmem:[%s1584] sm:$0xff]
    %v1586 = vld [vmem:[%s1584 + $0x8] sm:$0xff]
    %v1587 = vld [vmem:[%s1584 + $0x10] sm:$0xff]
    %v1588 = vld [vmem:[%s1584 + $0x18] sm:$0xff]
    %v1589 = vld [vmem:[%s1584 + $0x20] sm:$0xff]
    %v1590 = vld [vmem:[%s1584 + $0x28] sm:$0xff]
    %v1591 = vld [vmem:[%s1584 + $0x30] sm:$0xff]
    %v1592 = vld [vmem:[%s1584 + $0x38] sm:$0xff]
    %v1593 = vld [vmem:[%s1584 + $0x40] sm:$0xff]
    %v1594 = vld [vmem:[%s1584 + $0x48] sm:$0xff]
    %v1595 = vld [vmem:[%s1584 + $0x50] sm:$0xff]
    %v1596 = vld [vmem:[%s1584 + $0x58] sm:$0xff]
    %v1597 = vld [vmem:[%s1584 + $0x60] sm:$0xff]
    %v1598 = vld [vmem:[%s1584 + $0x68] sm:$0xff]
    %v1599 = vld [vmem:[%s1584 + $0x70] sm:$0xff]
    %v1615 = vunpack.c.l.b16 %v1585
    %v1616 = vunpack.c.h.b16 %v1585
    %v1617 = vunpack.c.l.b16 %v1586
    %v1618 = vunpack.c.h.b16 %v1586
    %v1619 = vunpack.c.l.b16 %v1587
    %v1620 = vunpack.c.h.b16 %v1587
    %v1621 = vunpack.c.l.b16 %v1588
    %v1622 = vunpack.c.h.b16 %v1588
    %v1623 = vunpack.c.l.b16 %v1589
    %v1624 = vunpack.c.h.b16 %v1589
    %v1625 = vunpack.c.l.b16 %v1590
    %v1626 = vunpack.c.h.b16 %v1590
    %v1627 = vunpack.c.l.b16 %v1591
    %v1628 = vunpack.c.h.b16 %v1591
    %v1629 = vunpack.c.l.b16 %v1592
    %v1630 = vunpack.c.h.b16 %v1592
    %v1631 = vunpack.c.l.b16 %v1593
    %v1632 = vunpack.c.h.b16 %v1593
    %v1633 = vunpack.c.l.b16 %v1594
    %v1634 = vunpack.c.h.b16 %v1594
    %v1635 = vunpack.c.l.b16 %v1595
    %v1636 = vunpack.c.h.b16 %v1595
    %v1637 = vunpack.c.l.b16 %v1596
    %v1638 = vunpack.c.h.b16 %v1596
    %v1639 = vunpack.c.l.b16 %v1597
    %v1640 = vunpack.c.h.b16 %v1597
    %v1641 = vunpack.c.l.b16 %v1598
    %v1642 = vunpack.c.h.b16 %v1598
    %v1643 = vunpack.c.l.b16 %v1599
    %v1644 = vunpack.c.h.b16 %v1599
    %v1645 = vpack.c.b16 %v1617, %v1615
    %v1646 = vpack.c.b16 %v1618, %v1616
    %v1647 = vpack.c.b16 %v1621, %v1619
    %v1648 = vpack.c.b16 %v1622, %v1620
    %v1649 = vpack.c.b16 %v1625, %v1623
    %v1650 = vpack.c.b16 %v1626, %v1624
    %v1651 = vpack.c.b16 %v1629, %v1627
    %v1652 = vpack.c.b16 %v1630, %v1628
    %v1653 = vpack.c.b16 %v1633, %v1631
    %v1654 = vpack.c.b16 %v1634, %v1632
    %v1655 = vpack.c.b16 %v1637, %v1635
    %v1656 = vpack.c.b16 %v1638, %v1636
    %v1657 = vpack.c.b16 %v1641, %v1639
    %v1658 = vpack.c.b16 %v1642, %v1640
    %v1659 = vpack.c.b16 %v1643, %v1643
    %v1660 = vpack.c.b16 %v1644, %v1644
    %vm1675 = vcmask 982016
    %v1677 = vsel %vm1675, %v1583, 0
    %v1680 = vsel %vm85, %v1659, 0
    %v1683 = vsel %vm85, %v1660, 0
    %1685 = vmatprep.subr.bf16.mxu0 %v1683
    %1686 = vmatpush1.bf16.msra.mxu0 %v1680
    %1687 = vmatprep.subr.bf16.mxu0 %v1658
    %1688 = vmatpush1.bf16.msra.mxu0 %v1657
    %1689 = vmatprep.subr.bf16.mxu0 %v1656
    %1690 = vmatpush1.bf16.msra.mxu0 %v1655
    %1691 = vmatprep.subr.bf16.mxu0 %v1654
    %1692 = vmatpush1.bf16.msra.mxu0 %v1653
    %1693 = vmatprep.subr.bf16.mxu0 %v1652
    %1694 = vmatpush1.bf16.msra.mxu0 %v1651
    %1695 = vmatprep.subr.bf16.mxu0 %v1650
    %1696 = vmatpush1.bf16.msra.mxu0 %v1649
    %1697 = vmatprep.subr.bf16.mxu0 %v1648
    %1698 = vmatpush1.bf16.msra.mxu0 %v1647
    %1699 = vmatprep.subr.bf16.mxu0 %v1646
    %1700 = vmatpush1.bf16.msra.mxu0 %v1645
    %1701 = vmatprep.subr.bf16.mxu0 0
    %1702 = vmatpush2.bf16.msra.mxu0 0
    %1703 = vmatprep.subr.bf16.mxu0 0
    %1704 = vmatpush2.bf16.msra.mxu0 0
    %1705 = vmatprep.subr.bf16.mxu0 0
    %1706 = vmatpush2.bf16.msra.mxu0 0
    %1707 = vmatprep.subr.bf16.mxu0 0
    %1708 = vmatpush2.bf16.msra.mxu0 0
    %1709 = vmatprep.subr.bf16.mxu0 0
    %1710 = vmatpush2.bf16.msra.mxu0 0
    %1711 = vmatprep.subr.bf16.mxu0 0
    %1712 = vmatpush2.bf16.msra.mxu0 0
    %1713 = vmatprep.subr.bf16.mxu0 0
    %1714 = vmatpush2.bf16.msra.mxu0 0
    %1715 = vmatprep.subr.bf16.mxu0 0
    %1716 = vmatpush2.bf16.msra.mxu0 0
    %1717 = vmatprep.mubr.bf16.mxu0 0
    %1718 = vmatmul.mubr.bf16.gmra.mxu0 %v1677
    %v1719 = vpop.f32.mrf.mxu0
    %v1720 = vadd.f32 0.0, %v1719
    %v1721 = vpop.f32.mrf.mxu0
    %v1722 = vadd.f32 0.0, %v1721
    %v1723 = vpop.f32.mrf.mxu0
    %v1724 = vadd.f32 0.0, %v1723
    %v1725 = vpop.f32.mrf.mxu0
    %v1726 = vadd.f32 0.0, %v1725
    %1727 = vdwg.mxu0
    %v1743 = vunpack.c.l.b16 %v1516
    %v1744 = vunpack.c.h.b16 %v1516
    %v1745 = vunpack.c.l.b16 %v1517
    %v1746 = vunpack.c.h.b16 %v1517
    %v1747 = vunpack.c.l.b16 %v1518
    %v1748 = vunpack.c.h.b16 %v1518
    %v1749 = vunpack.c.l.b16 %v1519
    %v1750 = vunpack.c.h.b16 %v1519
    %v1751 = vunpack.c.l.b16 %v1520
    %v1752 = vunpack.c.h.b16 %v1520
    %v1753 = vunpack.c.l.b16 %v1521
    %v1754 = vunpack.c.h.b16 %v1521
    %v1755 = vunpack.c.l.b16 %v1522
    %v1756 = vunpack.c.h.b16 %v1522
    %v1757 = vunpack.c.l.b16 %v1523
    %v1758 = vunpack.c.h.b16 %v1523
    %v1759 = vunpack.c.l.b16 %v1524
    %v1760 = vunpack.c.h.b16 %v1524
    %v1761 = vunpack.c.l.b16 %v1525
    %v1762 = vunpack.c.h.b16 %v1525
    %v1763 = vunpack.c.l.b16 %v1526
    %v1764 = vunpack.c.h.b16 %v1526
    %v1765 = vunpack.c.l.b16 %v1527
    %v1766 = vunpack.c.h.b16 %v1527
    %v1767 = vunpack.c.l.b16 %v1528
    %v1768 = vunpack.c.h.b16 %v1528
    %v1769 = vunpack.c.l.b16 %v1529
    %v1770 = vunpack.c.h.b16 %v1529
    %v1771 = vunpack.c.l.b16 %v1530
    %v1772 = vunpack.c.h.b16 %v1530
    %v1773 = vpack.c.b16 %v1745, %v1743
    %v1774 = vpack.c.b16 %v1746, %v1744
    %v1775 = vpack.c.b16 %v1749, %v1747
    %v1776 = vpack.c.b16 %v1750, %v1748
    %v1777 = vpack.c.b16 %v1753, %v1751
    %v1778 = vpack.c.b16 %v1754, %v1752
    %v1779 = vpack.c.b16 %v1757, %v1755
    %v1780 = vpack.c.b16 %v1758, %v1756
    %v1781 = vpack.c.b16 %v1761, %v1759
    %v1782 = vpack.c.b16 %v1762, %v1760
    %v1783 = vpack.c.b16 %v1765, %v1763
    %v1784 = vpack.c.b16 %v1766, %v1764
    %v1785 = vpack.c.b16 %v1769, %v1767
    %v1786 = vpack.c.b16 %v1770, %v1768
    %v1787 = vpack.c.b16 %v1771, %v1771
    %v1788 = vpack.c.b16 %v1772, %v1772
    %v1804 = vsel %vm1675, %v1515, 0
    %v1807 = vsel %vm85, %v1787, 0
    %v1810 = vsel %vm85, %v1788, 0
    %1812 = vmatprep.subr.bf16.mxu0 %v1810
    %1813 = vmatpush1.bf16.msra.mxu0 %v1807
    %1814 = vmatprep.subr.bf16.mxu0 %v1786
    %1815 = vmatpush1.bf16.msra.mxu0 %v1785
    %1816 = vmatprep.subr.bf16.mxu0 %v1784
    %1817 = vmatpush1.bf16.msra.mxu0 %v1783
    %1818 = vmatprep.subr.bf16.mxu0 %v1782
    %1819 = vmatpush1.bf16.msra.mxu0 %v1781
    %1820 = vmatprep.subr.bf16.mxu0 %v1780
    %1821 = vmatpush1.bf16.msra.mxu0 %v1779
    %1822 = vmatprep.subr.bf16.mxu0 %v1778
    %1823 = vmatpush1.bf16.msra.mxu0 %v1777
    %1824 = vmatprep.subr.bf16.mxu0 %v1776
    %1825 = vmatpush1.bf16.msra.mxu0 %v1775
    %1826 = vmatprep.subr.bf16.mxu0 %v1774
    %1827 = vmatpush1.bf16.msra.mxu0 %v1773
    %1828 = vmatprep.subr.bf16.mxu0 0
    %1829 = vmatpush2.bf16.msra.mxu0 0
    %1830 = vmatprep.subr.bf16.mxu0 0
    %1831 = vmatpush2.bf16.msra.mxu0 0
    %1832 = vmatprep.subr.bf16.mxu0 0
    %1833 = vmatpush2.bf16.msra.mxu0 0
    %1834 = vmatprep.subr.bf16.mxu0 0
    %1835 = vmatpush2.bf16.msra.mxu0 0
    %1836 = vmatprep.subr.bf16.mxu0 0
    %1837 = vmatpush2.bf16.msra.mxu0 0
    %1838 = vmatprep.subr.bf16.mxu0 0
    %1839 = vmatpush2.bf16.msra.mxu0 0
    %1840 = vmatprep.subr.bf16.mxu0 0
    %1841 = vmatpush2.bf16.msra.mxu0 0
    %1842 = vmatprep.subr.bf16.mxu0 0
    %1843 = vmatpush2.bf16.msra.mxu0 0
    %1844 = vmatprep.mubr.bf16.mxu0 0
    %1845 = vmatmul.mubr.bf16.gmra.mxu0 %v1804
    %v1846 = vpop.f32.mrf.mxu0
    %v1847 = vadd.f32 %v1720, %v1846
    %v1848 = vpop.f32.mrf.mxu0
    %v1849 = vadd.f32 %v1722, %v1848
    %v1850 = vpop.f32.mrf.mxu0
    %v1851 = vadd.f32 %v1724, %v1850
    %v1852 = vpop.f32.mrf.mxu0
    %v1853 = vadd.f32 %v1726, %v1852
    %1854 = vdwg.mxu0
    %s1855 = scalar_lea.vmem %s6, 16
    %v1856 = vld [vmem:[%s1855] sm:$0xf]
    %v1857 = vld [vmem:[%s1855 + $0x4] sm:$0xf]
    %v1860 = vunpack.c.l.b16 %v1856
    %v1861 = vunpack.c.l.b16 %v1857
    %v1862 = vpack.c.b16 %v1861, %v1860
    %v1864 = vsel %vm1467, %v1862, 0
    %1866 = vmatprep.subr.bf16.mxu0 0
    %1867 = vmatpush1.bf16.msra.mxu0 0
    %1868 = vmatprep.subr.bf16.mxu0 0
    %1869 = vmatpush1.bf16.msra.mxu0 0
    %1870 = vmatprep.subr.bf16.mxu0 0
    %1871 = vmatpush1.bf16.msra.mxu0 0
    %1872 = vmatprep.subr.bf16.mxu0 0
    %1873 = vmatpush1.bf16.msra.mxu0 0
    %1874 = vmatprep.subr.bf16.mxu0 0
    %1875 = vmatpush1.bf16.msra.mxu0 0
    %1876 = vmatprep.subr.bf16.mxu0 0
    %1877 = vmatpush1.bf16.msra.mxu0 0
    %1878 = vmatprep.subr.bf16.mxu0 0
    %1879 = vmatpush1.bf16.msra.mxu0 %v1472
    %1880 = vmatprep.subr.bf16.mxu0 0
    %1881 = vmatpush1.bf16.msra.mxu0 %v1458
    %1882 = vmatprep.subr.bf16.mxu0 0
    %1883 = vmatpush2.bf16.msra.mxu0 0
    %1884 = vmatprep.subr.bf16.mxu0 0
    %1885 = vmatpush2.bf16.msra.mxu0 0
    %1886 = vmatprep.subr.bf16.mxu0 0
    %1887 = vmatpush2.bf16.msra.mxu0 0
    %1888 = vmatprep.subr.bf16.mxu0 0
    %1889 = vmatpush2.bf16.msra.mxu0 0
    %1890 = vmatprep.subr.bf16.mxu0 0
    %1891 = vmatpush2.bf16.msra.mxu0 0
    %1892 = vmatprep.subr.bf16.mxu0 0
    %1893 = vmatpush2.bf16.msra.mxu0 0
    %1894 = vmatprep.subr.bf16.mxu0 0
    %1895 = vmatpush2.bf16.msra.mxu0 0
    %1896 = vmatprep.subr.bf16.mxu0 0
    %1897 = vmatpush2.bf16.msra.mxu0 0
    %1898 = vmatprep.mubr.bf16.mxu0 0
    %1899 = vmatmul.mubr.bf16.gmra.mxu0 %v1864
    %v1900 = vpop.f32.mrf.mxu0
    %v1901 = vadd.f32 0.0, %v1900
    %v1902 = vpop.f32.mrf.mxu0
    %v1903 = vpop.f32.mrf.mxu0
    %v1904 = vadd.f32 0.0, %v1903
    %v1905 = vpop.f32.mrf.mxu0
    %1906 = vdwg.mxu0
    %v1907 = vpack.c.bf16 %v1904, %v1901
    %s1908 = scalar_lea.vmem %s7, 240
    %v1909 = vld [vmem:[%s1908] sm:$0xff]
    %v1910 = vld [vmem:[%s1908 + $0x8] sm:$0xff]
    %v1911 = vld [vmem:[%s1908 + $0x10] sm:$0xff]
    %v1912 = vld [vmem:[%s1908 + $0x18] sm:$0xff]
    %v1913 = vld [vmem:[%s1908 + $0x20] sm:$0xff]
    %v1914 = vld [vmem:[%s1908 + $0x28] sm:$0xff]
    %v1915 = vld [vmem:[%s1908 + $0x30] sm:$0xff]
    %v1916 = vld [vmem:[%s1908 + $0x38] sm:$0xff]
    %v1917 = vld [vmem:[%s1908 + $0x40] sm:$0xff]
    %v1918 = vld [vmem:[%s1908 + $0x48] sm:$0xff]
    %v1919 = vld [vmem:[%s1908 + $0x50] sm:$0xff]
    %v1920 = vld [vmem:[%s1908 + $0x58] sm:$0xff]
    %v1921 = vld [vmem:[%s1908 + $0x60] sm:$0xff]
    %v1922 = vld [vmem:[%s1908 + $0x68] sm:$0xff]
    %v1923 = vld [vmem:[%s1908 + $0x70] sm:$0xff]
    %v1939 = vunpack.c.l.b16 %v1909
    %v1940 = vunpack.c.h.b16 %v1909
    %v1941 = vunpack.c.l.b16 %v1910
    %v1942 = vunpack.c.h.b16 %v1910
    %v1943 = vunpack.c.l.b16 %v1911
    %v1944 = vunpack.c.h.b16 %v1911
    %v1945 = vunpack.c.l.b16 %v1912
    %v1946 = vunpack.c.h.b16 %v1912
    %v1947 = vunpack.c.l.b16 %v1913
    %v1948 = vunpack.c.h.b16 %v1913
    %v1949 = vunpack.c.l.b16 %v1914
    %v1950 = vunpack.c.h.b16 %v1914
    %v1951 = vunpack.c.l.b16 %v1915
    %v1952 = vunpack.c.h.b16 %v1915
    %v1953 = vunpack.c.l.b16 %v1916
    %v1954 = vunpack.c.h.b16 %v1916
    %v1955 = vunpack.c.l.b16 %v1917
    %v1956 = vunpack.c.h.b16 %v1917
    %v1957 = vunpack.c.l.b16 %v1918
    %v1958 = vunpack.c.h.b16 %v1918
    %v1959 = vunpack.c.l.b16 %v1919
    %v1960 = vunpack.c.h.b16 %v1919
    %v1961 = vunpack.c.l.b16 %v1920
    %v1962 = vunpack.c.h.b16 %v1920
    %v1963 = vunpack.c.l.b16 %v1921
    %v1964 = vunpack.c.h.b16 %v1921
    %v1965 = vunpack.c.l.b16 %v1922
    %v1966 = vunpack.c.h.b16 %v1922
    %v1967 = vunpack.c.l.b16 %v1923
    %v1968 = vunpack.c.h.b16 %v1923
    %v1969 = vpack.c.b16 %v1941, %v1939
    %v1970 = vpack.c.b16 %v1942, %v1940
    %v1971 = vpack.c.b16 %v1945, %v1943
    %v1972 = vpack.c.b16 %v1946, %v1944
    %v1973 = vpack.c.b16 %v1949, %v1947
    %v1974 = vpack.c.b16 %v1950, %v1948
    %v1975 = vpack.c.b16 %v1953, %v1951
    %v1976 = vpack.c.b16 %v1954, %v1952
    %v1977 = vpack.c.b16 %v1957, %v1955
    %v1978 = vpack.c.b16 %v1958, %v1956
    %v1979 = vpack.c.b16 %v1961, %v1959
    %v1980 = vpack.c.b16 %v1962, %v1960
    %v1981 = vpack.c.b16 %v1965, %v1963
    %v1982 = vpack.c.b16 %v1966, %v1964
    %v1983 = vpack.c.b16 %v1967, %v1967
    %v1984 = vpack.c.b16 %v1968, %v1968
    %v2000 = vsel %vm1675, %v1907, 0
    %v2003 = vsel %vm85, %v1983, 0
    %v2006 = vsel %vm85, %v1984, 0
    %2008 = vmatprep.subr.bf16.mxu0 %v2006
    %2009 = vmatpush1.bf16.msra.mxu0 %v2003
    %2010 = vmatprep.subr.bf16.mxu0 %v1982
    %2011 = vmatpush1.bf16.msra.mxu0 %v1981
    %2012 = vmatprep.subr.bf16.mxu0 %v1980
    %2013 = vmatpush1.bf16.msra.mxu0 %v1979
    %2014 = vmatprep.subr.bf16.mxu0 %v1978
    %2015 = vmatpush1.bf16.msra.mxu0 %v1977
    %2016 = vmatprep.subr.bf16.mxu0 %v1976
    %2017 = vmatpush1.bf16.msra.mxu0 %v1975
    %2018 = vmatprep.subr.bf16.mxu0 %v1974
    %2019 = vmatpush1.bf16.msra.mxu0 %v1973
    %2020 = vmatprep.subr.bf16.mxu0 %v1972
    %2021 = vmatpush1.bf16.msra.mxu0 %v1971
    %2022 = vmatprep.subr.bf16.mxu0 %v1970
    %2023 = vmatpush1.bf16.msra.mxu0 %v1969
    %2024 = vmatprep.subr.bf16.mxu0 0
    %2025 = vmatpush2.bf16.msra.mxu0 0
    %2026 = vmatprep.subr.bf16.mxu0 0
    %2027 = vmatpush2.bf16.msra.mxu0 0
    %2028 = vmatprep.subr.bf16.mxu0 0
    %2029 = vmatpush2.bf16.msra.mxu0 0
    %2030 = vmatprep.subr.bf16.mxu0 0
    %2031 = vmatpush2.bf16.msra.mxu0 0
    %2032 = vmatprep.subr.bf16.mxu0 0
    %2033 = vmatpush2.bf16.msra.mxu0 0
    %2034 = vmatprep.subr.bf16.mxu0 0
    %2035 = vmatpush2.bf16.msra.mxu0 0
    %2036 = vmatprep.subr.bf16.mxu0 0
    %2037 = vmatpush2.bf16.msra.mxu0 0
    %2038 = vmatprep.subr.bf16.mxu0 0
    %2039 = vmatpush2.bf16.msra.mxu0 0
    %2040 = vmatprep.mubr.bf16.mxu0 0
    %2041 = vmatmul.mubr.bf16.gmra.mxu0 %v2000
    %v2042 = vpop.f32.mrf.mxu0
    %v2043 = vadd.f32 0.0, %v2042
    %v2044 = vpop.f32.mrf.mxu0
    %v2045 = vadd.f32 0.0, %v2044
    %v2046 = vpop.f32.mrf.mxu0
    %v2047 = vadd.f32 0.0, %v2046
    %v2048 = vpop.f32.mrf.mxu0
    %v2049 = vadd.f32 0.0, %v2048
    %2050 = vdwg.mxu0
    %v2051 = vadd.f32 %v1847, %v2043
    %v2052 = vadd.f32 %v1849, %v2045
    %v2053 = vadd.f32 %v1851, %v2047
    %v2054 = vadd.f32 %v1853, %v2049
    %s2055 = scalar_lea.vmem %s6, 24
    %v2056 = vld [vmem:[%s2055] sm:$0xf]
    %v2057 = vld [vmem:[%s2055 + $0x4] sm:$0xf]
    %v2060 = vunpack.c.l.b16 %v2056
    %v2061 = vunpack.c.l.b16 %v2057
    %v2062 = vpack.c.b16 %v2061, %v2060
    %v2064 = vsel %vm1467, %v2062, 0
    %2066 = vmatprep.subr.bf16.mxu0 0
    %2067 = vmatpush1.bf16.msra.mxu0 0
    %2068 = vmatprep.subr.bf16.mxu0 0
    %2069 = vmatpush1.bf16.msra.mxu0 0
    %2070 = vmatprep.subr.bf16.mxu0 0
    %2071 = vmatpush1.bf16.msra.mxu0 0
    %2072 = vmatprep.subr.bf16.mxu0 0
    %2073 = vmatpush1.bf16.msra.mxu0 0
    %2074 = vmatprep.subr.bf16.mxu0 0
    %2075 = vmatpush1.bf16.msra.mxu0 0
    %2076 = vmatprep.subr.bf16.mxu0 0
    %2077 = vmatpush1.bf16.msra.mxu0 0
    %2078 = vmatprep.subr.bf16.mxu0 0
    %2079 = vmatpush1.bf16.msra.mxu0 %v1472
    %2080 = vmatprep.subr.bf16.mxu0 0
    %2081 = vmatpush1.bf16.msra.mxu0 %v1458
    %2082 = vmatprep.subr.bf16.mxu0 0
    %2083 = vmatpush2.bf16.msra.mxu0 0
    %2084 = vmatprep.subr.bf16.mxu0 0
    %2085 = vmatpush2.bf16.msra.mxu0 0
    %2086 = vmatprep.subr.bf16.mxu0 0
    %2087 = vmatpush2.bf16.msra.mxu0 0
    %2088 = vmatprep.subr.bf16.mxu0 0
    %2089 = vmatpush2.bf16.msra.mxu0 0
    %2090 = vmatprep.subr.bf16.mxu0 0
    %2091 = vmatpush2.bf16.msra.mxu0 0
    %2092 = vmatprep.subr.bf16.mxu0 0
    %2093 = vmatpush2.bf16.msra.mxu0 0
    %2094 = vmatprep.subr.bf16.mxu0 0
    %2095 = vmatpush2.bf16.msra.mxu0 0
    %2096 = vmatprep.subr.bf16.mxu0 0
    %2097 = vmatpush2.bf16.msra.mxu0 0
    %2098 = vmatprep.mubr.bf16.mxu0 0
    %2099 = vmatmul.mubr.bf16.gmra.mxu0 %v2064
    %v2100 = vpop.f32.mrf.mxu0
    %v2101 = vadd.f32 0.0, %v2100
    %v2102 = vpop.f32.mrf.mxu0
    %v2103 = vpop.f32.mrf.mxu0
    %v2104 = vadd.f32 0.0, %v2103
    %v2105 = vpop.f32.mrf.mxu0
    %2106 = vdwg.mxu0
    %v2107 = vpack.c.bf16 %v2104, %v2101
    %s2108 = scalar_lea.vmem %s7, 360
    %v2109 = vld [vmem:[%s2108] sm:$0xff]
    %v2110 = vld [vmem:[%s2108 + $0x8] sm:$0xff]
    %v2111 = vld [vmem:[%s2108 + $0x10] sm:$0xff]
    %v2112 = vld [vmem:[%s2108 + $0x18] sm:$0xff]
    %v2113 = vld [vmem:[%s2108 + $0x20] sm:$0xff]
    %v2114 = vld [vmem:[%s2108 + $0x28] sm:$0xff]
    %v2115 = vld [vmem:[%s2108 + $0x30] sm:$0xff]
    %v2116 = vld [vmem:[%s2108 + $0x38] sm:$0xff]
    %v2117 = vld [vmem:[%s2108 + $0x40] sm:$0xff]
    %v2118 = vld [vmem:[%s2108 + $0x48] sm:$0xff]
    %v2119 = vld [vmem:[%s2108 + $0x50] sm:$0xff]
    %v2120 = vld [vmem:[%s2108 + $0x58] sm:$0xff]
    %v2121 = vld [vmem:[%s2108 + $0x60] sm:$0xff]
    %v2122 = vld [vmem:[%s2108 + $0x68] sm:$0xff]
    %v2123 = vld [vmem:[%s2108 + $0x70] sm:$0xff]
    %v2139 = vunpack.c.l.b16 %v2109
    %v2140 = vunpack.c.h.b16 %v2109
    %v2141 = vunpack.c.l.b16 %v2110
    %v2142 = vunpack.c.h.b16 %v2110
    %v2143 = vunpack.c.l.b16 %v2111
    %v2144 = vunpack.c.h.b16 %v2111
    %v2145 = vunpack.c.l.b16 %v2112
    %v2146 = vunpack.c.h.b16 %v2112
    %v2147 = vunpack.c.l.b16 %v2113
    %v2148 = vunpack.c.h.b16 %v2113
    %v2149 = vunpack.c.l.b16 %v2114
    %v2150 = vunpack.c.h.b16 %v2114
    %v2151 = vunpack.c.l.b16 %v2115
    %v2152 = vunpack.c.h.b16 %v2115
    %v2153 = vunpack.c.l.b16 %v2116
    %v2154 = vunpack.c.h.b16 %v2116
    %v2155 = vunpack.c.l.b16 %v2117
    %v2156 = vunpack.c.h.b16 %v2117
    %v2157 = vunpack.c.l.b16 %v2118
    %v2158 = vunpack.c.h.b16 %v2118
    %v2159 = vunpack.c.l.b16 %v2119
    %v2160 = vunpack.c.h.b16 %v2119
    %v2161 = vunpack.c.l.b16 %v2120
    %v2162 = vunpack.c.h.b16 %v2120
    %v2163 = vunpack.c.l.b16 %v2121
    %v2164 = vunpack.c.h.b16 %v2121
    %v2165 = vunpack.c.l.b16 %v2122
    %v2166 = vunpack.c.h.b16 %v2122
    %v2167 = vunpack.c.l.b16 %v2123
    %v2168 = vunpack.c.h.b16 %v2123
    %v2169 = vpack.c.b16 %v2141, %v2139
    %v2170 = vpack.c.b16 %v2142, %v2140
    %v2171 = vpack.c.b16 %v2145, %v2143
    %v2172 = vpack.c.b16 %v2146, %v2144
    %v2173 = vpack.c.b16 %v2149, %v2147
    %v2174 = vpack.c.b16 %v2150, %v2148
    %v2175 = vpack.c.b16 %v2153, %v2151
    %v2176 = vpack.c.b16 %v2154, %v2152
    %v2177 = vpack.c.b16 %v2157, %v2155
    %v2178 = vpack.c.b16 %v2158, %v2156
    %v2179 = vpack.c.b16 %v2161, %v2159
    %v2180 = vpack.c.b16 %v2162, %v2160
    %v2181 = vpack.c.b16 %v2165, %v2163
    %v2182 = vpack.c.b16 %v2166, %v2164
    %v2183 = vpack.c.b16 %v2167, %v2167
    %v2184 = vpack.c.b16 %v2168, %v2168
    %v2200 = vsel %vm1675, %v2107, 0
    %v2203 = vsel %vm85, %v2183, 0
    %v2206 = vsel %vm85, %v2184, 0
    %2208 = vmatprep.subr.bf16.mxu0 %v2206
    %2209 = vmatpush1.bf16.msra.mxu0 %v2203
    %2210 = vmatprep.subr.bf16.mxu0 %v2182
    %2211 = vmatpush1.bf16.msra.mxu0 %v2181
    %2212 = vmatprep.subr.bf16.mxu0 %v2180
    %2213 = vmatpush1.bf16.msra.mxu0 %v2179
    %2214 = vmatprep.subr.bf16.mxu0 %v2178
    %2215 = vmatpush1.bf16.msra.mxu0 %v2177
    %2216 = vmatprep.subr.bf16.mxu0 %v2176
    %2217 = vmatpush1.bf16.msra.mxu0 %v2175
    %2218 = vmatprep.subr.bf16.mxu0 %v2174
    %2219 = vmatpush1.bf16.msra.mxu0 %v2173
    %2220 = vmatprep.subr.bf16.mxu0 %v2172
    %2221 = vmatpush1.bf16.msra.mxu0 %v2171
    %2222 = vmatprep.subr.bf16.mxu0 %v2170
    %2223 = vmatpush1.bf16.msra.mxu0 %v2169
    %2224 = vmatprep.subr.bf16.mxu0 0
    %2225 = vmatpush2.bf16.msra.mxu0 0
    %2226 = vmatprep.subr.bf16.mxu0 0
    %2227 = vmatpush2.bf16.msra.mxu0 0
    %2228 = vmatprep.subr.bf16.mxu0 0
    %2229 = vmatpush2.bf16.msra.mxu0 0
    %2230 = vmatprep.subr.bf16.mxu0 0
    %2231 = vmatpush2.bf16.msra.mxu0 0
    %2232 = vmatprep.subr.bf16.mxu0 0
    %2233 = vmatpush2.bf16.msra.mxu0 0
    %2234 = vmatprep.subr.bf16.mxu0 0
    %2235 = vmatpush2.bf16.msra.mxu0 0
    %2236 = vmatprep.subr.bf16.mxu0 0
    %2237 = vmatpush2.bf16.msra.mxu0 0
    %2238 = vmatprep.subr.bf16.mxu0 0
    %2239 = vmatpush2.bf16.msra.mxu0 0
    %2240 = vmatprep.mubr.bf16.mxu0 0
    %2241 = vmatmul.mubr.bf16.gmra.mxu0 %v2200
    %v2242 = vpop.f32.mrf.mxu0
    %v2243 = vadd.f32 0.0, %v2242
    %v2244 = vpop.f32.mrf.mxu0
    %v2245 = vadd.f32 0.0, %v2244
    %v2246 = vpop.f32.mrf.mxu0
    %v2247 = vadd.f32 0.0, %v2246
    %v2248 = vpop.f32.mrf.mxu0
    %v2249 = vadd.f32 0.0, %v2248
    %2250 = vdwg.mxu0
    %v2251 = vadd.f32 %v2051, %v2243
    %v2252 = vadd.f32 %v2052, %v2245
    %v2253 = vadd.f32 %v2053, %v2247
    %v2254 = vadd.f32 %v2054, %v2249
    %s2255 = scalar_lea.vmem %s6, 32
    %v2256 = vld [vmem:[%s2255] sm:$0xf]
    %v2257 = vld [vmem:[%s2255 + $0x4] sm:$0xf]
    %v2260 = vunpack.c.l.b16 %v2256
    %v2261 = vunpack.c.l.b16 %v2257
    %v2262 = vpack.c.b16 %v2261, %v2260
    %v2264 = vsel %vm1467, %v2262, 0
    %2266 = vmatprep.subr.bf16.mxu0 0
    %2267 = vmatpush1.bf16.msra.mxu0 0
    %2268 = vmatprep.subr.bf16.mxu0 0
    %2269 = vmatpush1.bf16.msra.mxu0 0
    %2270 = vmatprep.subr.bf16.mxu0 0
    %2271 = vmatpush1.bf16.msra.mxu0 0
    %2272 = vmatprep.subr.bf16.mxu0 0
    %2273 = vmatpush1.bf16.msra.mxu0 0
    %2274 = vmatprep.subr.bf16.mxu0 0
    %2275 = vmatpush1.bf16.msra.mxu0 0
    %2276 = vmatprep.subr.bf16.mxu0 0
    %2277 = vmatpush1.bf16.msra.mxu0 0
    %2278 = vmatprep.subr.bf16.mxu0 0
    %2279 = vmatpush1.bf16.msra.mxu0 %v1472
    %2280 = vmatprep.subr.bf16.mxu0 0
    %2281 = vmatpush1.bf16.msra.mxu0 %v1458
    %2282 = vmatprep.subr.bf16.mxu0 0
    %2283 = vmatpush2.bf16.msra.mxu0 0
    %2284 = vmatprep.subr.bf16.mxu0 0
    %2285 = vmatpush2.bf16.msra.mxu0 0
    %2286 = vmatprep.subr.bf16.mxu0 0
    %2287 = vmatpush2.bf16.msra.mxu0 0
    %2288 = vmatprep.subr.bf16.mxu0 0
    %2289 = vmatpush2.bf16.msra.mxu0 0
    %2290 = vmatprep.subr.bf16.mxu0 0
    %2291 = vmatpush2.bf16.msra.mxu0 0
    %2292 = vmatprep.subr.bf16.mxu0 0
    %2293 = vmatpush2.bf16.msra.mxu0 0
    %2294 = vmatprep.subr.bf16.mxu0 0
    %2295 = vmatpush2.bf16.msra.mxu0 0
    %2296 = vmatprep.subr.bf16.mxu0 0
    %2297 = vmatpush2.bf16.msra.mxu0 0
    %2298 = vmatprep.mubr.bf16.mxu0 0
    %2299 = vmatmul.mubr.bf16.gmra.mxu0 %v2264
    %v2300 = vpop.f32.mrf.mxu0
    %v2301 = vadd.f32 0.0, %v2300
    %v2302 = vpop.f32.mrf.mxu0
    %v2303 = vpop.f32.mrf.mxu0
    %v2304 = vadd.f32 0.0, %v2303
    %v2305 = vpop.f32.mrf.mxu0
    %2306 = vdwg.mxu0
    %v2307 = vpack.c.bf16 %v2304, %v2301
    %s2308 = scalar_lea.vmem %s7, 480
    %v2309 = vld [vmem:[%s2308] sm:$0xff]
    %v2310 = vld [vmem:[%s2308 + $0x8] sm:$0xff]
    %v2311 = vld [vmem:[%s2308 + $0x10] sm:$0xff]
    %v2312 = vld [vmem:[%s2308 + $0x18] sm:$0xff]
    %v2313 = vld [vmem:[%s2308 + $0x20] sm:$0xff]
    %v2314 = vld [vmem:[%s2308 + $0x28] sm:$0xff]
    %v2315 = vld [vmem:[%s2308 + $0x30] sm:$0xff]
    %v2316 = vld [vmem:[%s2308 + $0x38] sm:$0xff]
    %v2317 = vld [vmem:[%s2308 + $0x40] sm:$0xff]
    %v2318 = vld [vmem:[%s2308 + $0x48] sm:$0xff]
    %v2319 = vld [vmem:[%s2308 + $0x50] sm:$0xff]
    %v2320 = vld [vmem:[%s2308 + $0x58] sm:$0xff]
    %v2321 = vld [vmem:[%s2308 + $0x60] sm:$0xff]
    %v2322 = vld [vmem:[%s2308 + $0x68] sm:$0xff]
    %v2323 = vld [vmem:[%s2308 + $0x70] sm:$0xff]
    %v2339 = vunpack.c.l.b16 %v2309
    %v2340 = vunpack.c.h.b16 %v2309
    %v2341 = vunpack.c.l.b16 %v2310
    %v2342 = vunpack.c.h.b16 %v2310
    %v2343 = vunpack.c.l.b16 %v2311
    %v2344 = vunpack.c.h.b16 %v2311
    %v2345 = vunpack.c.l.b16 %v2312
    %v2346 = vunpack.c.h.b16 %v2312
    %v2347 = vunpack.c.l.b16 %v2313
    %v2348 = vunpack.c.h.b16 %v2313
    %v2349 = vunpack.c.l.b16 %v2314
    %v2350 = vunpack.c.h.b16 %v2314
    %v2351 = vunpack.c.l.b16 %v2315
    %v2352 = vunpack.c.h.b16 %v2315
    %v2353 = vunpack.c.l.b16 %v2316
    %v2354 = vunpack.c.h.b16 %v2316
    %v2355 = vunpack.c.l.b16 %v2317
    %v2356 = vunpack.c.h.b16 %v2317
    %v2357 = vunpack.c.l.b16 %v2318
    %v2358 = vunpack.c.h.b16 %v2318
    %v2359 = vunpack.c.l.b16 %v2319
    %v2360 = vunpack.c.h.b16 %v2319
    %v2361 = vunpack.c.l.b16 %v2320
    %v2362 = vunpack.c.h.b16 %v2320
    %v2363 = vunpack.c.l.b16 %v2321
    %v2364 = vunpack.c.h.b16 %v2321
    %v2365 = vunpack.c.l.b16 %v2322
    %v2366 = vunpack.c.h.b16 %v2322
    %v2367 = vunpack.c.l.b16 %v2323
    %v2368 = vunpack.c.h.b16 %v2323
    %v2369 = vpack.c.b16 %v2341, %v2339
    %v2370 = vpack.c.b16 %v2342, %v2340
    %v2371 = vpack.c.b16 %v2345, %v2343
    %v2372 = vpack.c.b16 %v2346, %v2344
    %v2373 = vpack.c.b16 %v2349, %v2347
    %v2374 = vpack.c.b16 %v2350, %v2348
    %v2375 = vpack.c.b16 %v2353, %v2351
    %v2376 = vpack.c.b16 %v2354, %v2352
    %v2377 = vpack.c.b16 %v2357, %v2355
    %v2378 = vpack.c.b16 %v2358, %v2356
    %v2379 = vpack.c.b16 %v2361, %v2359
    %v2380 = vpack.c.b16 %v2362, %v2360
    %v2381 = vpack.c.b16 %v2365, %v2363
    %v2382 = vpack.c.b16 %v2366, %v2364
    %v2383 = vpack.c.b16 %v2367, %v2367
    %v2384 = vpack.c.b16 %v2368, %v2368
    %v2400 = vsel %vm1675, %v2307, 0
    %v2403 = vsel %vm85, %v2383, 0
    %v2406 = vsel %vm85, %v2384, 0
    %2408 = vmatprep.subr.bf16.mxu0 %v2406
    %2409 = vmatpush1.bf16.msra.mxu0 %v2403
    %2410 = vmatprep.subr.bf16.mxu0 %v2382
    %2411 = vmatpush1.bf16.msra.mxu0 %v2381
    %2412 = vmatprep.subr.bf16.mxu0 %v2380
    %2413 = vmatpush1.bf16.msra.mxu0 %v2379
    %2414 = vmatprep.subr.bf16.mxu0 %v2378
    %2415 = vmatpush1.bf16.msra.mxu0 %v2377
    %2416 = vmatprep.subr.bf16.mxu0 %v2376
    %2417 = vmatpush1.bf16.msra.mxu0 %v2375
    %2418 = vmatprep.subr.bf16.mxu0 %v2374
    %2419 = vmatpush1.bf16.msra.mxu0 %v2373
    %2420 = vmatprep.subr.bf16.mxu0 %v2372
    %2421 = vmatpush1.bf16.msra.mxu0 %v2371
    %2422 = vmatprep.subr.bf16.mxu0 %v2370
    %2423 = vmatpush1.bf16.msra.mxu0 %v2369
    %2424 = vmatprep.subr.bf16.mxu0 0
    %2425 = vmatpush2.bf16.msra.mxu0 0
    %2426 = vmatprep.subr.bf16.mxu0 0
    %2427 = vmatpush2.bf16.msra.mxu0 0
    %2428 = vmatprep.subr.bf16.mxu0 0
    %2429 = vmatpush2.bf16.msra.mxu0 0
    %2430 = vmatprep.subr.bf16.mxu0 0
    %2431 = vmatpush2.bf16.msra.mxu0 0
    %2432 = vmatprep.subr.bf16.mxu0 0
    %2433 = vmatpush2.bf16.msra.mxu0 0
    %2434 = vmatprep.subr.bf16.mxu0 0
    %2435 = vmatpush2.bf16.msra.mxu0 0
    %2436 = vmatprep.subr.bf16.mxu0 0
    %2437 = vmatpush2.bf16.msra.mxu0 0
    %2438 = vmatprep.subr.bf16.mxu0 0
    %2439 = vmatpush2.bf16.msra.mxu0 0
    %2440 = vmatprep.mubr.bf16.mxu0 0
    %2441 = vmatmul.mubr.bf16.gmra.mxu0 %v2400
    %v2442 = vpop.f32.mrf.mxu0
    %v2443 = vadd.f32 0.0, %v2442
    %v2444 = vpop.f32.mrf.mxu0
    %v2445 = vadd.f32 0.0, %v2444
    %v2446 = vpop.f32.mrf.mxu0
    %v2447 = vadd.f32 0.0, %v2446
    %v2448 = vpop.f32.mrf.mxu0
    %v2449 = vadd.f32 0.0, %v2448
    %2450 = vdwg.mxu0
    %v2451 = vadd.f32 %v2251, %v2443
    %v2452 = vadd.f32 %v2252, %v2445
    %v2453 = vadd.f32 %v2253, %v2447
    %v2454 = vadd.f32 %v2254, %v2449
    %v2455 = vld [vmem:[%s8] sm:$0x3]
    %v2457 = vlaneseq
    %v2458 = vshrl.u32 %v2457, 7
    %v2459 = vsub.s32 0, %v2458
    %v2460 = vrot.slane %v2455, %v2459
    %v2461 = vlaneseq
    %v2462 = vshrl.u32 %v2461, 7
    %v2463 = vsub.s32 1, %v2462
    %v2464 = vrot.slane %v2455, %v2463
    %v2467 = vadd.f32 %v2451, %v2460
    %v2468 = vadd.f32 %v2452, %v2464
    %v2469 = vadd.f32 %v2453, %v2460
    %v2470 = vadd.f32 %v2454, %v2464
    %v2471 = vmax.f32 %v2467, 0.0
    %v2472 = vmax.f32 %v2468, 0.0
    %v2473 = vmax.f32 %v2469, 0.0
    %v2474 = vmax.f32 %v2470, 0.0
    %2479 = vrot.lane.b32.xlu0 %v2471, 127
    %v2480 = vpop.permute.xlu0 %2479
    %2481 = vrot.lane.b32.xlu0 %v2472, 127
    %v2482 = vpop.permute.xlu0 %2481
    %2483 = vrot.lane.b32.xlu0 %v2473, 127
    %v2484 = vpop.permute.xlu0 %2483
    %2485 = vrot.lane.b32.xlu0 %v2474, 127
    %v2486 = vpop.permute.xlu0 %2485
    %v2487 = vsel %vm1127, %v2480, %v2482
    %v2488 = vsel %vm1127, %v2484, %v2486
    %v2493 = vmax.f32 %v2471, %v2487
    %v2494 = vmax.f32 %v2472, %v2482
    %v2495 = vmax.f32 %v2473, %v2488
    %v2496 = vmax.f32 %v2474, %v2486
    %v2497 = vpack.c.bf16 %v2495, %v2493
    %v2498 = vpack.c.bf16 %v2496, %v2494
    %v2499 = vld [vmem:[%s9] sm:$0xf]
    %v2500 = vld [vmem:[%s9 + $0x4] sm:$0xf]
    %v2501 = vld [vmem:[%s9 + $0x8] sm:$0xf]
    %v2502 = vld [vmem:[%s9 + $0xc] sm:$0xf]
    %v2503 = vld [vmem:[%s9 + $0x10] sm:$0xf]
    %v2504 = vld [vmem:[%s9 + $0x14] sm:$0xf]
    %v2505 = vld [vmem:[%s9 + $0x18] sm:$0xf]
    %v2506 = vld [vmem:[%s9 + $0x1c] sm:$0xf]
    %v2507 = vld [vmem:[%s9 + $0x20] sm:$0xf]
    %v2508 = vld [vmem:[%s9 + $0x24] sm:$0xf]
    %v2509 = vld [vmem:[%s9 + $0x28] sm:$0xf]
    %v2510 = vld [vmem:[%s9 + $0x2c] sm:$0xf]
    %v2511 = vld [vmem:[%s9 + $0x30] sm:$0xf]
    %v2512 = vld [vmem:[%s9 + $0x34] sm:$0xf]
    %v2513 = vld [vmem:[%s9 + $0x38] sm:$0xf]
    %v2514 = vld [vmem:[%s9 + $0x3c] sm:$0xf]
    %v2515 = vld [vmem:[%s9 + $0x40] sm:$0xf]
    %v2516 = vld [vmem:[%s9 + $0x44] sm:$0xf]
    %v2517 = vld [vmem:[%s9 + $0x48] sm:$0xf]
    %v2518 = vld [vmem:[%s9 + $0x4c] sm:$0xf]
    %v2539 = vunpack.c.l.b16 %v2499
    %v2540 = vunpack.c.l.b16 %v2500
    %v2541 = vunpack.c.l.b16 %v2501
    %v2542 = vunpack.c.l.b16 %v2502
    %v2543 = vunpack.c.l.b16 %v2503
    %v2544 = vunpack.c.l.b16 %v2504
    %v2545 = vunpack.c.l.b16 %v2505
    %v2546 = vunpack.c.l.b16 %v2506
    %v2547 = vunpack.c.l.b16 %v2507
    %v2548 = vunpack.c.l.b16 %v2508
    %v2549 = vunpack.c.l.b16 %v2509
    %v2550 = vunpack.c.l.b16 %v2510
    %v2551 = vunpack.c.l.b16 %v2511
    %v2552 = vunpack.c.l.b16 %v2512
    %v2553 = vunpack.c.l.b16 %v2513
    %v2554 = vunpack.c.l.b16 %v2514
    %v2555 = vunpack.c.l.b16 %v2515
    %v2556 = vunpack.c.l.b16 %v2516
    %v2557 = vunpack.c.l.b16 %v2517
    %v2558 = vunpack.c.l.b16 %v2518
    %v2559 = vpack.c.b16 %v2540, %v2539
    %v2560 = vpack.c.b16 %v2542, %v2541
    %v2561 = vpack.c.b16 %v2544, %v2543
    %v2562 = vpack.c.b16 %v2546, %v2545
    %v2563 = vpack.c.b16 %v2548, %v2547
    %v2564 = vpack.c.b16 %v2550, %v2549
    %v2565 = vpack.c.b16 %v2552, %v2551
    %v2566 = vpack.c.b16 %v2554, %v2553
    %v2567 = vpack.c.b16 %v2556, %v2555
    %v2568 = vpack.c.b16 %v2558, %v2557
    %vm2578 = vcmask 252928
    %v2580 = vsel %vm2578, %v2498, 0
    %v2583 = vand.u32 %v2568, %v1296
    %2585 = vmatprep.subr.bf16.mxu0 0
    %2586 = vmatpush1.bf16.msra.mxu0 %v2566
    %2587 = vmatprep.subr.bf16.mxu0 0
    %2588 = vmatpush1.bf16.msra.mxu0 %v2565
    %2589 = vmatprep.subr.bf16.mxu0 0
    %2590 = vmatpush1.bf16.msra.mxu0 %v2564
    %2591 = vmatprep.subr.bf16.mxu0 0
    %2592 = vmatpush1.bf16.msra.mxu0 %v2563
    %2593 = vmatprep.subr.bf16.mxu0 0
    %2594 = vmatpush1.bf16.msra.mxu0 %v2562
    %2595 = vmatprep.subr.bf16.mxu0 0
    %2596 = vmatpush1.bf16.msra.mxu0 %v2561
    %2597 = vmatprep.subr.bf16.mxu0 0
    %2598 = vmatpush1.bf16.msra.mxu0 %v2560
    %2599 = vmatprep.subr.bf16.mxu0 0
    %2600 = vmatpush1.bf16.msra.mxu0 %v2559
    %2601 = vmatprep.subr.bf16.mxu0 0
    %2602 = vmatpush2.bf16.msra.mxu0 0
    %2603 = vmatprep.subr.bf16.mxu0 0
    %2604 = vmatpush2.bf16.msra.mxu0 0
    %2605 = vmatprep.subr.bf16.mxu0 0
    %2606 = vmatpush2.bf16.msra.mxu0 0
    %2607 = vmatprep.subr.bf16.mxu0 0
    %2608 = vmatpush2.bf16.msra.mxu0 0
    %2609 = vmatprep.subr.bf16.mxu0 0
    %2610 = vmatpush2.bf16.msra.mxu0 0
    %2611 = vmatprep.subr.bf16.mxu0 0
    %2612 = vmatpush2.bf16.msra.mxu0 0
    %2613 = vmatprep.subr.bf16.mxu0 0
    %2614 = vmatpush2.bf16.msra.mxu0 %v2583
    %2615 = vmatprep.subr.bf16.mxu0 0
    %2616 = vmatpush2.bf16.msra.mxu0 %v2567
    %2617 = vmatprep.mubr.bf16.mxu0 %v2580
    %2618 = vmatmul.mubr.bf16.gmra.mxu0 %v2497
    %v2619 = vpop.f32.mrf.mxu0
    %v2620 = vadd.f32 0.0, %v2619
    %v2621 = vpop.f32.mrf.mxu0
    %v2622 = vpop.f32.mrf.mxu0
    %v2623 = vadd.f32 0.0, %v2622
    %v2624 = vpop.f32.mrf.mxu0
    %2625 = vdwg.mxu0
    %v2628 = vrot.slane %v2620, 1
    %v2629 = vrot.slane %v2623, 1
    %v2630 = vsel %vm1293, %v2628, %v2629
    %v2633 = vmax.f32 %v2620, %v2630
    %v2634 = vmax.f32 %v2623, %v2629
    %v2635 = vld [vmem:[%s10] sm:$0xf]
    %v2636 = vpack.c.bf16 %v2634, %v2633
    %vm2637 = vcmask 121856
    %v2639 = vsel %vm2637, %v2635, 0
    %v2642 = vand.u32 %v2636, %v1296
    %2644 = vmatprep.subr.bf16.mxu0 0
    %2645 = vmatpush1.bf16.msra.mxu0 0
    %2646 = vmatprep.subr.bf16.mxu0 0
    %2647 = vmatpush1.bf16.msra.mxu0 0
    %2648 = vmatprep.subr.bf16.mxu0 0
    %2649 = vmatpush1.bf16.msra.mxu0 0
    %2650 = vmatprep.subr.bf16.mxu0 0
    %2651 = vmatpush1.bf16.msra.mxu0 0
    %2652 = vmatprep.subr.bf16.mxu0 0
    %2653 = vmatpush1.bf16.msra.mxu0 0
    %2654 = vmatprep.subr.bf16.mxu0 0
    %2655 = vmatpush1.bf16.msra.mxu0 0
    %2656 = vmatprep.subr.bf16.mxu0 0
    %2657 = vmatpush1.bf16.msra.mxu0 0
    %2658 = vmatprep.subr.bf16.mxu0 0
    %2659 = vmatpush1.bf16.msra.mxu0 %v2642
    %2660 = vmatprep.subr.bf16.mxu0 0
    %2661 = vmatpush2.bf16.msra.mxu0 0
    %2662 = vmatprep.subr.bf16.mxu0 0
    %2663 = vmatpush2.bf16.msra.mxu0 0
    %2664 = vmatprep.subr.bf16.mxu0 0
    %2665 = vmatpush2.bf16.msra.mxu0 0
    %2666 = vmatprep.subr.bf16.mxu0 0
    %2667 = vmatpush2.bf16.msra.mxu0 0
    %2668 = vmatprep.subr.bf16.mxu0 0
    %2669 = vmatpush2.bf16.msra.mxu0 0
    %2670 = vmatprep.subr.bf16.mxu0 0
    %2671 = vmatpush2.bf16.msra.mxu0 0
    %2672 = vmatprep.subr.bf16.mxu0 0
    %2673 = vmatpush2.bf16.msra.mxu0 0
    %2674 = vmatprep.subr.bf16.mxu0 0
    %2675 = vmatpush2.bf16.msra.mxu0 0
    %2676 = vmatprep.mubr.bf16.mxu0 0
    %2677 = vmatmul.mubr.bf16.gmra.mxu0 %v2639
    %v2678 = vpop.f32.mrf.mxu0
    %v2679 = vadd.f32 0.0, %v2678
    %v2680 = vpop.f32.mrf.mxu0
    %v2681 = vpop.f32.mrf.mxu0
    %v2682 = vpop.f32.mrf.mxu0
    %2683 = vdwg.mxu0
    %v2684 = vpack.c.bf16 %v2679, %v2679
    %v2685 = vld [vmem:[%s11] sm:$0xf]
    %v2686 = vld [vmem:[%s11 + $0x4] sm:$0xf]
    %v2687 = vld [vmem:[%s11 + $0x8] sm:$0xf]
    %v2688 = vld [vmem:[%s11 + $0xc] sm:$0xf]
    %v2689 = vld [vmem:[%s11 + $0x10] sm:$0xf]
    %v2690 = vld [vmem:[%s11 + $0x14] sm:$0xf]
    %v2691 = vld [vmem:[%s11 + $0x18] sm:$0xf]
    %v2692 = vld [vmem:[%s11 + $0x1c] sm:$0xf]
    %v2693 = vld [vmem:[%s11 + $0x20] sm:$0xf]
    %v2694 = vld [vmem:[%s11 + $0x24] sm:$0xf]
    %s2695 = scalar_lea.vmem %s11, 40
    %v2696 = vld [vmem:[%s2695] sm:$0xf]
    %v2697 = vld [vmem:[%s2695 + $0x4] sm:$0xf]
    %v2698 = vld [vmem:[%s2695 + $0x8] sm:$0xf]
    %v2699 = vld [vmem:[%s2695 + $0xc] sm:$0xf]
    %v2700 = vld [vmem:[%s2695 + $0x10] sm:$0xf]
    %v2701 = vld [vmem:[%s2695 + $0x14] sm:$0xf]
    %v2702 = vld [vmem:[%s2695 + $0x18] sm:$0xf]
    %v2703 = vld [vmem:[%s2695 + $0x1c] sm:$0xf]
    %v2704 = vld [vmem:[%s2695 + $0x20] sm:$0xf]
    %v2705 = vld [vmem:[%s2695 + $0x24] sm:$0xf]
    %v2707 = vrot.slane %v2684, 1
    %v2718 = vunpack.c.l.b16 %v2696
    %v2719 = vunpack.c.l.b16 %v2697
    %v2720 = vunpack.c.l.b16 %v2698
    %v2721 = vunpack.c.l.b16 %v2699
    %v2722 = vunpack.c.l.b16 %v2700
    %v2723 = vunpack.c.l.b16 %v2701
    %v2724 = vunpack.c.l.b16 %v2702
    %v2725 = vunpack.c.l.b16 %v2703
    %v2726 = vunpack.c.l.b16 %v2704
    %v2727 = vunpack.c.l.b16 %v2705
    %v2728 = vpack.c.b16 %v2719, %v2718
    %v2729 = vpack.c.b16 %v2721, %v2720
    %v2730 = vpack.c.b16 %v2723, %v2722
    %v2731 = vpack.c.b16 %v2725, %v2724
    %v2732 = vpack.c.b16 %v2727, %v2726
    %vm2738 = vcmask 654336
    %v2740 = vsel %vm2738, %v2707, 0
    %2742 = vmatprep.subr.bf16.mxu0 0
    %2743 = vmatpush1.bf16.msra.mxu0 0
    %2744 = vmatprep.subr.bf16.mxu0 0
    %2745 = vmatpush1.bf16.msra.mxu0 0
    %2746 = vmatprep.subr.bf16.mxu0 0
    %2747 = vmatpush1.bf16.msra.mxu0 0
    %2748 = vmatprep.subr.bf16.mxu0 0
    %2749 = vmatpush1.bf16.msra.mxu0 %v2732
    %2750 = vmatprep.subr.bf16.mxu0 0
    %2751 = vmatpush1.bf16.msra.mxu0 %v2731
    %2752 = vmatprep.subr.bf16.mxu0 0
    %2753 = vmatpush1.bf16.msra.mxu0 %v2730
    %2754 = vmatprep.subr.bf16.mxu0 0
    %2755 = vmatpush1.bf16.msra.mxu0 %v2729
    %2756 = vmatprep.subr.bf16.mxu0 0
    %2757 = vmatpush1.bf16.msra.mxu0 %v2728
    %2758 = vmatprep.subr.bf16.mxu0 0
    %2759 = vmatpush2.bf16.msra.mxu0 0
    %2760 = vmatprep.subr.bf16.mxu0 0
    %2761 = vmatpush2.bf16.msra.mxu0 0
    %2762 = vmatprep.subr.bf16.mxu0 0
    %2763 = vmatpush2.bf16.msra.mxu0 0
    %2764 = vmatprep.subr.bf16.mxu0 0
    %2765 = vmatpush2.bf16.msra.mxu0 0
    %2766 = vmatprep.subr.bf16.mxu0 0
    %2767 = vmatpush2.bf16.msra.mxu0 0
    %2768 = vmatprep.subr.bf16.mxu0 0
    %2769 = vmatpush2.bf16.msra.mxu0 0
    %2770 = vmatprep.subr.bf16.mxu0 0
    %2771 = vmatpush2.bf16.msra.mxu0 0
    %2772 = vmatprep.subr.bf16.mxu0 0
    %2773 = vmatpush2.bf16.msra.mxu0 0
    %2774 = vmatprep.mubr.bf16.mxu0 0
    %2775 = vmatmul.mubr.bf16.gmra.mxu0 %v2740
    %v2776 = vpop.f32.mrf.mxu0
    %v2777 = vadd.f32 0.0, %v2776
    %v2778 = vpop.f32.mrf.mxu0
    %v2779 = vpop.f32.mrf.mxu0
    %v2780 = vpop.f32.mrf.mxu0
    %2781 = vdwg.mxu0
    %v2792 = vunpack.c.l.b16 %v2685
    %v2793 = vunpack.c.l.b16 %v2686
    %v2794 = vunpack.c.l.b16 %v2687
    %v2795 = vunpack.c.l.b16 %v2688
    %v2796 = vunpack.c.l.b16 %v2689
    %v2797 = vunpack.c.l.b16 %v2690
    %v2798 = vunpack.c.l.b16 %v2691
    %v2799 = vunpack.c.l.b16 %v2692
    %v2800 = vunpack.c.l.b16 %v2693
    %v2801 = vunpack.c.l.b16 %v2694
    %v2802 = vpack.c.b16 %v2793, %v2792
    %v2803 = vpack.c.b16 %v2795, %v2794
    %v2804 = vpack.c.b16 %v2797, %v2796
    %v2805 = vpack.c.b16 %v2799, %v2798
    %v2806 = vpack.c.b16 %v2801, %v2800
    %v2813 = vsel %vm2738, %v2684, 0
    %2815 = vmatprep.subr.bf16.mxu0 0
    %2816 = vmatpush1.bf16.msra.mxu0 0
    %2817 = vmatprep.subr.bf16.mxu0 0
    %2818 = vmatpush1.bf16.msra.mxu0 0
    %2819 = vmatprep.subr.bf16.mxu0 0
    %2820 = vmatpush1.bf16.msra.mxu0 0
    %2821 = vmatprep.subr.bf16.mxu0 0
    %2822 = vmatpush1.bf16.msra.mxu0 %v2806
    %2823 = vmatprep.subr.bf16.mxu0 0
    %2824 = vmatpush1.bf16.msra.mxu0 %v2805
    %2825 = vmatprep.subr.bf16.mxu0 0
    %2826 = vmatpush1.bf16.msra.mxu0 %v2804
    %2827 = vmatprep.subr.bf16.mxu0 0
    %2828 = vmatpush1.bf16.msra.mxu0 %v2803
    %2829 = vmatprep.subr.bf16.mxu0 0
    %2830 = vmatpush1.bf16.msra.mxu0 %v2802
    %2831 = vmatprep.subr.bf16.mxu0 0
    %2832 = vmatpush2.bf16.msra.mxu0 0
    %2833 = vmatprep.subr.bf16.mxu0 0
    %2834 = vmatpush2.bf16.msra.mxu0 0
    %2835 = vmatprep.subr.bf16.mxu0 0
    %2836 = vmatpush2.bf16.msra.mxu0 0
    %2837 = vmatprep.subr.bf16.mxu0 0
    %2838 = vmatpush2.bf16.msra.mxu0 0
    %2839 = vmatprep.subr.bf16.mxu0 0
    %2840 = vmatpush2.bf16.msra.mxu0 0
    %2841 = vmatprep.subr.bf16.mxu0 0
    %2842 = vmatpush2.bf16.msra.mxu0 0
    %2843 = vmatprep.subr.bf16.mxu0 0
    %2844 = vmatpush2.bf16.msra.mxu0 0
    %2845 = vmatprep.subr.bf16.mxu0 0
    %2846 = vmatpush2.bf16.msra.mxu0 0
    %2847 = vmatprep.mubr.bf16.mxu0 0
    %2848 = vmatmul.mubr.bf16.gmra.mxu0 %v2813
    %v2849 = vpop.f32.mrf.mxu0
    %v2850 = vadd.f32 %v2777, %v2849
    %v2851 = vpop.f32.mrf.mxu0
    %v2852 = vpop.f32.mrf.mxu0
    %v2853 = vpop.f32.mrf.mxu0
    %2854 = vdwg.mxu0
    %s2855 = scalar_lea.vmem %s11, 80
    %v2856 = vld [vmem:[%s2855] sm:$0xf]
    %v2857 = vld [vmem:[%s2855 + $0x4] sm:$0xf]
    %v2858 = vld [vmem:[%s2855 + $0x8] sm:$0xf]
    %v2859 = vld [vmem:[%s2855 + $0xc] sm:$0xf]
    %v2860 = vld [vmem:[%s2855 + $0x10] sm:$0xf]
    %v2861 = vld [vmem:[%s2855 + $0x14] sm:$0xf]
    %v2862 = vld [vmem:[%s2855 + $0x18] sm:$0xf]
    %v2863 = vld [vmem:[%s2855 + $0x1c] sm:$0xf]
    %v2864 = vld [vmem:[%s2855 + $0x20] sm:$0xf]
    %v2865 = vld [vmem:[%s2855 + $0x24] sm:$0xf]
    %v2866 = vrot.slane %v2684, 2
    %v2877 = vunpack.c.l.b16 %v2856
    %v2878 = vunpack.c.l.b16 %v2857
    %v2879 = vunpack.c.l.b16 %v2858
    %v2880 = vunpack.c.l.b16 %v2859
    %v2881 = vunpack.c.l.b16 %v2860
    %v2882 = vunpack.c.l.b16 %v2861
    %v2883 = vunpack.c.l.b16 %v2862
    %v2884 = vunpack.c.l.b16 %v2863
    %v2885 = vunpack.c.l.b16 %v2864
    %v2886 = vunpack.c.l.b16 %v2865
    %v2887 = vpack.c.b16 %v2878, %v2877
    %v2888 = vpack.c.b16 %v2880, %v2879
    %v2889 = vpack.c.b16 %v2882, %v2881
    %v2890 = vpack.c.b16 %v2884, %v2883
    %v2891 = vpack.c.b16 %v2886, %v2885
    %v2898 = vsel %vm2738, %v2866, 0
    %2900 = vmatprep.subr.bf16.mxu0 0
    %2901 = vmatpush1.bf16.msra.mxu0 0
    %2902 = vmatprep.subr.bf16.mxu0 0
    %2903 = vmatpush1.bf16.msra.mxu0 0
    %2904 = vmatprep.subr.bf16.mxu0 0
    %2905 = vmatpush1.bf16.msra.mxu0 0
    %2906 = vmatprep.subr.bf16.mxu0 0
    %2907 = vmatpush1.bf16.msra.mxu0 %v2891
    %2908 = vmatprep.subr.bf16.mxu0 0
    %2909 = vmatpush1.bf16.msra.mxu0 %v2890
    %2910 = vmatprep.subr.bf16.mxu0 0
    %2911 = vmatpush1.bf16.msra.mxu0 %v2889
    %2912 = vmatprep.subr.bf16.mxu0 0
    %2913 = vmatpush1.bf16.msra.mxu0 %v2888
    %2914 = vmatprep.subr.bf16.mxu0 0
    %2915 = vmatpush1.bf16.msra.mxu0 %v2887
    %2916 = vmatprep.subr.bf16.mxu0 0
    %2917 = vmatpush2.bf16.msra.mxu0 0
    %2918 = vmatprep.subr.bf16.mxu0 0
    %2919 = vmatpush2.bf16.msra.mxu0 0
    %2920 = vmatprep.subr.bf16.mxu0 0
    %2921 = vmatpush2.bf16.msra.mxu0 0
    %2922 = vmatprep.subr.bf16.mxu0 0
    %2923 = vmatpush2.bf16.msra.mxu0 0
    %2924 = vmatprep.subr.bf16.mxu0 0
    %2925 = vmatpush2.bf16.msra.mxu0 0
    %2926 = vmatprep.subr.bf16.mxu0 0
    %2927 = vmatpush2.bf16.msra.mxu0 0
    %2928 = vmatprep.subr.bf16.mxu0 0
    %2929 = vmatpush2.bf16.msra.mxu0 0
    %2930 = vmatprep.subr.bf16.mxu0 0
    %2931 = vmatpush2.bf16.msra.mxu0 0
    %2932 = vmatprep.mubr.bf16.mxu0 0
    %2933 = vmatmul.mubr.bf16.gmra.mxu0 %v2898
    %v2934 = vpop.f32.mrf.mxu0
    %v2935 = vadd.f32 0.0, %v2934
    %v2936 = vpop.f32.mrf.mxu0
    %v2937 = vpop.f32.mrf.mxu0
    %v2938 = vpop.f32.mrf.mxu0
    %2939 = vdwg.mxu0
    %v2940 = vadd.f32 %v2850, %v2935
    %s2941 = scalar_lea.vmem %s11, 120
    %v2942 = vld [vmem:[%s2941] sm:$0xf]
    %v2943 = vld [vmem:[%s2941 + $0x4] sm:$0xf]
    %v2944 = vld [vmem:[%s2941 + $0x8] sm:$0xf]
    %v2945 = vld [vmem:[%s2941 + $0xc] sm:$0xf]
    %v2946 = vld [vmem:[%s2941 + $0x10] sm:$0xf]
    %v2947 = vld [vmem:[%s2941 + $0x14] sm:$0xf]
    %v2948 = vld [vmem:[%s2941 + $0x18] sm:$0xf]
    %v2949 = vld [vmem:[%s2941 + $0x1c] sm:$0xf]
    %v2950 = vld [vmem:[%s2941 + $0x20] sm:$0xf]
    %v2951 = vld [vmem:[%s2941 + $0x24] sm:$0xf]
    %v2952 = vrot.slane %v2684, 3
    %v2963 = vunpack.c.l.b16 %v2942
    %v2964 = vunpack.c.l.b16 %v2943
    %v2965 = vunpack.c.l.b16 %v2944
    %v2966 = vunpack.c.l.b16 %v2945
    %v2967 = vunpack.c.l.b16 %v2946
    %v2968 = vunpack.c.l.b16 %v2947
    %v2969 = vunpack.c.l.b16 %v2948
    %v2970 = vunpack.c.l.b16 %v2949
    %v2971 = vunpack.c.l.b16 %v2950
    %v2972 = vunpack.c.l.b16 %v2951
    %v2973 = vpack.c.b16 %v2964, %v2963
    %v2974 = vpack.c.b16 %v2966, %v2965
    %v2975 = vpack.c.b16 %v2968, %v2967
    %v2976 = vpack.c.b16 %v2970, %v2969
    %v2977 = vpack.c.b16 %v2972, %v2971
    %v2984 = vsel %vm2738, %v2952, 0
    %2986 = vmatprep.subr.bf16.mxu0 0
    %2987 = vmatpush1.bf16.msra.mxu0 0
    %2988 = vmatprep.subr.bf16.mxu0 0
    %2989 = vmatpush1.bf16.msra.mxu0 0
    %2990 = vmatprep.subr.bf16.mxu0 0
    %2991 = vmatpush1.bf16.msra.mxu0 0
    %2992 = vmatprep.subr.bf16.mxu0 0
    %2993 = vmatpush1.bf16.msra.mxu0 %v2977
    %2994 = vmatprep.subr.bf16.mxu0 0
    %2995 = vmatpush1.bf16.msra.mxu0 %v2976
    %2996 = vmatprep.subr.bf16.mxu0 0
    %2997 = vmatpush1.bf16.msra.mxu0 %v2975
    %2998 = vmatprep.subr.bf16.mxu0 0
    %2999 = vmatpush1.bf16.msra.mxu0 %v2974
    %3000 = vmatprep.subr.bf16.mxu0 0
    %3001 = vmatpush1.bf16.msra.mxu0 %v2973
    %3002 = vmatprep.subr.bf16.mxu0 0
    %3003 = vmatpush2.bf16.msra.mxu0 0
    %3004 = vmatprep.subr.bf16.mxu0 0
    %3005 = vmatpush2.bf16.msra.mxu0 0
    %3006 = vmatprep.subr.bf16.mxu0 0
    %3007 = vmatpush2.bf16.msra.mxu0 0
    %3008 = vmatprep.subr.bf16.mxu0 0
    %3009 = vmatpush2.bf16.msra.mxu0 0
    %3010 = vmatprep.subr.bf16.mxu0 0
    %3011 = vmatpush2.bf16.msra.mxu0 0
    %3012 = vmatprep.subr.bf16.mxu0 0
    %3013 = vmatpush2.bf16.msra.mxu0 0
    %3014 = vmatprep.subr.bf16.mxu0 0
    %3015 = vmatpush2.bf16.msra.mxu0 0
    %3016 = vmatprep.subr.bf16.mxu0 0
    %3017 = vmatpush2.bf16.msra.mxu0 0
    %3018 = vmatprep.mubr.bf16.mxu0 0
    %3019 = vmatmul.mubr.bf16.gmra.mxu0 %v2984
    %v3020 = vpop.f32.mrf.mxu0
    %v3021 = vadd.f32 0.0, %v3020
    %v3022 = vpop.f32.mrf.mxu0
    %v3023 = vpop.f32.mrf.mxu0
    %v3024 = vpop.f32.mrf.mxu0
    %3025 = vdwg.mxu0
    %v3026 = vadd.f32 %v2940, %v3021
    %vm3027 = vcmask 74752
    %3028 = vst.msk [vmem:[#allocation2] sm:$0x3] %vm3027, %v3026
    // Predicated region
    $region50: #{lenet_forward.1} parent=1 // pred_check
      _
    $region51: #{lenet_forward.1} parent=1 // pred_check_branch
      %3030 = sbr.rel (0) target = $region53
    $region52: #{lenet_forward.1} parent=1 // pred_region
      %s3032 = ssub.s32 32, 32
      %3033 = vsyncadd [#allocation3], %s3032
      %s3035 = sshll.u32 [#allocation2], 4
      %s3036 = int_to_ptr.vmem [resolvable:$true] %s3035
      %3038 = dma.vmem_to_hbm [thread:$0]  %s3036, 32, %s12, [#allocation3]
    $region53: #{lenet_forward.1} parent=1 // pred_fallthru
      _
    // Predicated region
    $region54: #{lenet_forward.1} parent=1 // pred_check
      _
    $region55: #{lenet_forward.1} parent=1 // pred_check_branch
      %3040 = sbr.rel (0) target = $region57
    $region56: #{lenet_forward.1} parent=1 // pred_region
      %3041 = dma.done [#allocation3], 32
    $region57: #{lenet_forward.1} parent=1 // pred_fallthru
      _
    %3042 = vsyncpa [#allocation3], 1

</llo_original>
